<compile_context>
chip_gen: v7x
topology: tpu7x:2x2x1
jax: 0.10.0
libtpu: 0.0.40
codegen_flags: <defaults>
</compile_context>

<pallas_src>
import math

import jax
import jax.numpy as jnp
from jax import lax
from jax.experimental import pallas as pl
from jax.experimental.pallas import tpu as pltpu

# ---------------- configuration (mirrors DWR.__init__) ----------------
C1 = 8             # input channels  c1
C2 = 16            # output channels c2
RATES = (1, 2, 3)  # dilation_rates
NR = len(RATES)
N, H, W = 2, 16, 16
HW = H * W
SP_K, SP_PAD = 7, 3                 # spatial-attention 7x7 conv
MAXOFF = max(max(RATES), SP_PAD)    # largest row/col tap offset (3)
BN_EPS = 1e-5

# Lane-aligned padded layout: no horizontal pad, vertical pad rounded to 8 rows.
PAD_ROWS = 8
BASE = PAD_ROWS * W                 # 128  (flat index of image pixel (0,0))
SPAN = HW                           # 256  (the image region == output region)
FLAT = BASE + SPAN + PAD_ROWS * W   # 512
assert BASE % 128 == 0 and SPAN % 128 == 0 and FLAT % 128 == 0
assert PAD_ROWS >= MAXOFF and BASE - (MAXOFF * W + MAXOFF) >= 0
assert FLAT - (BASE + SPAN + MAXOFF * W + MAXOFF) >= 0

# ECA kernel size (ECAAttention.__init__ with channels=C2, gamma=2, b=1)
_t = int(abs((math.log(C2, 2) + 1) / 2))
ECA_K = _t if _t % 2 else _t + 1
ECA_PAD = (ECA_K - 1) // 2

# Block-diagonal pointwise matmul: 3 branch (pointwise+BN) blocks + shortcut block.
TOT_IN = (NR + 1) * C1              # 32
TOT_OUT = (NR + 1) * C2             # 64

# Constant-slab layout: one (SLAB_ROWS, 128) f32 operand, row offsets sublane-aligned.
SLAB_COLS = 128
ROW_DW = 0                          # (C1, NR*9)      depthwise dilated-3x3 taps
ROW_BLK = ROW_DW + C1               # (64, 32)+bias   block-diag pointwise/BN + shortcut
ROW_F1 = ROW_BLK + TOT_OUT          # (32, 48)+bias   fusion conv 1
ROW_F2 = ROW_F1 + 2 * C2            # (16, 32)+bias   fusion conv 2
ROW_W7 = ROW_F2 + C2                # (16, 49)        7x7 spatial-attention taps
ROW_ECA = ROW_W7 + C2               # (1, ECA_K)      ECA 1D conv weights
SLAB_ROWS = ROW_ECA + 8             # 144 (multiple of 8)


# ---------------- in-kernel helpers ----------------
def _erf_approx(x):
    # Abramowitz & Stegun 7.1.26 rational approximation (|err| < 1.5e-7).
    a1, a2, a3, a4, a5 = 0.254829592, -0.284496736, 1.421413741, -1.453152027, 1.061405429
    p = 0.3275911
    s = jnp.where(x >= 0.0, 1.0, -1.0)
    ax = jnp.abs(x)
    t = 1.0 / (1.0 + p * ax)
    poly = ((((a5 * t + a4) * t + a3) * t + a2) * t + a1) * t
    return s * (1.0 - poly * jnp.exp(-ax * ax))


def _gelu_exact(x):
    # torch nn.GELU() default is the exact (erf) formulation
    return 0.5 * x * (1.0 + _erf_approx(x * (1.0 / math.sqrt(2.0))))


# ---------------- the fused kernel ----------------
def _dwr_kernel(x_ref, slab_ref, out_ref):
    f32 = jnp.float32
    x_cs = x_ref[0]                                               # (C1, HW) lane-dense

    # ---- constants from the single slab (static, sublane-tile-aligned row groups)
    g_dw = slab_ref[ROW_DW:ROW_DW + C1, :]
    g_blk = slab_ref[ROW_BLK:ROW_BLK + TOT_OUT, :]
    g_f1 = slab_ref[ROW_F1:ROW_F1 + 2 * C2, :]
    g_f2 = slab_ref[ROW_F2:ROW_F2 + C2, :]
    g_w7 = slab_ref[ROW_W7:ROW_W7 + C2, :]
    g_eca = slab_ref[ROW_ECA:ROW_ECA + 1, :]
    dww = g_dw[:, 0:NR * 9]                                       # (C1, 27)
    wblkT = g_blk[:, 0:TOT_IN]                                    # (64, 32)
    bblk = g_blk[:, TOT_IN:TOT_IN + 1]                            # (64, 1)
    fw1T = g_f1[:, 0:NR * C2]                                     # (32, 48)
    fb1 = g_f1[:, NR * C2:NR * C2 + 1]
    fw2T = g_f2[:, 0:2 * C2]                                      # (16, 32)
    fb2 = g_f2[:, 2 * C2:2 * C2 + 1]
    w7T = g_w7[:, 0:SP_K * SP_K]                                  # (16, 49)
    ecaw = g_eca[0:1, 0:ECA_K]                                    # (1, ECA_K)

    # ---- column-wrap masks (output col + dcol must stay inside [0, W)); built once
    iota = lax.broadcasted_iota(jnp.int32, (1, SPAN), 1)
    col = (iota & (W - 1)) if (W & (W - 1)) == 0 else (iota % W)
    colmask = {}
    for d in range(1, MAXOFF + 1):
        colmask[d] = (col <= (W - 1 - d)).astype(f32)
        colmask[-d] = (col >= d).astype(f32)

    # ---- vertically zero-padded image (channels x flat), built as aligned vreg value
    zc1 = jnp.zeros((C1, BASE), f32)
    xpad = jnp.concatenate([zc1, x_cs, zc1], axis=1)              # (C1, FLAT)

    def window(buf, drow, dcol):
        off = drow * W + dcol
        return buf[:, BASE + off: BASE + off + SPAN]

    # ---- depthwise dilated 3x3 convs: taps grouped by column offset (1 mask / group)
    branches = []
    for bi, rate in enumerate(RATES):
        acc = jnp.zeros((C1, SPAN), f32)
        for kj in range(3):
            dcol = (kj - 1) * rate
            part = jnp.zeros((C1, SPAN), f32)
            for ki in range(3):
                cidx = bi * 9 + ki * 3 + kj
                part = part + window(xpad, (ki - 1) * rate, dcol) * dww[:, cidx:cidx + 1]
            if dcol != 0:
                part = part * colmask[dcol]
            acc = acc + part
        branches.append(acc)

    # ---- pointwise+BN (3 branches) and shortcut 1x1: one block-diagonal matmul
    dwf_all = jnp.concatenate(branches + [x_cs], axis=0)          # (32, SPAN)
    z_all = jnp.dot(wblkT, dwf_all, preferred_element_type=f32) + bblk   # (64, SPAN)
    z = z_all[0:NR * C2]
    z = z * jax.nn.sigmoid(z)                                     # SiLU, (48, SPAN)
    sc = z_all[NR * C2:TOT_OUT]                                   # shortcut, (16, SPAN)

    # ---- fusion 1x1 convs + GELU
    h1 = jnp.dot(fw1T, z, preferred_element_type=f32) + fb1       # (32, SPAN)
    h1 = _gelu_exact(h1)
    fused = jnp.dot(fw2T, h1, preferred_element_type=f32) + fb2   # (16, SPAN)

    # ---- ECA channel attention: global avg pool (lane reduce) + 1D conv on channels
    avg = jnp.sum(fused, axis=-1, keepdims=True) * (1.0 / float(HW))     # (C2, 1)
    zp = jnp.zeros((ECA_PAD, 1), f32)
    avgp = jnp.concatenate([zp, avg, zp], axis=0)                 # (C2 + 2*pad, 1)
    y = jnp.zeros((C2, 1), f32)
    for j in range(ECA_K):
        y = y + ecaw[0:1, j:j + 1] * avgp[j:j + C2, :]
    ca = jax.nn.sigmoid(y)                                        # (C2, 1)

    # ---- 7x7 spatial attention: taps grouped by column offset, channel reduce last
    zc2 = jnp.zeros((C2, BASE), f32)
    fpad = jnp.concatenate([zc2, fused, zc2], axis=1)             # (C2, FLAT)
    acc7 = jnp.zeros((C2, SPAN), f32)
    for dj in range(SP_K):
        dcol = dj - SP_PAD
        part = jnp.zeros((C2, SPAN), f32)
        for di in range(SP_K):
            t = di * SP_K + dj
            part = part + window(fpad, di - SP_PAD, dcol) * w7T[:, t:t + 1]
        if dcol != 0:
            part = part * colmask[dcol]
        acc7 = acc7 + part
    sp = jax.nn.sigmoid(jnp.sum(acc7, axis=0, keepdims=True))     # (1, SPAN)

    # ---- combine: shortcut + fused * (fused*sigmoid(y)) * spatial; lane-dense store
    out_ref[0] = sc + fused * fused * ca * sp                     # (C2, HW)


# ---------------- wrapper ----------------
def _build_slab(p):
    f32 = jnp.float32
    bns = [p['bn_gamma'][i] / jnp.sqrt(p['bn_var'][i] + BN_EPS) for i in range(NR)]
    bnb = [p['bn_beta'][i] - p['bn_mean'][i] * bns[i] for i in range(NR)]

    # depthwise weights: (C1, NR*9), column = rate*9 + ki*3 + kj
    dwwT = jnp.concatenate([p['dw_w'][i][:, 0].reshape(C1, 9) for i in range(NR)], axis=1)

    # pointwise convs with BN folded + shortcut conv, packed block-diagonally
    wblkT = jnp.zeros((TOT_OUT, TOT_IN), f32)
    for i in range(NR):
        blk = p['pw_w'][i][:, :, 0, 0] * bns[i][:, None]                 # (C2, C1)
        wblkT = wblkT.at[i * C2:(i + 1) * C2, i * C1:(i + 1) * C1].set(blk)
    if C1 == C2:   # nn.Identity shortcut -> identity block, zero bias
        scw = jnp.eye(C2, dtype=f32)
        scb = jnp.zeros((C2,), f32)
    else:
        scw = p['sc_w'][:, :, 0, 0]
        scb = p['sc_b']
    wblkT = wblkT.at[NR * C2:, NR * C1:].set(scw)
    bblk = jnp.concatenate(bnb + [scb])                                   # (TOT_OUT,)

    fw1T, fb1 = p['fuse_w1'][:, :, 0, 0], p['fuse_b1']
    fw2T, fb2 = p['fuse_w2'][:, :, 0, 0], p['fuse_b2']
    w7T = p['sp_w'][0].reshape(C2, SP_K * SP_K)
    ecaw = p['eca_w'].reshape(ECA_K)

    slab = jnp.zeros((SLAB_ROWS, SLAB_COLS), f32)
    slab = slab.at[ROW_DW:ROW_DW + C1, 0:NR * 9].set(dwwT)
    slab = slab.at[ROW_BLK:ROW_BLK + TOT_OUT, 0:TOT_IN].set(wblkT)
    slab = slab.at[ROW_BLK:ROW_BLK + TOT_OUT, TOT_IN].set(bblk)
    slab = slab.at[ROW_F1:ROW_F1 + 2 * C2, 0:NR * C2].set(fw1T)
    slab = slab.at[ROW_F1:ROW_F1 + 2 * C2, NR * C2].set(fb1)
    slab = slab.at[ROW_F2:ROW_F2 + C2, 0:2 * C2].set(fw2T)
    slab = slab.at[ROW_F2:ROW_F2 + C2, 2 * C2].set(fb2)
    slab = slab.at[ROW_W7:ROW_W7 + C2, 0:SP_K * SP_K].set(w7T)
    slab = slab.at[ROW_ECA, 0:ECA_K].set(ecaw)
    return slab


def dwr_forward(x_nchw, p):
    x = x_nchw.astype(jnp.float32)
    n = x.shape[0]
    x_flat = x.reshape(n, C1, HW)          # native NCHW, spatial flattened (free)
    slab = _build_slab(p)                  # ONE constant operand -> one DMA

    # One image per grid step, marked "parallel": v7x shards the two images across its
    # two TensorCores; on single-TC v5e/v6e the serial-step overhead is negligible.
    grid_spec = pltpu.PrefetchScalarGridSpec(
        num_scalar_prefetch=0,
        grid=(n,),
        in_specs=[
            pl.BlockSpec((1, C1, HW), lambda b: (b, 0, 0)),
            pl.BlockSpec((SLAB_ROWS, SLAB_COLS), lambda b: (0, 0)),
        ],
        out_specs=pl.BlockSpec((1, C2, HW), lambda b: (b, 0, 0)),
    )
    out = pl.pallas_call(
        _dwr_kernel,
        out_shape=jax.ShapeDtypeStruct((n, C2, HW), jnp.float32),
        grid_spec=grid_spec,
        compiler_params=pltpu.CompilerParams(dimension_semantics=("parallel",)),
    )(x_flat, slab)

    return out.reshape(n, C2, H, W)        # already NCHW: no transpose needed


# ---------------- deterministic parameter init (torch-shaped) ----------------
def init_params(key):
    keys = jax.random.split(key, 32)
    kit = iter(keys)

    def nrm(shape, scale=1.0):
        return scale * jax.random.normal(next(kit), shape, jnp.float32)

    return dict(
        dw_w=[nrm((C1, 1, 3, 3), 0.3) for _ in range(NR)],
        pw_w=[nrm((C2, C1, 1, 1), 1.0 / math.sqrt(C1)) for _ in range(NR)],
        bn_gamma=[1.0 + nrm((C2,), 0.1) for _ in range(NR)],
        bn_beta=[nrm((C2,), 0.1) for _ in range(NR)],
        bn_mean=[nrm((C2,), 0.1) for _ in range(NR)],
        bn_var=[1.0 + 0.1 * jnp.abs(nrm((C2,))) for _ in range(NR)],
        fuse_w1=nrm((2 * C2, NR * C2, 1, 1), 1.0 / math.sqrt(NR * C2)),
        fuse_b1=nrm((2 * C2,), 0.1),
        fuse_w2=nrm((C2, 2 * C2, 1, 1), 1.0 / math.sqrt(2 * C2)),
        fuse_b2=nrm((C2,), 0.1),
        eca_w=nrm((1, 1, ECA_K), 0.5),
        sp_w=nrm((1, C2, 7, 7), 1.0 / math.sqrt(49 * C2)),
        sc_w=nrm((C2, C1, 1, 1), 1.0 / math.sqrt(C1)),
        sc_b=nrm((C2,), 0.1),
    )


# ---------------- pure-JAX reference (NCHW, mirrors the torch forward) ----------------
def _conv2d(x, w, b=None, padding=0, dilation=1, groups=1):
    out = lax.conv_general_dilated(
        x, w, window_strides=(1, 1),
        padding=[(padding, padding), (padding, padding)],
        rhs_dilation=(dilation, dilation),
        dimension_numbers=('NCHW', 'OIHW', 'NCHW'),
        feature_group_count=groups,
        precision=lax.Precision.HIGHEST)
    if b is not None:
        out = out + b[None, :, None, None]
    return out


def dwr_reference(x, p):
    feats = []
    for i, r in enumerate(RATES):
        z = _conv2d(x, p['dw_w'][i], padding=r, dilation=r, groups=C1)
        z = _conv2d(z, p['pw_w'][i])
        z = (z - p['bn_mean'][i][None, :, None, None]) / \
            jnp.sqrt(p['bn_var'][i] + BN_EPS)[None, :, None, None]
        z = z * p['bn_gamma'][i][None, :, None, None] + p['bn_beta'][i][None, :, None, None]
        z = z * jax.nn.sigmoid(z)
        feats.append(z)
    cat = jnp.concatenate(feats, axis=1)
    h = jax.nn.gelu(_conv2d(cat, p['fuse_w1'], p['fuse_b1']), approximate=False)
    fused = _conv2d(h, p['fuse_w2'], p['fuse_b2'])
    # ECA channel attention
    v = jnp.mean(fused, axis=(2, 3))                      # (N, C2)
    vp = jnp.pad(v, ((0, 0), (ECA_PAD, ECA_PAD)))
    w1d = p['eca_w'][0, 0]
    y = sum(w1d[j] * vp[:, j:j + C2] for j in range(ECA_K))
    channel_att = fused * jax.nn.sigmoid(y)[:, :, None, None]
    spatial_att = jax.nn.sigmoid(_conv2d(fused, p['sp_w'], padding=3))
    shortcut = x if C1 == C2 else _conv2d(x, p['sc_w'], p['sc_b'])
    return shortcut + fused * channel_att * spatial_att


if __name__ == "__main__":
    key = jax.random.PRNGKey(0)
    kx, kp = jax.random.split(key)
    x = jax.random.normal(kx, (N, C1, H, W), jnp.float32)
    params = init_params(kp)

    out = jax.block_until_ready(jax.jit(dwr_forward)(x, params))
    ref = jax.block_until_ready(dwr_reference(x, params))

    assert out.shape == (N, C2, H, W), out.shape
    err = float(jnp.max(jnp.abs(out - ref)))
    # tolerance budgets for single-pass (bf16) MXU matmuls at default precision
    assert err < 5e-2, f"max abs error vs reference: {err}"
    print("KERNEL_OK")
</pallas_src>

<mosaic_0001>
module attributes {stable_mosaic.version = 11 : i64} {
  func.func @_dwr_kernel(%arg0: i32, %arg1: memref<1x8x256xf32, #tpu.memory_space<vmem>>, %arg2: memref<144x128xf32, #tpu.memory_space<vmem>>, %arg3: memref<1x16x256xf32, #tpu.memory_space<vmem>>) attributes {dimension_semantics = [#tpu.dimension_semantics<parallel>], iteration_bounds = array<i64: 2>, scalar_prefetch = 0 : i64, scratch_operands = 0 : i64, tpu.core_type = #tpu.core_type<tc>, window_params = [{transform_indices = @transform_0, window_bounds = array<i64: 1, 8, 256>}, {pipeline_mode = #tpu.pipeline_mode<synchronous>, transform_indices = @transform_1, window_bounds = array<i64: 144, 128>}, {transform_indices = @transform_2, window_bounds = array<i64: 1, 16, 256>}]} {
    %c0 = arith.constant 0 : index
    %c0_0 = arith.constant 0 : index
    %c0_1 = arith.constant 0 : index
    %0 = vector.load %arg1[%c0, %c0_0, %c0_1] : memref<1x8x256xf32, #tpu.memory_space<vmem>>, vector<1x8x256xf32>
    %1 = vector.shape_cast %0 : vector<1x8x256xf32> to vector<8x256xf32>
    %c0_2 = arith.constant 0 : index
    %c0_3 = arith.constant 0 : index
    %2 = vector.load %arg2[%c0_2, %c0_3] : memref<144x128xf32, #tpu.memory_space<vmem>>, vector<8x128xf32>
    %c8 = arith.constant 8 : index
    %c0_4 = arith.constant 0 : index
    %3 = vector.load %arg2[%c8, %c0_4] : memref<144x128xf32, #tpu.memory_space<vmem>>, vector<64x128xf32>
    %c72 = arith.constant 72 : index
    %c0_5 = arith.constant 0 : index
    %4 = vector.load %arg2[%c72, %c0_5] : memref<144x128xf32, #tpu.memory_space<vmem>>, vector<32x128xf32>
    %c104 = arith.constant 104 : index
    %c0_6 = arith.constant 0 : index
    %5 = vector.load %arg2[%c104, %c0_6] : memref<144x128xf32, #tpu.memory_space<vmem>>, vector<16x128xf32>
    %c120 = arith.constant 120 : index
    %c0_7 = arith.constant 0 : index
    %6 = vector.load %arg2[%c120, %c0_7] : memref<144x128xf32, #tpu.memory_space<vmem>>, vector<16x128xf32>
    %c136 = arith.constant 136 : index
    %c0_8 = arith.constant 0 : index
    %7 = vector.load %arg2[%c136, %c0_8] : memref<144x128xf32, #tpu.memory_space<vmem>>, vector<1x128xf32>
    %8 = vector.extract_strided_slice %2 {offsets = [0, 0], sizes = [8, 27], strides = [1, 1]} : vector<8x128xf32> to vector<8x27xf32>
    %9 = vector.extract_strided_slice %3 {offsets = [0, 0], sizes = [64, 32], strides = [1, 1]} : vector<64x128xf32> to vector<64x32xf32>
    %10 = vector.extract_strided_slice %3 {offsets = [0, 32], sizes = [64, 1], strides = [1, 1]} : vector<64x128xf32> to vector<64x1xf32>
    %11 = vector.extract_strided_slice %4 {offsets = [0, 0], sizes = [32, 48], strides = [1, 1]} : vector<32x128xf32> to vector<32x48xf32>
    %12 = vector.extract_strided_slice %4 {offsets = [0, 48], sizes = [32, 1], strides = [1, 1]} : vector<32x128xf32> to vector<32x1xf32>
    %13 = vector.extract_strided_slice %5 {offsets = [0, 0], sizes = [16, 32], strides = [1, 1]} : vector<16x128xf32> to vector<16x32xf32>
    %14 = vector.extract_strided_slice %5 {offsets = [0, 32], sizes = [16, 1], strides = [1, 1]} : vector<16x128xf32> to vector<16x1xf32>
    %15 = vector.extract_strided_slice %6 {offsets = [0, 0], sizes = [16, 49], strides = [1, 1]} : vector<16x128xf32> to vector<16x49xf32>
    %16 = vector.extract_strided_slice %7 {offsets = [0, 0], sizes = [1, 3], strides = [1, 1]} : vector<1x128xf32> to vector<1x3xf32>
    %17 = tpu.iota {dimensions = array<i32: 1>} : vector<1x256xi32>
    %c15_i32 = arith.constant 15 : i32
    %18 = vector.broadcast %c15_i32 : i32 to vector<1x256xi32>
    %19 = arith.andi %17, %18 : vector<1x256xi32>
    %c14_i32 = arith.constant 14 : i32
    %20 = vector.broadcast %c14_i32 : i32 to vector<1x256xi32>
    %21 = arith.cmpi sle, %19, %20 : vector<1x256xi32>
    %22 = arith.extui %21 : vector<1x256xi1> to vector<1x256xi32>
    %23 = arith.sitofp %22 : vector<1x256xi32> to vector<1x256xf32>
    %c1_i32 = arith.constant 1 : i32
    %24 = vector.broadcast %c1_i32 : i32 to vector<1x256xi32>
    %25 = arith.cmpi sge, %19, %24 : vector<1x256xi32>
    %26 = arith.extui %25 : vector<1x256xi1> to vector<1x256xi32>
    %27 = arith.sitofp %26 : vector<1x256xi32> to vector<1x256xf32>
    %c13_i32 = arith.constant 13 : i32
    %28 = vector.broadcast %c13_i32 : i32 to vector<1x256xi32>
    %29 = arith.cmpi sle, %19, %28 : vector<1x256xi32>
    %30 = arith.extui %29 : vector<1x256xi1> to vector<1x256xi32>
    %31 = arith.sitofp %30 : vector<1x256xi32> to vector<1x256xf32>
    %c2_i32 = arith.constant 2 : i32
    %32 = vector.broadcast %c2_i32 : i32 to vector<1x256xi32>
    %33 = arith.cmpi sge, %19, %32 : vector<1x256xi32>
    %34 = arith.extui %33 : vector<1x256xi1> to vector<1x256xi32>
    %35 = arith.sitofp %34 : vector<1x256xi32> to vector<1x256xf32>
    %c12_i32 = arith.constant 12 : i32
    %36 = vector.broadcast %c12_i32 : i32 to vector<1x256xi32>
    %37 = arith.cmpi sle, %19, %36 : vector<1x256xi32>
    %38 = arith.extui %37 : vector<1x256xi1> to vector<1x256xi32>
    %39 = arith.sitofp %38 : vector<1x256xi32> to vector<1x256xf32>
    %c3_i32 = arith.constant 3 : i32
    %40 = vector.broadcast %c3_i32 : i32 to vector<1x256xi32>
    %41 = arith.cmpi sge, %19, %40 : vector<1x256xi32>
    %42 = arith.extui %41 : vector<1x256xi1> to vector<1x256xi32>
    %43 = arith.sitofp %42 : vector<1x256xi32> to vector<1x256xf32>
    %cst = arith.constant 0.000000e+00 : f32
    %44 = vector.broadcast %cst : f32 to vector<8x128xf32>
    %45 = tpu.concatenate %44, %1, %44 in 1 : vector<8x128xf32>, vector<8x256xf32>, vector<8x128xf32> -> vector<8x512xf32>
    %cst_9 = arith.constant 0.000000e+00 : f32
    %46 = vector.broadcast %cst_9 : f32 to vector<8x256xf32>
    %cst_10 = arith.constant 0.000000e+00 : f32
    %47 = vector.broadcast %cst_10 : f32 to vector<8x256xf32>
    %48 = vector.extract_strided_slice %45 {offsets = [0, 111], sizes = [8, 256], strides = [1, 1]} : vector<8x512xf32> to vector<8x256xf32>
    %49 = vector.extract_strided_slice %8 {offsets = [0, 0], sizes = [8, 1], strides = [1, 1]} : vector<8x27xf32> to vector<8x1xf32>
    %50 = vector.broadcast %49 : vector<8x1xf32> to vector<8x256xf32>
    %51 = arith.mulf %48, %50 : vector<8x256xf32>
    %52 = arith.addf %47, %51 : vector<8x256xf32>
    %53 = vector.extract_strided_slice %45 {offsets = [0, 127], sizes = [8, 256], strides = [1, 1]} : vector<8x512xf32> to vector<8x256xf32>
    %54 = vector.extract_strided_slice %8 {offsets = [0, 3], sizes = [8, 1], strides = [1, 1]} : vector<8x27xf32> to vector<8x1xf32>
    %55 = vector.broadcast %54 : vector<8x1xf32> to vector<8x256xf32>
    %56 = arith.mulf %53, %55 : vector<8x256xf32>
    %57 = arith.addf %52, %56 : vector<8x256xf32>
    %58 = vector.extract_strided_slice %45 {offsets = [0, 143], sizes = [8, 256], strides = [1, 1]} : vector<8x512xf32> to vector<8x256xf32>
    %59 = vector.extract_strided_slice %8 {offsets = [0, 6], sizes = [8, 1], strides = [1, 1]} : vector<8x27xf32> to vector<8x1xf32>
    %60 = vector.broadcast %59 : vector<8x1xf32> to vector<8x256xf32>
    %61 = arith.mulf %58, %60 : vector<8x256xf32>
    %62 = arith.addf %57, %61 : vector<8x256xf32>
    %63 = vector.broadcast %27 : vector<1x256xf32> to vector<8x256xf32>
    %64 = arith.mulf %62, %63 : vector<8x256xf32>
    %65 = arith.addf %46, %64 : vector<8x256xf32>
    %cst_11 = arith.constant 0.000000e+00 : f32
    %66 = vector.broadcast %cst_11 : f32 to vector<8x256xf32>
    %67 = vector.extract_strided_slice %45 {offsets = [0, 112], sizes = [8, 256], strides = [1, 1]} : vector<8x512xf32> to vector<8x256xf32>
    %68 = vector.extract_strided_slice %8 {offsets = [0, 1], sizes = [8, 1], strides = [1, 1]} : vector<8x27xf32> to vector<8x1xf32>
    %69 = vector.broadcast %68 : vector<8x1xf32> to vector<8x256xf32>
    %70 = arith.mulf %67, %69 : vector<8x256xf32>
    %71 = arith.addf %66, %70 : vector<8x256xf32>
    %72 = vector.extract_strided_slice %45 {offsets = [0, 128], sizes = [8, 256], strides = [1, 1]} : vector<8x512xf32> to vector<8x256xf32>
    %73 = vector.extract_strided_slice %8 {offsets = [0, 4], sizes = [8, 1], strides = [1, 1]} : vector<8x27xf32> to vector<8x1xf32>
    %74 = vector.broadcast %73 : vector<8x1xf32> to vector<8x256xf32>
    %75 = arith.mulf %72, %74 : vector<8x256xf32>
    %76 = arith.addf %71, %75 : vector<8x256xf32>
    %77 = vector.extract_strided_slice %45 {offsets = [0, 144], sizes = [8, 256], strides = [1, 1]} : vector<8x512xf32> to vector<8x256xf32>
    %78 = vector.extract_strided_slice %8 {offsets = [0, 7], sizes = [8, 1], strides = [1, 1]} : vector<8x27xf32> to vector<8x1xf32>
    %79 = vector.broadcast %78 : vector<8x1xf32> to vector<8x256xf32>
    %80 = arith.mulf %77, %79 : vector<8x256xf32>
    %81 = arith.addf %76, %80 : vector<8x256xf32>
    %82 = arith.addf %65, %81 : vector<8x256xf32>
    %cst_12 = arith.constant 0.000000e+00 : f32
    %83 = vector.broadcast %cst_12 : f32 to vector<8x256xf32>
    %84 = vector.extract_strided_slice %45 {offsets = [0, 113], sizes = [8, 256], strides = [1, 1]} : vector<8x512xf32> to vector<8x256xf32>
    %85 = vector.extract_strided_slice %8 {offsets = [0, 2], sizes = [8, 1], strides = [1, 1]} : vector<8x27xf32> to vector<8x1xf32>
    %86 = vector.broadcast %85 : vector<8x1xf32> to vector<8x256xf32>
    %87 = arith.mulf %84, %86 : vector<8x256xf32>
    %88 = arith.addf %83, %87 : vector<8x256xf32>
    %89 = vector.extract_strided_slice %45 {offsets = [0, 129], sizes = [8, 256], strides = [1, 1]} : vector<8x512xf32> to vector<8x256xf32>
    %90 = vector.extract_strided_slice %8 {offsets = [0, 5], sizes = [8, 1], strides = [1, 1]} : vector<8x27xf32> to vector<8x1xf32>
    %91 = vector.broadcast %90 : vector<8x1xf32> to vector<8x256xf32>
    %92 = arith.mulf %89, %91 : vector<8x256xf32>
    %93 = arith.addf %88, %92 : vector<8x256xf32>
    %94 = vector.extract_strided_slice %45 {offsets = [0, 145], sizes = [8, 256], strides = [1, 1]} : vector<8x512xf32> to vector<8x256xf32>
    %95 = vector.extract_strided_slice %8 {offsets = [0, 8], sizes = [8, 1], strides = [1, 1]} : vector<8x27xf32> to vector<8x1xf32>
    %96 = vector.broadcast %95 : vector<8x1xf32> to vector<8x256xf32>
    %97 = arith.mulf %94, %96 : vector<8x256xf32>
    %98 = arith.addf %93, %97 : vector<8x256xf32>
    %99 = vector.broadcast %23 : vector<1x256xf32> to vector<8x256xf32>
    %100 = arith.mulf %98, %99 : vector<8x256xf32>
    %101 = arith.addf %82, %100 : vector<8x256xf32>
    %cst_13 = arith.constant 0.000000e+00 : f32
    %102 = vector.broadcast %cst_13 : f32 to vector<8x256xf32>
    %cst_14 = arith.constant 0.000000e+00 : f32
    %103 = vector.broadcast %cst_14 : f32 to vector<8x256xf32>
    %104 = vector.extract_strided_slice %45 {offsets = [0, 94], sizes = [8, 256], strides = [1, 1]} : vector<8x512xf32> to vector<8x256xf32>
    %105 = vector.extract_strided_slice %8 {offsets = [0, 9], sizes = [8, 1], strides = [1, 1]} : vector<8x27xf32> to vector<8x1xf32>
    %106 = vector.broadcast %105 : vector<8x1xf32> to vector<8x256xf32>
    %107 = arith.mulf %104, %106 : vector<8x256xf32>
    %108 = arith.addf %103, %107 : vector<8x256xf32>
    %109 = vector.extract_strided_slice %45 {offsets = [0, 126], sizes = [8, 256], strides = [1, 1]} : vector<8x512xf32> to vector<8x256xf32>
    %110 = vector.extract_strided_slice %8 {offsets = [0, 12], sizes = [8, 1], strides = [1, 1]} : vector<8x27xf32> to vector<8x1xf32>
    %111 = vector.broadcast %110 : vector<8x1xf32> to vector<8x256xf32>
    %112 = arith.mulf %109, %111 : vector<8x256xf32>
    %113 = arith.addf %108, %112 : vector<8x256xf32>
    %114 = vector.extract_strided_slice %45 {offsets = [0, 158], sizes = [8, 256], strides = [1, 1]} : vector<8x512xf32> to vector<8x256xf32>
    %115 = vector.extract_strided_slice %8 {offsets = [0, 15], sizes = [8, 1], strides = [1, 1]} : vector<8x27xf32> to vector<8x1xf32>
    %116 = vector.broadcast %115 : vector<8x1xf32> to vector<8x256xf32>
    %117 = arith.mulf %114, %116 : vector<8x256xf32>
    %118 = arith.addf %113, %117 : vector<8x256xf32>
    %119 = vector.broadcast %35 : vector<1x256xf32> to vector<8x256xf32>
    %120 = arith.mulf %118, %119 : vector<8x256xf32>
    %121 = arith.addf %102, %120 : vector<8x256xf32>
    %cst_15 = arith.constant 0.000000e+00 : f32
    %122 = vector.broadcast %cst_15 : f32 to vector<8x256xf32>
    %123 = vector.extract_strided_slice %45 {offsets = [0, 96], sizes = [8, 256], strides = [1, 1]} : vector<8x512xf32> to vector<8x256xf32>
    %124 = vector.extract_strided_slice %8 {offsets = [0, 10], sizes = [8, 1], strides = [1, 1]} : vector<8x27xf32> to vector<8x1xf32>
    %125 = vector.broadcast %124 : vector<8x1xf32> to vector<8x256xf32>
    %126 = arith.mulf %123, %125 : vector<8x256xf32>
    %127 = arith.addf %122, %126 : vector<8x256xf32>
    %128 = vector.extract_strided_slice %45 {offsets = [0, 128], sizes = [8, 256], strides = [1, 1]} : vector<8x512xf32> to vector<8x256xf32>
    %129 = vector.extract_strided_slice %8 {offsets = [0, 13], sizes = [8, 1], strides = [1, 1]} : vector<8x27xf32> to vector<8x1xf32>
    %130 = vector.broadcast %129 : vector<8x1xf32> to vector<8x256xf32>
    %131 = arith.mulf %128, %130 : vector<8x256xf32>
    %132 = arith.addf %127, %131 : vector<8x256xf32>
    %133 = vector.extract_strided_slice %45 {offsets = [0, 160], sizes = [8, 256], strides = [1, 1]} : vector<8x512xf32> to vector<8x256xf32>
    %134 = vector.extract_strided_slice %8 {offsets = [0, 16], sizes = [8, 1], strides = [1, 1]} : vector<8x27xf32> to vector<8x1xf32>
    %135 = vector.broadcast %134 : vector<8x1xf32> to vector<8x256xf32>
    %136 = arith.mulf %133, %135 : vector<8x256xf32>
    %137 = arith.addf %132, %136 : vector<8x256xf32>
    %138 = arith.addf %121, %137 : vector<8x256xf32>
    %cst_16 = arith.constant 0.000000e+00 : f32
    %139 = vector.broadcast %cst_16 : f32 to vector<8x256xf32>
    %140 = vector.extract_strided_slice %45 {offsets = [0, 98], sizes = [8, 256], strides = [1, 1]} : vector<8x512xf32> to vector<8x256xf32>
    %141 = vector.extract_strided_slice %8 {offsets = [0, 11], sizes = [8, 1], strides = [1, 1]} : vector<8x27xf32> to vector<8x1xf32>
    %142 = vector.broadcast %141 : vector<8x1xf32> to vector<8x256xf32>
    %143 = arith.mulf %140, %142 : vector<8x256xf32>
    %144 = arith.addf %139, %143 : vector<8x256xf32>
    %145 = vector.extract_strided_slice %45 {offsets = [0, 130], sizes = [8, 256], strides = [1, 1]} : vector<8x512xf32> to vector<8x256xf32>
    %146 = vector.extract_strided_slice %8 {offsets = [0, 14], sizes = [8, 1], strides = [1, 1]} : vector<8x27xf32> to vector<8x1xf32>
    %147 = vector.broadcast %146 : vector<8x1xf32> to vector<8x256xf32>
    %148 = arith.mulf %145, %147 : vector<8x256xf32>
    %149 = arith.addf %144, %148 : vector<8x256xf32>
    %150 = vector.extract_strided_slice %45 {offsets = [0, 162], sizes = [8, 256], strides = [1, 1]} : vector<8x512xf32> to vector<8x256xf32>
    %151 = vector.extract_strided_slice %8 {offsets = [0, 17], sizes = [8, 1], strides = [1, 1]} : vector<8x27xf32> to vector<8x1xf32>
    %152 = vector.broadcast %151 : vector<8x1xf32> to vector<8x256xf32>
    %153 = arith.mulf %150, %152 : vector<8x256xf32>
    %154 = arith.addf %149, %153 : vector<8x256xf32>
    %155 = vector.broadcast %31 : vector<1x256xf32> to vector<8x256xf32>
    %156 = arith.mulf %154, %155 : vector<8x256xf32>
    %157 = arith.addf %138, %156 : vector<8x256xf32>
    %cst_17 = arith.constant 0.000000e+00 : f32
    %158 = vector.broadcast %cst_17 : f32 to vector<8x256xf32>
    %cst_18 = arith.constant 0.000000e+00 : f32
    %159 = vector.broadcast %cst_18 : f32 to vector<8x256xf32>
    %160 = vector.extract_strided_slice %45 {offsets = [0, 77], sizes = [8, 256], strides = [1, 1]} : vector<8x512xf32> to vector<8x256xf32>
    %161 = vector.extract_strided_slice %8 {offsets = [0, 18], sizes = [8, 1], strides = [1, 1]} : vector<8x27xf32> to vector<8x1xf32>
    %162 = vector.broadcast %161 : vector<8x1xf32> to vector<8x256xf32>
    %163 = arith.mulf %160, %162 : vector<8x256xf32>
    %164 = arith.addf %159, %163 : vector<8x256xf32>
    %165 = vector.extract_strided_slice %45 {offsets = [0, 125], sizes = [8, 256], strides = [1, 1]} : vector<8x512xf32> to vector<8x256xf32>
    %166 = vector.extract_strided_slice %8 {offsets = [0, 21], sizes = [8, 1], strides = [1, 1]} : vector<8x27xf32> to vector<8x1xf32>
    %167 = vector.broadcast %166 : vector<8x1xf32> to vector<8x256xf32>
    %168 = arith.mulf %165, %167 : vector<8x256xf32>
    %169 = arith.addf %164, %168 : vector<8x256xf32>
    %170 = vector.extract_strided_slice %45 {offsets = [0, 173], sizes = [8, 256], strides = [1, 1]} : vector<8x512xf32> to vector<8x256xf32>
    %171 = vector.extract_strided_slice %8 {offsets = [0, 24], sizes = [8, 1], strides = [1, 1]} : vector<8x27xf32> to vector<8x1xf32>
    %172 = vector.broadcast %171 : vector<8x1xf32> to vector<8x256xf32>
    %173 = arith.mulf %170, %172 : vector<8x256xf32>
    %174 = arith.addf %169, %173 : vector<8x256xf32>
    %175 = vector.broadcast %43 : vector<1x256xf32> to vector<8x256xf32>
    %176 = arith.mulf %174, %175 : vector<8x256xf32>
    %177 = arith.addf %158, %176 : vector<8x256xf32>
    %cst_19 = arith.constant 0.000000e+00 : f32
    %178 = vector.broadcast %cst_19 : f32 to vector<8x256xf32>
    %179 = vector.extract_strided_slice %45 {offsets = [0, 80], sizes = [8, 256], strides = [1, 1]} : vector<8x512xf32> to vector<8x256xf32>
    %180 = vector.extract_strided_slice %8 {offsets = [0, 19], sizes = [8, 1], strides = [1, 1]} : vector<8x27xf32> to vector<8x1xf32>
    %181 = vector.broadcast %180 : vector<8x1xf32> to vector<8x256xf32>
    %182 = arith.mulf %179, %181 : vector<8x256xf32>
    %183 = arith.addf %178, %182 : vector<8x256xf32>
    %184 = vector.extract_strided_slice %45 {offsets = [0, 128], sizes = [8, 256], strides = [1, 1]} : vector<8x512xf32> to vector<8x256xf32>
    %185 = vector.extract_strided_slice %8 {offsets = [0, 22], sizes = [8, 1], strides = [1, 1]} : vector<8x27xf32> to vector<8x1xf32>
    %186 = vector.broadcast %185 : vector<8x1xf32> to vector<8x256xf32>
    %187 = arith.mulf %184, %186 : vector<8x256xf32>
    %188 = arith.addf %183, %187 : vector<8x256xf32>
    %189 = vector.extract_strided_slice %45 {offsets = [0, 176], sizes = [8, 256], strides = [1, 1]} : vector<8x512xf32> to vector<8x256xf32>
    %190 = vector.extract_strided_slice %8 {offsets = [0, 25], sizes = [8, 1], strides = [1, 1]} : vector<8x27xf32> to vector<8x1xf32>
    %191 = vector.broadcast %190 : vector<8x1xf32> to vector<8x256xf32>
    %192 = arith.mulf %189, %191 : vector<8x256xf32>
    %193 = arith.addf %188, %192 : vector<8x256xf32>
    %194 = arith.addf %177, %193 : vector<8x256xf32>
    %cst_20 = arith.constant 0.000000e+00 : f32
    %195 = vector.broadcast %cst_20 : f32 to vector<8x256xf32>
    %196 = vector.extract_strided_slice %45 {offsets = [0, 83], sizes = [8, 256], strides = [1, 1]} : vector<8x512xf32> to vector<8x256xf32>
    %197 = vector.extract_strided_slice %8 {offsets = [0, 20], sizes = [8, 1], strides = [1, 1]} : vector<8x27xf32> to vector<8x1xf32>
    %198 = vector.broadcast %197 : vector<8x1xf32> to vector<8x256xf32>
    %199 = arith.mulf %196, %198 : vector<8x256xf32>
    %200 = arith.addf %195, %199 : vector<8x256xf32>
    %201 = vector.extract_strided_slice %45 {offsets = [0, 131], sizes = [8, 256], strides = [1, 1]} : vector<8x512xf32> to vector<8x256xf32>
    %202 = vector.extract_strided_slice %8 {offsets = [0, 23], sizes = [8, 1], strides = [1, 1]} : vector<8x27xf32> to vector<8x1xf32>
    %203 = vector.broadcast %202 : vector<8x1xf32> to vector<8x256xf32>
    %204 = arith.mulf %201, %203 : vector<8x256xf32>
    %205 = arith.addf %200, %204 : vector<8x256xf32>
    %206 = vector.extract_strided_slice %45 {offsets = [0, 179], sizes = [8, 256], strides = [1, 1]} : vector<8x512xf32> to vector<8x256xf32>
    %207 = vector.extract_strided_slice %8 {offsets = [0, 26], sizes = [8, 1], strides = [1, 1]} : vector<8x27xf32> to vector<8x1xf32>
    %208 = vector.broadcast %207 : vector<8x1xf32> to vector<8x256xf32>
    %209 = arith.mulf %206, %208 : vector<8x256xf32>
    %210 = arith.addf %205, %209 : vector<8x256xf32>
    %211 = vector.broadcast %39 : vector<1x256xf32> to vector<8x256xf32>
    %212 = arith.mulf %210, %211 : vector<8x256xf32>
    %213 = arith.addf %194, %212 : vector<8x256xf32>
    %214 = tpu.concatenate %101, %157, %213, %1 in 0 : vector<8x256xf32>, vector<8x256xf32>, vector<8x256xf32>, vector<8x256xf32> -> vector<32x256xf32>
    %cst_21 = arith.constant dense<0.000000e+00> : vector<64x256xf32>
    %215 = tpu.matmul %9, %214, %cst_21 {dimension_numbers = #tpu.dot_dimension_numbers<[1], [0], [0], [1], [0, 0, 1, 1], [], []>} : vector<64x32xf32>, vector<32x256xf32>, vector<64x256xf32> -> vector<64x256xf32>
    %216 = vector.broadcast %10 : vector<64x1xf32> to vector<64x256xf32>
    %217 = arith.addf %215, %216 : vector<64x256xf32>
    %218 = vector.extract_strided_slice %217 {offsets = [0, 0], sizes = [48, 256], strides = [1, 1]} : vector<64x256xf32> to vector<48x256xf32>
    %219 = arith.negf %218 : vector<48x256xf32>
    %220 = math.exp %219 : vector<48x256xf32>
    %cst_22 = arith.constant 1.000000e+00 : f32
    %221 = vector.broadcast %cst_22 : f32 to vector<48x256xf32>
    %222 = arith.addf %221, %220 : vector<48x256xf32>
    %223 = arith.divf %221, %222 : vector<48x256xf32>
    %224 = arith.mulf %218, %223 : vector<48x256xf32>
    %225 = vector.extract_strided_slice %217 {offsets = [48, 0], sizes = [16, 256], strides = [1, 1]} : vector<64x256xf32> to vector<16x256xf32>
    %cst_23 = arith.constant dense<0.000000e+00> : vector<32x256xf32>
    %226 = tpu.matmul %11, %224, %cst_23 {dimension_numbers = #tpu.dot_dimension_numbers<[1], [0], [0], [1], [0, 0, 1, 1], [], []>} : vector<32x48xf32>, vector<48x256xf32>, vector<32x256xf32> -> vector<32x256xf32>
    %227 = vector.broadcast %12 : vector<32x1xf32> to vector<32x256xf32>
    %228 = arith.addf %226, %227 : vector<32x256xf32>
    %cst_24 = arith.constant 5.000000e-01 : f32
    %229 = vector.broadcast %cst_24 : f32 to vector<32x256xf32>
    %230 = arith.mulf %229, %228 : vector<32x256xf32>
    %cst_25 = arith.constant 0.707106769 : f32
    %231 = vector.broadcast %cst_25 : f32 to vector<32x256xf32>
    %232 = arith.mulf %228, %231 : vector<32x256xf32>
    %cst_26 = arith.constant 0.000000e+00 : f32
    %233 = vector.broadcast %cst_26 : f32 to vector<32x256xf32>
    %234 = arith.cmpf oge, %232, %233 : vector<32x256xf32>
    %cst_27 = arith.constant 1.000000e+00 : f32
    %cst_28 = arith.constant -1.000000e+00 : f32
    %235 = vector.broadcast %cst_27 : f32 to vector<32x256xf32>
    %236 = vector.broadcast %cst_28 : f32 to vector<32x256xf32>
    %237 = arith.select %234, %235, %236 : vector<32x256xi1>, vector<32x256xf32>
    %238 = math.absf %232 : vector<32x256xf32>
    %cst_29 = arith.constant 0.327591091 : f32
    %239 = vector.broadcast %cst_29 : f32 to vector<32x256xf32>
    %240 = arith.mulf %239, %238 : vector<32x256xf32>
    %cst_30 = arith.constant 1.000000e+00 : f32
    %241 = vector.broadcast %cst_30 : f32 to vector<32x256xf32>
    %242 = arith.addf %241, %240 : vector<32x256xf32>
    %cst_31 = arith.constant 1.000000e+00 : f32
    %243 = vector.broadcast %cst_31 : f32 to vector<32x256xf32>
    %244 = arith.divf %243, %242 : vector<32x256xf32>
    %cst_32 = arith.constant 1.06140542 : f32
    %245 = vector.broadcast %cst_32 : f32 to vector<32x256xf32>
    %246 = arith.mulf %245, %244 : vector<32x256xf32>
    %cst_33 = arith.constant -1.45315206 : f32
    %247 = vector.broadcast %cst_33 : f32 to vector<32x256xf32>
    %248 = arith.addf %246, %247 : vector<32x256xf32>
    %249 = arith.mulf %248, %244 : vector<32x256xf32>
    %cst_34 = arith.constant 1.42141378 : f32
    %250 = vector.broadcast %cst_34 : f32 to vector<32x256xf32>
    %251 = arith.addf %249, %250 : vector<32x256xf32>
    %252 = arith.mulf %251, %244 : vector<32x256xf32>
    %cst_35 = arith.constant -0.284496725 : f32
    %253 = vector.broadcast %cst_35 : f32 to vector<32x256xf32>
    %254 = arith.addf %252, %253 : vector<32x256xf32>
    %255 = arith.mulf %254, %244 : vector<32x256xf32>
    %cst_36 = arith.constant 0.254829586 : f32
    %256 = vector.broadcast %cst_36 : f32 to vector<32x256xf32>
    %257 = arith.addf %255, %256 : vector<32x256xf32>
    %258 = arith.mulf %257, %244 : vector<32x256xf32>
    %cst_37 = arith.constant 0.000000e+00 : f32
    %259 = vector.broadcast %cst_37 : f32 to vector<32x256xf32>
    %260 = arith.subf %259, %238 : vector<32x256xf32>
    %261 = arith.mulf %260, %238 : vector<32x256xf32>
    %262 = math.exp %261 : vector<32x256xf32>
    %263 = arith.mulf %258, %262 : vector<32x256xf32>
    %cst_38 = arith.constant 1.000000e+00 : f32
    %264 = vector.broadcast %cst_38 : f32 to vector<32x256xf32>
    %265 = arith.subf %264, %263 : vector<32x256xf32>
    %266 = arith.mulf %237, %265 : vector<32x256xf32>
    %cst_39 = arith.constant 1.000000e+00 : f32
    %267 = vector.broadcast %cst_39 : f32 to vector<32x256xf32>
    %268 = arith.addf %267, %266 : vector<32x256xf32>
    %269 = arith.mulf %230, %268 : vector<32x256xf32>
    %cst_40 = arith.constant dense<0.000000e+00> : vector<16x256xf32>
    %270 = tpu.matmul %13, %269, %cst_40 {dimension_numbers = #tpu.dot_dimension_numbers<[1], [0], [0], [1], [0, 0, 1, 1], [], []>} : vector<16x32xf32>, vector<32x256xf32>, vector<16x256xf32> -> vector<16x256xf32>
    %271 = vector.broadcast %14 : vector<16x1xf32> to vector<16x256xf32>
    %272 = arith.addf %270, %271 : vector<16x256xf32>
    %cst_41 = arith.constant dense<0.000000e+00> : vector<16xf32>
    %273 = vector.multi_reduction <add>, %272, %cst_41 [1] : vector<16x256xf32> to vector<16xf32>
    %274 = vector.shape_cast %273 : vector<16xf32> to vector<16x1xf32>
    %cst_42 = arith.constant 3.906250e-03 : f32
    %275 = vector.broadcast %cst_42 : f32 to vector<16x1xf32>
    %276 = arith.mulf %274, %275 : vector<16x1xf32>
    %cst_43 = arith.constant 0.000000e+00 : f32
    %277 = vector.broadcast %cst_43 : f32 to vector<1x1xf32>
    %278 = tpu.concatenate %277, %276, %277 in 0 : vector<1x1xf32>, vector<16x1xf32>, vector<1x1xf32> -> vector<18x1xf32>
    %cst_44 = arith.constant 0.000000e+00 : f32
    %279 = vector.broadcast %cst_44 : f32 to vector<16x1xf32>
    %280 = vector.extract_strided_slice %16 {offsets = [0, 0], sizes = [1, 1], strides = [1, 1]} : vector<1x3xf32> to vector<1x1xf32>
    %281 = vector.extract_strided_slice %278 {offsets = [0, 0], sizes = [16, 1], strides = [1, 1]} : vector<18x1xf32> to vector<16x1xf32>
    %282 = vector.broadcast %280 : vector<1x1xf32> to vector<16x1xf32>
    %283 = arith.mulf %282, %281 : vector<16x1xf32>
    %284 = arith.addf %279, %283 : vector<16x1xf32>
    %285 = vector.extract_strided_slice %16 {offsets = [0, 1], sizes = [1, 1], strides = [1, 1]} : vector<1x3xf32> to vector<1x1xf32>
    %286 = vector.extract_strided_slice %278 {offsets = [1, 0], sizes = [16, 1], strides = [1, 1]} : vector<18x1xf32> to vector<16x1xf32>
    %287 = vector.broadcast %285 : vector<1x1xf32> to vector<16x1xf32>
    %288 = arith.mulf %287, %286 : vector<16x1xf32>
    %289 = arith.addf %284, %288 : vector<16x1xf32>
    %290 = vector.extract_strided_slice %16 {offsets = [0, 2], sizes = [1, 1], strides = [1, 1]} : vector<1x3xf32> to vector<1x1xf32>
    %291 = vector.extract_strided_slice %278 {offsets = [2, 0], sizes = [16, 1], strides = [1, 1]} : vector<18x1xf32> to vector<16x1xf32>
    %292 = vector.broadcast %290 : vector<1x1xf32> to vector<16x1xf32>
    %293 = arith.mulf %292, %291 : vector<16x1xf32>
    %294 = arith.addf %289, %293 : vector<16x1xf32>
    %295 = arith.negf %294 : vector<16x1xf32>
    %296 = math.exp %295 : vector<16x1xf32>
    %cst_45 = arith.constant 1.000000e+00 : f32
    %297 = vector.broadcast %cst_45 : f32 to vector<16x1xf32>
    %298 = arith.addf %297, %296 : vector<16x1xf32>
    %299 = arith.divf %297, %298 : vector<16x1xf32>
    %cst_46 = arith.constant 0.000000e+00 : f32
    %300 = vector.broadcast %cst_46 : f32 to vector<16x128xf32>
    %301 = tpu.concatenate %300, %272, %300 in 1 : vector<16x128xf32>, vector<16x256xf32>, vector<16x128xf32> -> vector<16x512xf32>
    %cst_47 = arith.constant 0.000000e+00 : f32
    %302 = vector.broadcast %cst_47 : f32 to vector<16x256xf32>
    %cst_48 = arith.constant 0.000000e+00 : f32
    %303 = vector.broadcast %cst_48 : f32 to vector<16x256xf32>
    %304 = vector.extract_strided_slice %301 {offsets = [0, 77], sizes = [16, 256], strides = [1, 1]} : vector<16x512xf32> to vector<16x256xf32>
    %305 = vector.extract_strided_slice %15 {offsets = [0, 0], sizes = [16, 1], strides = [1, 1]} : vector<16x49xf32> to vector<16x1xf32>
    %306 = vector.broadcast %305 : vector<16x1xf32> to vector<16x256xf32>
    %307 = arith.mulf %304, %306 : vector<16x256xf32>
    %308 = arith.addf %303, %307 : vector<16x256xf32>
    %309 = vector.extract_strided_slice %301 {offsets = [0, 93], sizes = [16, 256], strides = [1, 1]} : vector<16x512xf32> to vector<16x256xf32>
    %310 = vector.extract_strided_slice %15 {offsets = [0, 7], sizes = [16, 1], strides = [1, 1]} : vector<16x49xf32> to vector<16x1xf32>
    %311 = vector.broadcast %310 : vector<16x1xf32> to vector<16x256xf32>
    %312 = arith.mulf %309, %311 : vector<16x256xf32>
    %313 = arith.addf %308, %312 : vector<16x256xf32>
    %314 = vector.extract_strided_slice %301 {offsets = [0, 109], sizes = [16, 256], strides = [1, 1]} : vector<16x512xf32> to vector<16x256xf32>
    %315 = vector.extract_strided_slice %15 {offsets = [0, 14], sizes = [16, 1], strides = [1, 1]} : vector<16x49xf32> to vector<16x1xf32>
    %316 = vector.broadcast %315 : vector<16x1xf32> to vector<16x256xf32>
    %317 = arith.mulf %314, %316 : vector<16x256xf32>
    %318 = arith.addf %313, %317 : vector<16x256xf32>
    %319 = vector.extract_strided_slice %301 {offsets = [0, 125], sizes = [16, 256], strides = [1, 1]} : vector<16x512xf32> to vector<16x256xf32>
    %320 = vector.extract_strided_slice %15 {offsets = [0, 21], sizes = [16, 1], strides = [1, 1]} : vector<16x49xf32> to vector<16x1xf32>
    %321 = vector.broadcast %320 : vector<16x1xf32> to vector<16x256xf32>
    %322 = arith.mulf %319, %321 : vector<16x256xf32>
    %323 = arith.addf %318, %322 : vector<16x256xf32>
    %324 = vector.extract_strided_slice %301 {offsets = [0, 141], sizes = [16, 256], strides = [1, 1]} : vector<16x512xf32> to vector<16x256xf32>
    %325 = vector.extract_strided_slice %15 {offsets = [0, 28], sizes = [16, 1], strides = [1, 1]} : vector<16x49xf32> to vector<16x1xf32>
    %326 = vector.broadcast %325 : vector<16x1xf32> to vector<16x256xf32>
    %327 = arith.mulf %324, %326 : vector<16x256xf32>
    %328 = arith.addf %323, %327 : vector<16x256xf32>
    %329 = vector.extract_strided_slice %301 {offsets = [0, 157], sizes = [16, 256], strides = [1, 1]} : vector<16x512xf32> to vector<16x256xf32>
    %330 = vector.extract_strided_slice %15 {offsets = [0, 35], sizes = [16, 1], strides = [1, 1]} : vector<16x49xf32> to vector<16x1xf32>
    %331 = vector.broadcast %330 : vector<16x1xf32> to vector<16x256xf32>
    %332 = arith.mulf %329, %331 : vector<16x256xf32>
    %333 = arith.addf %328, %332 : vector<16x256xf32>
    %334 = vector.extract_strided_slice %301 {offsets = [0, 173], sizes = [16, 256], strides = [1, 1]} : vector<16x512xf32> to vector<16x256xf32>
    %335 = vector.extract_strided_slice %15 {offsets = [0, 42], sizes = [16, 1], strides = [1, 1]} : vector<16x49xf32> to vector<16x1xf32>
    %336 = vector.broadcast %335 : vector<16x1xf32> to vector<16x256xf32>
    %337 = arith.mulf %334, %336 : vector<16x256xf32>
    %338 = arith.addf %333, %337 : vector<16x256xf32>
    %339 = vector.broadcast %43 : vector<1x256xf32> to vector<16x256xf32>
    %340 = arith.mulf %338, %339 : vector<16x256xf32>
    %341 = arith.addf %302, %340 : vector<16x256xf32>
    %cst_49 = arith.constant 0.000000e+00 : f32
    %342 = vector.broadcast %cst_49 : f32 to vector<16x256xf32>
    %343 = vector.extract_strided_slice %301 {offsets = [0, 78], sizes = [16, 256], strides = [1, 1]} : vector<16x512xf32> to vector<16x256xf32>
    %344 = vector.extract_strided_slice %15 {offsets = [0, 1], sizes = [16, 1], strides = [1, 1]} : vector<16x49xf32> to vector<16x1xf32>
    %345 = vector.broadcast %344 : vector<16x1xf32> to vector<16x256xf32>
    %346 = arith.mulf %343, %345 : vector<16x256xf32>
    %347 = arith.addf %342, %346 : vector<16x256xf32>
    %348 = vector.extract_strided_slice %301 {offsets = [0, 94], sizes = [16, 256], strides = [1, 1]} : vector<16x512xf32> to vector<16x256xf32>
    %349 = vector.extract_strided_slice %15 {offsets = [0, 8], sizes = [16, 1], strides = [1, 1]} : vector<16x49xf32> to vector<16x1xf32>
    %350 = vector.broadcast %349 : vector<16x1xf32> to vector<16x256xf32>
    %351 = arith.mulf %348, %350 : vector<16x256xf32>
    %352 = arith.addf %347, %351 : vector<16x256xf32>
    %353 = vector.extract_strided_slice %301 {offsets = [0, 110], sizes = [16, 256], strides = [1, 1]} : vector<16x512xf32> to vector<16x256xf32>
    %354 = vector.extract_strided_slice %15 {offsets = [0, 15], sizes = [16, 1], strides = [1, 1]} : vector<16x49xf32> to vector<16x1xf32>
    %355 = vector.broadcast %354 : vector<16x1xf32> to vector<16x256xf32>
    %356 = arith.mulf %353, %355 : vector<16x256xf32>
    %357 = arith.addf %352, %356 : vector<16x256xf32>
    %358 = vector.extract_strided_slice %301 {offsets = [0, 126], sizes = [16, 256], strides = [1, 1]} : vector<16x512xf32> to vector<16x256xf32>
    %359 = vector.extract_strided_slice %15 {offsets = [0, 22], sizes = [16, 1], strides = [1, 1]} : vector<16x49xf32> to vector<16x1xf32>
    %360 = vector.broadcast %359 : vector<16x1xf32> to vector<16x256xf32>
    %361 = arith.mulf %358, %360 : vector<16x256xf32>
    %362 = arith.addf %357, %361 : vector<16x256xf32>
    %363 = vector.extract_strided_slice %301 {offsets = [0, 142], sizes = [16, 256], strides = [1, 1]} : vector<16x512xf32> to vector<16x256xf32>
    %364 = vector.extract_strided_slice %15 {offsets = [0, 29], sizes = [16, 1], strides = [1, 1]} : vector<16x49xf32> to vector<16x1xf32>
    %365 = vector.broadcast %364 : vector<16x1xf32> to vector<16x256xf32>
    %366 = arith.mulf %363, %365 : vector<16x256xf32>
    %367 = arith.addf %362, %366 : vector<16x256xf32>
    %368 = vector.extract_strided_slice %301 {offsets = [0, 158], sizes = [16, 256], strides = [1, 1]} : vector<16x512xf32> to vector<16x256xf32>
    %369 = vector.extract_strided_slice %15 {offsets = [0, 36], sizes = [16, 1], strides = [1, 1]} : vector<16x49xf32> to vector<16x1xf32>
    %370 = vector.broadcast %369 : vector<16x1xf32> to vector<16x256xf32>
    %371 = arith.mulf %368, %370 : vector<16x256xf32>
    %372 = arith.addf %367, %371 : vector<16x256xf32>
    %373 = vector.extract_strided_slice %301 {offsets = [0, 174], sizes = [16, 256], strides = [1, 1]} : vector<16x512xf32> to vector<16x256xf32>
    %374 = vector.extract_strided_slice %15 {offsets = [0, 43], sizes = [16, 1], strides = [1, 1]} : vector<16x49xf32> to vector<16x1xf32>
    %375 = vector.broadcast %374 : vector<16x1xf32> to vector<16x256xf32>
    %376 = arith.mulf %373, %375 : vector<16x256xf32>
    %377 = arith.addf %372, %376 : vector<16x256xf32>
    %378 = vector.broadcast %35 : vector<1x256xf32> to vector<16x256xf32>
    %379 = arith.mulf %377, %378 : vector<16x256xf32>
    %380 = arith.addf %341, %379 : vector<16x256xf32>
    %cst_50 = arith.constant 0.000000e+00 : f32
    %381 = vector.broadcast %cst_50 : f32 to vector<16x256xf32>
    %382 = vector.extract_strided_slice %301 {offsets = [0, 79], sizes = [16, 256], strides = [1, 1]} : vector<16x512xf32> to vector<16x256xf32>
    %383 = vector.extract_strided_slice %15 {offsets = [0, 2], sizes = [16, 1], strides = [1, 1]} : vector<16x49xf32> to vector<16x1xf32>
    %384 = vector.broadcast %383 : vector<16x1xf32> to vector<16x256xf32>
    %385 = arith.mulf %382, %384 : vector<16x256xf32>
    %386 = arith.addf %381, %385 : vector<16x256xf32>
    %387 = vector.extract_strided_slice %301 {offsets = [0, 95], sizes = [16, 256], strides = [1, 1]} : vector<16x512xf32> to vector<16x256xf32>
    %388 = vector.extract_strided_slice %15 {offsets = [0, 9], sizes = [16, 1], strides = [1, 1]} : vector<16x49xf32> to vector<16x1xf32>
    %389 = vector.broadcast %388 : vector<16x1xf32> to vector<16x256xf32>
    %390 = arith.mulf %387, %389 : vector<16x256xf32>
    %391 = arith.addf %386, %390 : vector<16x256xf32>
    %392 = vector.extract_strided_slice %301 {offsets = [0, 111], sizes = [16, 256], strides = [1, 1]} : vector<16x512xf32> to vector<16x256xf32>
    %393 = vector.extract_strided_slice %15 {offsets = [0, 16], sizes = [16, 1], strides = [1, 1]} : vector<16x49xf32> to vector<16x1xf32>
    %394 = vector.broadcast %393 : vector<16x1xf32> to vector<16x256xf32>
    %395 = arith.mulf %392, %394 : vector<16x256xf32>
    %396 = arith.addf %391, %395 : vector<16x256xf32>
    %397 = vector.extract_strided_slice %301 {offsets = [0, 127], sizes = [16, 256], strides = [1, 1]} : vector<16x512xf32> to vector<16x256xf32>
    %398 = vector.extract_strided_slice %15 {offsets = [0, 23], sizes = [16, 1], strides = [1, 1]} : vector<16x49xf32> to vector<16x1xf32>
    %399 = vector.broadcast %398 : vector<16x1xf32> to vector<16x256xf32>
    %400 = arith.mulf %397, %399 : vector<16x256xf32>
    %401 = arith.addf %396, %400 : vector<16x256xf32>
    %402 = vector.extract_strided_slice %301 {offsets = [0, 143], sizes = [16, 256], strides = [1, 1]} : vector<16x512xf32> to vector<16x256xf32>
    %403 = vector.extract_strided_slice %15 {offsets = [0, 30], sizes = [16, 1], strides = [1, 1]} : vector<16x49xf32> to vector<16x1xf32>
    %404 = vector.broadcast %403 : vector<16x1xf32> to vector<16x256xf32>
    %405 = arith.mulf %402, %404 : vector<16x256xf32>
    %406 = arith.addf %401, %405 : vector<16x256xf32>
    %407 = vector.extract_strided_slice %301 {offsets = [0, 159], sizes = [16, 256], strides = [1, 1]} : vector<16x512xf32> to vector<16x256xf32>
    %408 = vector.extract_strided_slice %15 {offsets = [0, 37], sizes = [16, 1], strides = [1, 1]} : vector<16x49xf32> to vector<16x1xf32>
    %409 = vector.broadcast %408 : vector<16x1xf32> to vector<16x256xf32>
    %410 = arith.mulf %407, %409 : vector<16x256xf32>
    %411 = arith.addf %406, %410 : vector<16x256xf32>
    %412 = vector.extract_strided_slice %301 {offsets = [0, 175], sizes = [16, 256], strides = [1, 1]} : vector<16x512xf32> to vector<16x256xf32>
    %413 = vector.extract_strided_slice %15 {offsets = [0, 44], sizes = [16, 1], strides = [1, 1]} : vector<16x49xf32> to vector<16x1xf32>
    %414 = vector.broadcast %413 : vector<16x1xf32> to vector<16x256xf32>
    %415 = arith.mulf %412, %414 : vector<16x256xf32>
    %416 = arith.addf %411, %415 : vector<16x256xf32>
    %417 = vector.broadcast %27 : vector<1x256xf32> to vector<16x256xf32>
    %418 = arith.mulf %416, %417 : vector<16x256xf32>
    %419 = arith.addf %380, %418 : vector<16x256xf32>
    %cst_51 = arith.constant 0.000000e+00 : f32
    %420 = vector.broadcast %cst_51 : f32 to vector<16x256xf32>
    %421 = vector.extract_strided_slice %301 {offsets = [0, 80], sizes = [16, 256], strides = [1, 1]} : vector<16x512xf32> to vector<16x256xf32>
    %422 = vector.extract_strided_slice %15 {offsets = [0, 3], sizes = [16, 1], strides = [1, 1]} : vector<16x49xf32> to vector<16x1xf32>
    %423 = vector.broadcast %422 : vector<16x1xf32> to vector<16x256xf32>
    %424 = arith.mulf %421, %423 : vector<16x256xf32>
    %425 = arith.addf %420, %424 : vector<16x256xf32>
    %426 = vector.extract_strided_slice %301 {offsets = [0, 96], sizes = [16, 256], strides = [1, 1]} : vector<16x512xf32> to vector<16x256xf32>
    %427 = vector.extract_strided_slice %15 {offsets = [0, 10], sizes = [16, 1], strides = [1, 1]} : vector<16x49xf32> to vector<16x1xf32>
    %428 = vector.broadcast %427 : vector<16x1xf32> to vector<16x256xf32>
    %429 = arith.mulf %426, %428 : vector<16x256xf32>
    %430 = arith.addf %425, %429 : vector<16x256xf32>
    %431 = vector.extract_strided_slice %301 {offsets = [0, 112], sizes = [16, 256], strides = [1, 1]} : vector<16x512xf32> to vector<16x256xf32>
    %432 = vector.extract_strided_slice %15 {offsets = [0, 17], sizes = [16, 1], strides = [1, 1]} : vector<16x49xf32> to vector<16x1xf32>
    %433 = vector.broadcast %432 : vector<16x1xf32> to vector<16x256xf32>
    %434 = arith.mulf %431, %433 : vector<16x256xf32>
    %435 = arith.addf %430, %434 : vector<16x256xf32>
    %436 = vector.extract_strided_slice %301 {offsets = [0, 128], sizes = [16, 256], strides = [1, 1]} : vector<16x512xf32> to vector<16x256xf32>
    %437 = vector.extract_strided_slice %15 {offsets = [0, 24], sizes = [16, 1], strides = [1, 1]} : vector<16x49xf32> to vector<16x1xf32>
    %438 = vector.broadcast %437 : vector<16x1xf32> to vector<16x256xf32>
    %439 = arith.mulf %436, %438 : vector<16x256xf32>
    %440 = arith.addf %435, %439 : vector<16x256xf32>
    %441 = vector.extract_strided_slice %301 {offsets = [0, 144], sizes = [16, 256], strides = [1, 1]} : vector<16x512xf32> to vector<16x256xf32>
    %442 = vector.extract_strided_slice %15 {offsets = [0, 31], sizes = [16, 1], strides = [1, 1]} : vector<16x49xf32> to vector<16x1xf32>
    %443 = vector.broadcast %442 : vector<16x1xf32> to vector<16x256xf32>
    %444 = arith.mulf %441, %443 : vector<16x256xf32>
    %445 = arith.addf %440, %444 : vector<16x256xf32>
    %446 = vector.extract_strided_slice %301 {offsets = [0, 160], sizes = [16, 256], strides = [1, 1]} : vector<16x512xf32> to vector<16x256xf32>
    %447 = vector.extract_strided_slice %15 {offsets = [0, 38], sizes = [16, 1], strides = [1, 1]} : vector<16x49xf32> to vector<16x1xf32>
    %448 = vector.broadcast %447 : vector<16x1xf32> to vector<16x256xf32>
    %449 = arith.mulf %446, %448 : vector<16x256xf32>
    %450 = arith.addf %445, %449 : vector<16x256xf32>
    %451 = vector.extract_strided_slice %301 {offsets = [0, 176], sizes = [16, 256], strides = [1, 1]} : vector<16x512xf32> to vector<16x256xf32>
    %452 = vector.extract_strided_slice %15 {offsets = [0, 45], sizes = [16, 1], strides = [1, 1]} : vector<16x49xf32> to vector<16x1xf32>
    %453 = vector.broadcast %452 : vector<16x1xf32> to vector<16x256xf32>
    %454 = arith.mulf %451, %453 : vector<16x256xf32>
    %455 = arith.addf %450, %454 : vector<16x256xf32>
    %456 = arith.addf %419, %455 : vector<16x256xf32>
    %cst_52 = arith.constant 0.000000e+00 : f32
    %457 = vector.broadcast %cst_52 : f32 to vector<16x256xf32>
    %458 = vector.extract_strided_slice %301 {offsets = [0, 81], sizes = [16, 256], strides = [1, 1]} : vector<16x512xf32> to vector<16x256xf32>
    %459 = vector.extract_strided_slice %15 {offsets = [0, 4], sizes = [16, 1], strides = [1, 1]} : vector<16x49xf32> to vector<16x1xf32>
    %460 = vector.broadcast %459 : vector<16x1xf32> to vector<16x256xf32>
    %461 = arith.mulf %458, %460 : vector<16x256xf32>
    %462 = arith.addf %457, %461 : vector<16x256xf32>
    %463 = vector.extract_strided_slice %301 {offsets = [0, 97], sizes = [16, 256], strides = [1, 1]} : vector<16x512xf32> to vector<16x256xf32>
    %464 = vector.extract_strided_slice %15 {offsets = [0, 11], sizes = [16, 1], strides = [1, 1]} : vector<16x49xf32> to vector<16x1xf32>
    %465 = vector.broadcast %464 : vector<16x1xf32> to vector<16x256xf32>
    %466 = arith.mulf %463, %465 : vector<16x256xf32>
    %467 = arith.addf %462, %466 : vector<16x256xf32>
    %468 = vector.extract_strided_slice %301 {offsets = [0, 113], sizes = [16, 256], strides = [1, 1]} : vector<16x512xf32> to vector<16x256xf32>
    %469 = vector.extract_strided_slice %15 {offsets = [0, 18], sizes = [16, 1], strides = [1, 1]} : vector<16x49xf32> to vector<16x1xf32>
    %470 = vector.broadcast %469 : vector<16x1xf32> to vector<16x256xf32>
    %471 = arith.mulf %468, %470 : vector<16x256xf32>
    %472 = arith.addf %467, %471 : vector<16x256xf32>
    %473 = vector.extract_strided_slice %301 {offsets = [0, 129], sizes = [16, 256], strides = [1, 1]} : vector<16x512xf32> to vector<16x256xf32>
    %474 = vector.extract_strided_slice %15 {offsets = [0, 25], sizes = [16, 1], strides = [1, 1]} : vector<16x49xf32> to vector<16x1xf32>
    %475 = vector.broadcast %474 : vector<16x1xf32> to vector<16x256xf32>
    %476 = arith.mulf %473, %475 : vector<16x256xf32>
    %477 = arith.addf %472, %476 : vector<16x256xf32>
    %478 = vector.extract_strided_slice %301 {offsets = [0, 145], sizes = [16, 256], strides = [1, 1]} : vector<16x512xf32> to vector<16x256xf32>
    %479 = vector.extract_strided_slice %15 {offsets = [0, 32], sizes = [16, 1], strides = [1, 1]} : vector<16x49xf32> to vector<16x1xf32>
    %480 = vector.broadcast %479 : vector<16x1xf32> to vector<16x256xf32>
    %481 = arith.mulf %478, %480 : vector<16x256xf32>
    %482 = arith.addf %477, %481 : vector<16x256xf32>
    %483 = vector.extract_strided_slice %301 {offsets = [0, 161], sizes = [16, 256], strides = [1, 1]} : vector<16x512xf32> to vector<16x256xf32>
    %484 = vector.extract_strided_slice %15 {offsets = [0, 39], sizes = [16, 1], strides = [1, 1]} : vector<16x49xf32> to vector<16x1xf32>
    %485 = vector.broadcast %484 : vector<16x1xf32> to vector<16x256xf32>
    %486 = arith.mulf %483, %485 : vector<16x256xf32>
    %487 = arith.addf %482, %486 : vector<16x256xf32>
    %488 = vector.extract_strided_slice %301 {offsets = [0, 177], sizes = [16, 256], strides = [1, 1]} : vector<16x512xf32> to vector<16x256xf32>
    %489 = vector.extract_strided_slice %15 {offsets = [0, 46], sizes = [16, 1], strides = [1, 1]} : vector<16x49xf32> to vector<16x1xf32>
    %490 = vector.broadcast %489 : vector<16x1xf32> to vector<16x256xf32>
    %491 = arith.mulf %488, %490 : vector<16x256xf32>
    %492 = arith.addf %487, %491 : vector<16x256xf32>
    %493 = vector.broadcast %23 : vector<1x256xf32> to vector<16x256xf32>
    %494 = arith.mulf %492, %493 : vector<16x256xf32>
    %495 = arith.addf %456, %494 : vector<16x256xf32>
    %cst_53 = arith.constant 0.000000e+00 : f32
    %496 = vector.broadcast %cst_53 : f32 to vector<16x256xf32>
    %497 = vector.extract_strided_slice %301 {offsets = [0, 82], sizes = [16, 256], strides = [1, 1]} : vector<16x512xf32> to vector<16x256xf32>
    %498 = vector.extract_strided_slice %15 {offsets = [0, 5], sizes = [16, 1], strides = [1, 1]} : vector<16x49xf32> to vector<16x1xf32>
    %499 = vector.broadcast %498 : vector<16x1xf32> to vector<16x256xf32>
    %500 = arith.mulf %497, %499 : vector<16x256xf32>
    %501 = arith.addf %496, %500 : vector<16x256xf32>
    %502 = vector.extract_strided_slice %301 {offsets = [0, 98], sizes = [16, 256], strides = [1, 1]} : vector<16x512xf32> to vector<16x256xf32>
    %503 = vector.extract_strided_slice %15 {offsets = [0, 12], sizes = [16, 1], strides = [1, 1]} : vector<16x49xf32> to vector<16x1xf32>
    %504 = vector.broadcast %503 : vector<16x1xf32> to vector<16x256xf32>
    %505 = arith.mulf %502, %504 : vector<16x256xf32>
    %506 = arith.addf %501, %505 : vector<16x256xf32>
    %507 = vector.extract_strided_slice %301 {offsets = [0, 114], sizes = [16, 256], strides = [1, 1]} : vector<16x512xf32> to vector<16x256xf32>
    %508 = vector.extract_strided_slice %15 {offsets = [0, 19], sizes = [16, 1], strides = [1, 1]} : vector<16x49xf32> to vector<16x1xf32>
    %509 = vector.broadcast %508 : vector<16x1xf32> to vector<16x256xf32>
    %510 = arith.mulf %507, %509 : vector<16x256xf32>
    %511 = arith.addf %506, %510 : vector<16x256xf32>
    %512 = vector.extract_strided_slice %301 {offsets = [0, 130], sizes = [16, 256], strides = [1, 1]} : vector<16x512xf32> to vector<16x256xf32>
    %513 = vector.extract_strided_slice %15 {offsets = [0, 26], sizes = [16, 1], strides = [1, 1]} : vector<16x49xf32> to vector<16x1xf32>
    %514 = vector.broadcast %513 : vector<16x1xf32> to vector<16x256xf32>
    %515 = arith.mulf %512, %514 : vector<16x256xf32>
    %516 = arith.addf %511, %515 : vector<16x256xf32>
    %517 = vector.extract_strided_slice %301 {offsets = [0, 146], sizes = [16, 256], strides = [1, 1]} : vector<16x512xf32> to vector<16x256xf32>
    %518 = vector.extract_strided_slice %15 {offsets = [0, 33], sizes = [16, 1], strides = [1, 1]} : vector<16x49xf32> to vector<16x1xf32>
    %519 = vector.broadcast %518 : vector<16x1xf32> to vector<16x256xf32>
    %520 = arith.mulf %517, %519 : vector<16x256xf32>
    %521 = arith.addf %516, %520 : vector<16x256xf32>
    %522 = vector.extract_strided_slice %301 {offsets = [0, 162], sizes = [16, 256], strides = [1, 1]} : vector<16x512xf32> to vector<16x256xf32>
    %523 = vector.extract_strided_slice %15 {offsets = [0, 40], sizes = [16, 1], strides = [1, 1]} : vector<16x49xf32> to vector<16x1xf32>
    %524 = vector.broadcast %523 : vector<16x1xf32> to vector<16x256xf32>
    %525 = arith.mulf %522, %524 : vector<16x256xf32>
    %526 = arith.addf %521, %525 : vector<16x256xf32>
    %527 = vector.extract_strided_slice %301 {offsets = [0, 178], sizes = [16, 256], strides = [1, 1]} : vector<16x512xf32> to vector<16x256xf32>
    %528 = vector.extract_strided_slice %15 {offsets = [0, 47], sizes = [16, 1], strides = [1, 1]} : vector<16x49xf32> to vector<16x1xf32>
    %529 = vector.broadcast %528 : vector<16x1xf32> to vector<16x256xf32>
    %530 = arith.mulf %527, %529 : vector<16x256xf32>
    %531 = arith.addf %526, %530 : vector<16x256xf32>
    %532 = vector.broadcast %31 : vector<1x256xf32> to vector<16x256xf32>
    %533 = arith.mulf %531, %532 : vector<16x256xf32>
    %534 = arith.addf %495, %533 : vector<16x256xf32>
    %cst_54 = arith.constant 0.000000e+00 : f32
    %535 = vector.broadcast %cst_54 : f32 to vector<16x256xf32>
    %536 = vector.extract_strided_slice %301 {offsets = [0, 83], sizes = [16, 256], strides = [1, 1]} : vector<16x512xf32> to vector<16x256xf32>
    %537 = vector.extract_strided_slice %15 {offsets = [0, 6], sizes = [16, 1], strides = [1, 1]} : vector<16x49xf32> to vector<16x1xf32>
    %538 = vector.broadcast %537 : vector<16x1xf32> to vector<16x256xf32>
    %539 = arith.mulf %536, %538 : vector<16x256xf32>
    %540 = arith.addf %535, %539 : vector<16x256xf32>
    %541 = vector.extract_strided_slice %301 {offsets = [0, 99], sizes = [16, 256], strides = [1, 1]} : vector<16x512xf32> to vector<16x256xf32>
    %542 = vector.extract_strided_slice %15 {offsets = [0, 13], sizes = [16, 1], strides = [1, 1]} : vector<16x49xf32> to vector<16x1xf32>
    %543 = vector.broadcast %542 : vector<16x1xf32> to vector<16x256xf32>
    %544 = arith.mulf %541, %543 : vector<16x256xf32>
    %545 = arith.addf %540, %544 : vector<16x256xf32>
    %546 = vector.extract_strided_slice %301 {offsets = [0, 115], sizes = [16, 256], strides = [1, 1]} : vector<16x512xf32> to vector<16x256xf32>
    %547 = vector.extract_strided_slice %15 {offsets = [0, 20], sizes = [16, 1], strides = [1, 1]} : vector<16x49xf32> to vector<16x1xf32>
    %548 = vector.broadcast %547 : vector<16x1xf32> to vector<16x256xf32>
    %549 = arith.mulf %546, %548 : vector<16x256xf32>
    %550 = arith.addf %545, %549 : vector<16x256xf32>
    %551 = vector.extract_strided_slice %301 {offsets = [0, 131], sizes = [16, 256], strides = [1, 1]} : vector<16x512xf32> to vector<16x256xf32>
    %552 = vector.extract_strided_slice %15 {offsets = [0, 27], sizes = [16, 1], strides = [1, 1]} : vector<16x49xf32> to vector<16x1xf32>
    %553 = vector.broadcast %552 : vector<16x1xf32> to vector<16x256xf32>
    %554 = arith.mulf %551, %553 : vector<16x256xf32>
    %555 = arith.addf %550, %554 : vector<16x256xf32>
    %556 = vector.extract_strided_slice %301 {offsets = [0, 147], sizes = [16, 256], strides = [1, 1]} : vector<16x512xf32> to vector<16x256xf32>
    %557 = vector.extract_strided_slice %15 {offsets = [0, 34], sizes = [16, 1], strides = [1, 1]} : vector<16x49xf32> to vector<16x1xf32>
    %558 = vector.broadcast %557 : vector<16x1xf32> to vector<16x256xf32>
    %559 = arith.mulf %556, %558 : vector<16x256xf32>
    %560 = arith.addf %555, %559 : vector<16x256xf32>
    %561 = vector.extract_strided_slice %301 {offsets = [0, 163], sizes = [16, 256], strides = [1, 1]} : vector<16x512xf32> to vector<16x256xf32>
    %562 = vector.extract_strided_slice %15 {offsets = [0, 41], sizes = [16, 1], strides = [1, 1]} : vector<16x49xf32> to vector<16x1xf32>
    %563 = vector.broadcast %562 : vector<16x1xf32> to vector<16x256xf32>
    %564 = arith.mulf %561, %563 : vector<16x256xf32>
    %565 = arith.addf %560, %564 : vector<16x256xf32>
    %566 = vector.extract_strided_slice %301 {offsets = [0, 179], sizes = [16, 256], strides = [1, 1]} : vector<16x512xf32> to vector<16x256xf32>
    %567 = vector.extract_strided_slice %15 {offsets = [0, 48], sizes = [16, 1], strides = [1, 1]} : vector<16x49xf32> to vector<16x1xf32>
    %568 = vector.broadcast %567 : vector<16x1xf32> to vector<16x256xf32>
    %569 = arith.mulf %566, %568 : vector<16x256xf32>
    %570 = arith.addf %565, %569 : vector<16x256xf32>
    %571 = vector.broadcast %39 : vector<1x256xf32> to vector<16x256xf32>
    %572 = arith.mulf %570, %571 : vector<16x256xf32>
    %573 = arith.addf %534, %572 : vector<16x256xf32>
    %cst_55 = arith.constant dense<0.000000e+00> : vector<256xf32>
    %574 = vector.multi_reduction <add>, %573, %cst_55 [0] : vector<16x256xf32> to vector<256xf32>
    %575 = vector.shape_cast %574 : vector<256xf32> to vector<1x256xf32>
    %576 = arith.negf %575 : vector<1x256xf32>
    %577 = math.exp %576 : vector<1x256xf32>
    %cst_56 = arith.constant 1.000000e+00 : f32
    %578 = vector.broadcast %cst_56 : f32 to vector<1x256xf32>
    %579 = arith.addf %578, %577 : vector<1x256xf32>
    %580 = arith.divf %578, %579 : vector<1x256xf32>
    %581 = arith.mulf %272, %272 : vector<16x256xf32>
    %582 = vector.broadcast %299 : vector<16x1xf32> to vector<16x256xf32>
    %583 = arith.mulf %581, %582 : vector<16x256xf32>
    %584 = vector.broadcast %580 : vector<1x256xf32> to vector<16x256xf32>
    %585 = arith.mulf %583, %584 : vector<16x256xf32>
    %586 = arith.addf %225, %585 : vector<16x256xf32>
    %c0_57 = arith.constant 0 : index
    %c0_58 = arith.constant 0 : index
    %c0_59 = arith.constant 0 : index
    %587 = vector.load %arg3[%c0_57, %c0_58, %c0_59] : memref<1x16x256xf32, #tpu.memory_space<vmem>>, vector<1x16x256xf32>
    %588 = vector.shape_cast %587 : vector<1x16x256xf32> to vector<16x256xf32>
    %589 = vector.shape_cast %586 : vector<16x256xf32> to vector<1x16x256xf32>
    tpu.vector_store %arg3[%c0_57, %c0_58, %c0_59], %589 {strides = array<i32>} : memref<1x16x256xf32, #tpu.memory_space<vmem>>, vector<1x16x256xf32>,
    return
  }
  func.func @transform_0(%arg0: i32) -> (i32, i32, i32) {
    %c0_i32 = arith.constant 0 : i32
    %c0_i32_0 = arith.constant 0 : i32
    %c0_i32_1 = arith.constant 0 : i32
    return %arg0, %c0_i32, %c0_i32_0 : i32, i32, i32
  }
  func.func @transform_1(%arg0: i32) -> (i32, i32) {
    %c0_i32 = arith.constant 0 : i32
    %c0_i32_0 = arith.constant 0 : i32
    %c0_i32_1 = arith.constant 0 : i32
    return %c0_i32, %c0_i32_0 : i32, i32
  }
  func.func @transform_2(%arg0: i32) -> (i32, i32, i32) {
    %c0_i32 = arith.constant 0 : i32
    %c0_i32_0 = arith.constant 0 : i32
    %c0_i32_1 = arith.constant 0 : i32
    return %arg0, %c0_i32, %c0_i32_0 : i32, i32, i32
  }
}

</mosaic_0001>

<llo_original>
// kernel: squeeze.10
$region0: #{squeeze.10}
  %s0 = inlined_call_operand.vmem [shape: f32[8,3,3], index: 0, kind: input, shape index: {}]
  %s1 = inlined_call_operand.vmem [shape: f32[8,9], index: 1, kind: output, shape index: {}]
  $region1: #{squeeze.10} parent=0
    #allocation0 [shape = 'u8[12288]{0}', space=vmem, size = 0x3000, scoped, tag = 'scoped mem for input reshape']
    %s3 = sshllo.u32 0, 4
    %s4 = smul.addr 4, 2
    %s5 = scalar_lea.vmem %s0, %s4
    %v6 = vld [vmem:[%s5] sm:%s3]
    %s7 = scalar_lea.vmem [#allocation0], 16
    %8 = vst [vmem:[%s7] sm:%s3] %v6
    %s9 = scalar_lea.vmem %s0, 4
    %v10 = vld [vmem:[%s9] sm:%s3]
    %s11 = scalar_lea.vmem [#allocation0], 8
    %12 = vst [vmem:[%s11] sm:%s3] %v10
    %v13 = vld [vmem:[%s0] sm:%s3]
    %14 = vst [vmem:[#allocation0] sm:%s3] %v13
    %v15 = vld [vmem:[#allocation0] sm:$0x7]
    %vm16 = vcmask 64512
    %17 = vst.msk [vmem:[%s1] sm:$0x7] %vm16, %v15
    %s18 = scalar_lea.vmem [#allocation0], 8
    %v19 = vld [vmem:[%s18] sm:$0x7]
    %vm20 = vcmask 64512
    %s21 = scalar_lea.vmem %s1, 3
    %22 = vst.msk [vmem:[%s21] sm:$0x7] %vm20, %v19
    %s23 = scalar_lea.vmem [#allocation0], 16
    %v24 = vld [vmem:[%s23] sm:$0x7]
    %vm25 = vcmask 64512
    %s26 = scalar_lea.vmem %s1, 6
    %27 = vst.msk [vmem:[%s26] sm:$0x7] %vm25, %v24

// kernel: dwr_forward.1
$region0: #{dwr_forward.1}
  #allocation0 [shape = 'u32[]', space=smem, size = 0x4, offset = 0x4, fixed_abs, tag = 'smem constant byte address 0x4 - core index']
  #allocation1 [shape = 'u32[144,128]{1,0:T(1,128)}', space=vmem, size = 0x12000, scoped, tag = 'internal scratch']
  %s0 = inlined_call_operand.vmem [shape: f32[2,8,256], index: 0, kind: input, shape index: {}]
  %s1 = inlined_call_operand.vmem [shape: f32[144,128], index: 1, kind: input, shape index: {}]
  %s2 = inlined_call_operand.vmem [shape: f32[2,16,256], index: 2, kind: output, shape index: {}]
  %s3 = sld [smem:[#allocation0]]
  $region41: #{dwr_forward.1} parent=0
    _
  %s5 = ssub.s32 1, %s3
  %s6 = scalar_select 0, %s5, %s3
  loop: start=0, step=1, limit=4
  $region2: #{dwr_forward.1} parent=0 // loop_pre_header
    _
  $region3: #{dwr_forward.1} parent=0 // loop_header
    %s8 = sphi 0, %s12
    %p9 = scmp.ge.s32.totalorder %s8, 4
    %s18 = sphi 0, %s20
    %s21 = sphi 0, %s18
    %s22 = sphi 0, %s21
    %s38 = sphi 0, %s22
    %s42 = sphi 0, %s42
    %s44 = sphi 0, %s42
    %s45 = sphi 0, %s44
    %s59 = sphi 0, %s45
    %s65 = sphi 0, %s67
    %s68 = sphi 0, %s65
    %s69 = sphi 0, %s68
    %s85 = sphi 0, %s69
  $region4: #{dwr_forward.1} parent=0 // loop_header_branch
    %11 = sbr.rel (%p9) target = $region8
  $region5: #{dwr_forward.1} parent=0 // loop_body
    %s13 = ssub.s32 %s8, 1
    %s14 = ssub.s32 %s8, 2
    %s15 = sadd.s32 %s8, 1
    %s16 = ssub.s32 %s8, %s15
    %p17 = scmp.eq.s32.totalorder %s16, 0
    %s19 = sadd.s32 %s18, 1
    %s20 = scalar_select %p17, %s18, %s19
    %p23 = pneg %p17
    %p24 = scmp.eq.s32.totalorder %s8, 1
    %p25 = por %p23, %p24
    %p26 = scmp.ne.s32.totalorder %s18, %s21
    %p27 = scmp.eq.s32.totalorder %s8, 0
    %p28 = por %p26, %p27
    %p29 = scmp.ne.s32.totalorder %s18, %s21
    %p30 = scmp.eq.s32.totalorder %s13, 1
    %p31 = por %p29, %p30
    %p32 = scmp.ne.s32.totalorder %s21, %s22
    %p33 = scmp.eq.s32.totalorder %s13, 0
    %p34 = por %p32, %p33
    %p35 = scmp.ne.s32.totalorder %s21, %s22
    %p36 = scmp.eq.s32.totalorder %s14, 1
    %p37 = por %p35, %p36
    %p39 = scmp.ne.s32.totalorder %s22, %s38
    %p40 = scmp.eq.s32.totalorder %s14, 0
    %p41 = por %p39, %p40
    %s43 = sadd.s32 %s42, 1
    %p46 = scmp.eq.s32.totalorder %s8, 1
    %p47 = scmp.ne.s32.totalorder %s42, %s44
    %p48 = scmp.eq.s32.totalorder %s8, 0
    %p49 = por %p47, %p48
    %p50 = scmp.ne.s32.totalorder %s42, %s44
    %p51 = scmp.eq.s32.totalorder %s13, 1
    %p52 = por %p50, %p51
    %p53 = scmp.ne.s32.totalorder %s44, %s45
    %p54 = scmp.eq.s32.totalorder %s13, 0
    %p55 = por %p53, %p54
    %p56 = scmp.ne.s32.totalorder %s44, %s45
    %p57 = scmp.eq.s32.totalorder %s14, 1
    %p58 = por %p56, %p57
    %p60 = scmp.ne.s32.totalorder %s45, %s59
    %p61 = scmp.eq.s32.totalorder %s14, 0
    %p62 = por %p60, %p61
    %s63 = ssub.s32 %s8, %s15
    %p64 = scmp.eq.s32.totalorder %s63, 0
    %s66 = sadd.s32 %s65, 1
    %s67 = scalar_select %p64, %s65, %s66
    %p70 = pneg %p64
    %p71 = scmp.eq.s32.totalorder %s8, 1
    %p72 = por %p70, %p71
    %p73 = scmp.ne.s32.totalorder %s65, %s68
    %p74 = scmp.eq.s32.totalorder %s8, 0
    %p75 = por %p73, %p74
    %p76 = scmp.ne.s32.totalorder %s65, %s68
    %p77 = scmp.eq.s32.totalorder %s13, 1
    %p78 = por %p76, %p77
    %p79 = scmp.ne.s32.totalorder %s68, %s69
    %p80 = scmp.eq.s32.totalorder %s13, 0
    %p81 = por %p79, %p80
    %p82 = scmp.ne.s32.totalorder %s68, %s69
    %p83 = scmp.eq.s32.totalorder %s14, 1
    %p84 = por %p82, %p83
    %p86 = scmp.ne.s32.totalorder %s69, %s85
    %p87 = scmp.eq.s32.totalorder %s14, 0
    %p88 = por %p86, %p87
    %p89 = scmp.le.s32.totalorder 1, %s8
    %p90 = scmp.lt.s32.totalorder %s8, 3
    %p91 = pnand %p89, %p90
    %p92 = pneg %p91
    // Predicated region
    $region9: #{dwr_forward.1} parent=5 // pred_check
      _
    $region10: #{dwr_forward.1} parent=5 // pred_check_branch
      %94 = sbr.rel (%p91) target = $region12
    $region11: #{dwr_forward.1} parent=5 // pred_region
      %s95 = ssub.s32 %s8, 1
      // Predicated region
      $region13: #{dwr_forward.1} parent=11 // pred_check
        %p96 = pneg %p55
      $region14: #{dwr_forward.1} parent=11 // pred_check_branch
        %98 = sbr.rel (%p96) target = $region16
      $region15: #{dwr_forward.1} parent=11 // pred_region
        _
      $region16: #{dwr_forward.1} parent=11 // pred_fallthru
        _
    $region12: #{dwr_forward.1} parent=5 // pred_fallthru
      _
    %p99 = scmp.lt.s32.totalorder %s8, 2
    // Predicated region
    $region17: #{dwr_forward.1} parent=5 // pred_check
      %p100 = pneg %p99
    $region18: #{dwr_forward.1} parent=5 // pred_check_branch
      %102 = sbr.rel (%p100) target = $region20
    $region19: #{dwr_forward.1} parent=5 // pred_region
      // Predicated region
      $region21: #{dwr_forward.1} parent=19 // pred_check
        %p103 = pneg %p28
      $region22: #{dwr_forward.1} parent=19 // pred_check_branch
        %105 = sbr.rel (%p103) target = $region24
      $region23: #{dwr_forward.1} parent=19 // pred_region
        %p106 = scmp.lt.s32.totalorder %s8, 1
        %s107 = scalar_select %p106, %s8, 1
        %s108 = smul.addr %s107, 2
        %s109 = smul.addr %s108, 8
        %s110 = scalar_lea.vmem %s0, %s109
      $region24: #{dwr_forward.1} parent=19 // pred_fallthru
        _
    $region20: #{dwr_forward.1} parent=5 // pred_fallthru
      _
    %p111 = scmp.le.s32.totalorder 1, %s8
    %p112 = scmp.lt.s32.totalorder %s8, 3
    %p113 = pnand %p111, %p112
    %p114 = pneg %p113
    // Predicated region
    $region25: #{dwr_forward.1} parent=5 // pred_check
      _
    $region26: #{dwr_forward.1} parent=5 // pred_check_branch
      %116 = sbr.rel (%p113) target = $region28
    $region27: #{dwr_forward.1} parent=5 // pred_region
      %s117 = ssub.s32 %s8, 1
      %p118 = scmp.lt.s32.totalorder %s13, 1
      %s119 = scalar_select %p118, %s13, 1
      %s120 = smul.addr %s119, 2
      %s121 = smul.addr %s120, 8
      %s122 = scalar_lea.vmem %s0, %s121
      %p123 = pneg %p34
      %p124 = pneg %p31
      %p125 = pneg %p55
      %p126 = pneg %p52
      %p127 = pneg %p81
      %p128 = pneg %p78
      %p129 = scmp.lt.s32.totalorder %s13, 1
      %s130 = scalar_select %p129, %s13, 1
      %s131 = smul.addr %s130, 4
      %s132 = smul.addr %s131, 8
      %s133 = scalar_lea.vmem %s2, %s132
      %p134 = scmp.lt.s32.totalorder %s13, 1
      %s135 = scalar_select %p134, %s13, 1
      %s136 = smul.addr %s135, 2
      %s137 = smul.addr %s136, 8
      %s138 = scalar_lea.vmem %s0, %s137
      %p139 = scmp.lt.s32.totalorder %s13, 1
      %s140 = scalar_select %p139, %s13, 1
      %s141 = smul.addr %s140, 4
      %s142 = smul.addr %s141, 8
      %s143 = scalar_lea.vmem %s2, %s142
      %v144 = vld [vmem:[%s138] sm:$0xff]
      %v145 = vld [vmem:[%s138 + $0x8] sm:$0xff]
      %v146 = vld [vmem:[%s1] sm:$0xff]
      %v147 = vld [vmem:[%s1 + $0x8] sm:$0xff]
      %v148 = vld [vmem:[%s1 + $0x10] sm:$0xff]
      %v149 = vld [vmem:[%s1 + $0x18] sm:$0xff]
      %v150 = vld [vmem:[%s1 + $0x20] sm:$0xff]
      %v151 = vld [vmem:[%s1 + $0x28] sm:$0xff]
      %v152 = vld [vmem:[%s1 + $0x30] sm:$0xff]
      %v153 = vld [vmem:[%s1 + $0x38] sm:$0xff]
      %v154 = vld [vmem:[%s1 + $0x40] sm:$0xff]
      %v155 = vld [vmem:[%s1 + $0x48] sm:$0xff]
      %v156 = vld [vmem:[%s1 + $0x50] sm:$0xff]
      %v157 = vld [vmem:[%s1 + $0x58] sm:$0xff]
      %v158 = vld [vmem:[%s1 + $0x60] sm:$0xff]
      %v159 = vld [vmem:[%s1 + $0x68] sm:$0xff]
      %v160 = vld [vmem:[%s1 + $0x70] sm:$0xff]
      %v161 = vld [vmem:[%s1 + $0x78] sm:$0xff]
      %v162 = vld [vmem:[%s1 + $0x80] sm:$0xff]
      %v163 = vld [vmem:[%s1 + $0x88] sm:$0x1]
      %v164 = vlaneseq
      %v165 = vand.u32 %v164, 127
      %v166 = vadd.s32 %v165, 128
      %v167 = vand.u32 %v165, 15
      %v168 = vand.u32 %v166, 15
      %vm169 = vcmp.le.s32.totalorder %v167, 14
      %vm170 = vcmp.le.s32.totalorder %v168, 14
      %v171 = vsel %vm169, 1, 0
      %v172 = vsel %vm170, 1, 0
      %v173 = vcvt.s32.f32 %v171
      %v174 = vcvt.s32.f32 %v172
      %vm175 = vcmp.ge.s32.totalorder %v167, 1
      %vm176 = vcmp.ge.s32.totalorder %v168, 1
      %v177 = vsel %vm175, 1, 0
      %v178 = vsel %vm176, 1, 0
      %v179 = vcvt.s32.f32 %v177
      %v180 = vcvt.s32.f32 %v178
      %vm181 = vcmp.le.s32.totalorder %v167, 13
      %vm182 = vcmp.le.s32.totalorder %v168, 13
      %v183 = vsel %vm181, 1, 0
      %v184 = vsel %vm182, 1, 0
      %v185 = vcvt.s32.f32 %v183
      %v186 = vcvt.s32.f32 %v184
      %vm187 = vcmp.ge.s32.totalorder %v167, 2
      %vm188 = vcmp.ge.s32.totalorder %v168, 2
      %v189 = vsel %vm187, 1, 0
      %v190 = vsel %vm188, 1, 0
      %v191 = vcvt.s32.f32 %v189
      %v192 = vcvt.s32.f32 %v190
      %vm193 = vcmp.le.s32.totalorder %v167, 12
      %vm194 = vcmp.le.s32.totalorder %v168, 12
      %v195 = vsel %vm193, 1, 0
      %v196 = vsel %vm194, 1, 0
      %v197 = vcvt.s32.f32 %v195
      %v198 = vcvt.s32.f32 %v196
      %vm199 = vcmp.ge.s32.totalorder %v167, 3
      %vm200 = vcmp.ge.s32.totalorder %v168, 3
      %v201 = vsel %vm199, 1, 0
      %v202 = vsel %vm200, 1, 0
      %v203 = vcvt.s32.f32 %v201
      %v204 = vcvt.s32.f32 %v202
      %206 = vset.pattern.permute.xlu0 0
      %207 = vperm.xlu0 %206, %v146
      %v208 = vpop.permute.xlu0 %207
      %v210 = vmul.f32 %v208, 0.0
      %v211 = vmul.f32 %v144, %v208
      %v212 = vmul.f32 %v145, %v208
      %v213 = vadd.f32 %v210, 0.0
      %v214 = vadd.f32 %v211, 0.0
      %v215 = vadd.f32 %v212, 0.0
      %216 = vset.pattern.permute.xlu0 3
      %217 = vperm.xlu0 %216, %v146
      %v218 = vpop.permute.xlu0 %217
      %v220 = vmul.f32 %v218, 0.0
      %v221 = vmul.f32 %v144, %v218
      %v222 = vmul.f32 %v145, %v218
      %226 = vrot.lane.b32.xlu0 %v220, 112
      %v227 = vpop.permute.xlu0 %226
      %228 = vrot.lane.b32.xlu0 %v221, 112
      %v229 = vpop.permute.xlu0 %228
      %230 = vrot.lane.b32.xlu0 %v222, 112
      %v231 = vpop.permute.xlu0 %230
      %vm232 = vcmask 916480
      %v233 = vsel %vm232, %v227, %v229
      %v234 = vsel %vm232, %v229, %v231
      %v238 = vadd.f32 %v213, %v233
      %v239 = vadd.f32 %v214, %v234
      %v240 = vadd.f32 %v215, %v231
      %241 = vset.pattern.permute.xlu0 6
      %242 = vperm.xlu0 %241, %v146
      %v243 = vpop.permute.xlu0 %242
      %v245 = vmul.f32 %v144, %v243
      %v246 = vmul.f32 %v145, %v243
      %v247 = vmul.f32 %v243, 0.0
      %251 = vrot.lane.b32.xlu0 %v245, 96
      %v252 = vpop.permute.xlu0 %251
      %253 = vrot.lane.b32.xlu0 %v246, 96
      %v254 = vpop.permute.xlu0 %253
      %255 = vrot.lane.b32.xlu0 %v247, 96
      %v256 = vpop.permute.xlu0 %255
      %vm257 = vcmask 785408
      %v258 = vsel %vm257, %v252, %v254
      %v259 = vsel %vm257, %v254, %v256
      %v263 = vadd.f32 %v238, %v252
      %v264 = vadd.f32 %v239, %v258
      %v265 = vadd.f32 %v240, %v259
      %268 = vrot.lane.b32.xlu0 %v179, 111
      %v269 = vpop.permute.xlu0 %268
      %270 = vrot.lane.b32.xlu0 %v180, 111
      %v271 = vpop.permute.xlu0 %270
      %vm272 = vcmask 908288
      %v273 = vsel %vm272, %v269, %v271
      %v277 = vmul.f32 %v263, %v269
      %v278 = vmul.f32 %v264, %v273
      %v279 = vmul.f32 %v265, %v271
      %v280 = vadd.f32 %v277, 0.0
      %v281 = vadd.f32 %v278, 0.0
      %v282 = vadd.f32 %v279, 0.0
      %283 = vset.pattern.permute.xlu0 1
      %284 = vperm.xlu0 %283, %v146
      %v285 = vpop.permute.xlu0 %284
      %v287 = vmul.f32 %v285, 0.0
      %v288 = vmul.f32 %v144, %v285
      %v289 = vmul.f32 %v145, %v285
      %v290 = vadd.f32 %v287, 0.0
      %v291 = vadd.f32 %v288, 0.0
      %v292 = vadd.f32 %v289, 0.0
      %293 = vset.pattern.permute.xlu0 4
      %294 = vperm.xlu0 %293, %v146
      %v295 = vpop.permute.xlu0 %294
      %v297 = vmul.f32 %v144, %v295
      %v298 = vmul.f32 %v145, %v295
      %301 = vrot.lane.b32.xlu0 %v297, 112
      %v302 = vpop.permute.xlu0 %301
      %303 = vrot.lane.b32.xlu0 %v298, 112
      %v304 = vpop.permute.xlu0 %303
      %v305 = vsel %vm232, %v302, %v304
      %v309 = vadd.f32 %v290, %v302
      %v310 = vadd.f32 %v291, %v305
      %v311 = vadd.f32 %v292, %v304
      %312 = vset.pattern.permute.xlu0 7
      %313 = vperm.xlu0 %312, %v146
      %v314 = vpop.permute.xlu0 %313
      %v316 = vmul.f32 %v144, %v314
      %v317 = vmul.f32 %v145, %v314
      %v318 = vmul.f32 %v314, 0.0
      %322 = vrot.lane.b32.xlu0 %v316, 96
      %v323 = vpop.permute.xlu0 %322
      %324 = vrot.lane.b32.xlu0 %v317, 96
      %v325 = vpop.permute.xlu0 %324
      %326 = vrot.lane.b32.xlu0 %v318, 96
      %v327 = vpop.permute.xlu0 %326
      %v328 = vsel %vm257, %v323, %v325
      %v329 = vsel %vm257, %v325, %v327
      %v333 = vadd.f32 %v309, %v323
      %v334 = vadd.f32 %v310, %v328
      %v335 = vadd.f32 %v311, %v329
      %339 = vrot.lane.b32.xlu0 %v333, 127
      %v340 = vpop.permute.xlu0 %339
      %341 = vrot.lane.b32.xlu0 %v334, 127
      %v342 = vpop.permute.xlu0 %341
      %343 = vrot.lane.b32.xlu0 %v335, 127
      %v344 = vpop.permute.xlu0 %343
      %vm345 = vcmask 1039360
      %v346 = vsel %vm345, %v340, %v342
      %v347 = vsel %vm345, %v342, %v344
      %v351 = vadd.f32 %v280, %v346
      %v352 = vadd.f32 %v281, %v347
      %v353 = vadd.f32 %v282, %v344
      %354 = vset.pattern.permute.xlu0 2
      %355 = vperm.xlu0 %354, %v146
      %v356 = vpop.permute.xlu0 %355
      %v358 = vmul.f32 %v356, 0.0
      %v359 = vmul.f32 %v144, %v356
      %v360 = vmul.f32 %v145, %v356
      %v361 = vadd.f32 %v358, 0.0
      %v362 = vadd.f32 %v359, 0.0
      %v363 = vadd.f32 %v360, 0.0
      %364 = vset.pattern.permute.xlu0 5
      %365 = vperm.xlu0 %364, %v146
      %v366 = vpop.permute.xlu0 %365
      %v368 = vmul.f32 %v144, %v366
      %v369 = vmul.f32 %v145, %v366
      %v370 = vmul.f32 %v366, 0.0
      %374 = vrot.lane.b32.xlu0 %v368, 112
      %v375 = vpop.permute.xlu0 %374
      %376 = vrot.lane.b32.xlu0 %v369, 112
      %v377 = vpop.permute.xlu0 %376
      %378 = vrot.lane.b32.xlu0 %v370, 112
      %v379 = vpop.permute.xlu0 %378
      %v380 = vsel %vm232, %v375, %v377
      %v381 = vsel %vm232, %v377, %v379
      %v385 = vadd.f32 %v361, %v375
      %v386 = vadd.f32 %v362, %v380
      %v387 = vadd.f32 %v363, %v381
      %388 = vset.pattern.permute.xlu0 8
      %389 = vperm.xlu0 %388, %v146
      %v390 = vpop.permute.xlu0 %389
      %v392 = vmul.f32 %v144, %v390
      %v393 = vmul.f32 %v145, %v390
      %v394 = vmul.f32 %v390, 0.0
      %398 = vrot.lane.b32.xlu0 %v392, 96
      %v399 = vpop.permute.xlu0 %398
      %400 = vrot.lane.b32.xlu0 %v393, 96
      %v401 = vpop.permute.xlu0 %400
      %402 = vrot.lane.b32.xlu0 %v394, 96
      %v403 = vpop.permute.xlu0 %402
      %v404 = vsel %vm257, %v399, %v401
      %v405 = vsel %vm257, %v401, %v403
      %v409 = vadd.f32 %v385, %v399
      %v410 = vadd.f32 %v386, %v404
      %v411 = vadd.f32 %v387, %v405
      %414 = vrot.lane.b32.xlu0 %v173, 113
      %v415 = vpop.permute.xlu0 %414
      %416 = vrot.lane.b32.xlu0 %v174, 113
      %v417 = vpop.permute.xlu0 %416
      %vm418 = vcmask 924672
      %v419 = vsel %vm418, %v415, %v417
      %v423 = vmul.f32 %v409, %v415
      %v424 = vmul.f32 %v410, %v419
      %v425 = vmul.f32 %v411, %v417
      %429 = vrot.lane.b32.xlu0 %v423, 126
      %v430 = vpop.permute.xlu0 %429
      %431 = vrot.lane.b32.xlu0 %v424, 126
      %v432 = vpop.permute.xlu0 %431
      %433 = vrot.lane.b32.xlu0 %v425, 126
      %v434 = vpop.permute.xlu0 %433
      %vm435 = vcmask 1031168
      %v436 = vsel %vm435, %v430, %v432
      %v437 = vsel %vm435, %v432, %v434
      %v441 = vadd.f32 %v351, %v436
      %v442 = vadd.f32 %v352, %v437
      %v443 = vadd.f32 %v353, %v434
      %444 = vset.pattern.permute.xlu0 9
      %445 = vperm.xlu0 %444, %v146
      %v446 = vpop.permute.xlu0 %445
      %v448 = vmul.f32 %v446, 0.0
      %v449 = vmul.f32 %v144, %v446
      %v450 = vmul.f32 %v145, %v446
      %v451 = vadd.f32 %v448, 0.0
      %v452 = vadd.f32 %v449, 0.0
      %v453 = vadd.f32 %v450, 0.0
      %454 = vset.pattern.permute.xlu0 12
      %455 = vperm.xlu0 %454, %v146
      %v456 = vpop.permute.xlu0 %455
      %v458 = vmul.f32 %v456, 0.0
      %v459 = vmul.f32 %v144, %v456
      %v460 = vmul.f32 %v145, %v456
      %464 = vrot.lane.b32.xlu0 %v458, 96
      %v465 = vpop.permute.xlu0 %464
      %466 = vrot.lane.b32.xlu0 %v459, 96
      %v467 = vpop.permute.xlu0 %466
      %468 = vrot.lane.b32.xlu0 %v460, 96
      %v469 = vpop.permute.xlu0 %468
      %v470 = vsel %vm257, %v465, %v467
      %v471 = vsel %vm257, %v467, %v469
      %v475 = vadd.f32 %v451, %v470
      %v476 = vadd.f32 %v452, %v471
      %v477 = vadd.f32 %v453, %v469
      %478 = vset.pattern.permute.xlu0 15
      %479 = vperm.xlu0 %478, %v146
      %v480 = vpop.permute.xlu0 %479
      %v482 = vmul.f32 %v144, %v480
      %v483 = vmul.f32 %v145, %v480
      %v484 = vmul.f32 %v480, 0.0
      %488 = vrot.lane.b32.xlu0 %v482, 64
      %v489 = vpop.permute.xlu0 %488
      %490 = vrot.lane.b32.xlu0 %v483, 64
      %v491 = vpop.permute.xlu0 %490
      %492 = vrot.lane.b32.xlu0 %v484, 64
      %v493 = vpop.permute.xlu0 %492
      %vm494 = vcmask 523264
      %v495 = vsel %vm494, %v489, %v491
      %v496 = vsel %vm494, %v491, %v493
      %v500 = vadd.f32 %v475, %v489
      %v501 = vadd.f32 %v476, %v495
      %v502 = vadd.f32 %v477, %v496
      %505 = vrot.lane.b32.xlu0 %v191, 94
      %v506 = vpop.permute.xlu0 %505
      %507 = vrot.lane.b32.xlu0 %v192, 94
      %v508 = vpop.permute.xlu0 %507
      %vm509 = vcmask 769024
      %v510 = vsel %vm509, %v506, %v508
      %v514 = vmul.f32 %v500, %v506
      %v515 = vmul.f32 %v501, %v510
      %v516 = vmul.f32 %v502, %v508
      %v517 = vadd.f32 %v514, 0.0
      %v518 = vadd.f32 %v515, 0.0
      %v519 = vadd.f32 %v516, 0.0
      %520 = vset.pattern.permute.xlu0 10
      %521 = vperm.xlu0 %520, %v146
      %v522 = vpop.permute.xlu0 %521
      %v524 = vmul.f32 %v522, 0.0
      %v525 = vmul.f32 %v144, %v522
      %v526 = vmul.f32 %v145, %v522
      %v527 = vadd.f32 %v524, 0.0
      %v528 = vadd.f32 %v525, 0.0
      %v529 = vadd.f32 %v526, 0.0
      %530 = vset.pattern.permute.xlu0 13
      %531 = vperm.xlu0 %530, %v146
      %v532 = vpop.permute.xlu0 %531
      %v534 = vmul.f32 %v144, %v532
      %v535 = vmul.f32 %v145, %v532
      %538 = vrot.lane.b32.xlu0 %v534, 96
      %v539 = vpop.permute.xlu0 %538
      %540 = vrot.lane.b32.xlu0 %v535, 96
      %v541 = vpop.permute.xlu0 %540
      %v542 = vsel %vm257, %v539, %v541
      %v546 = vadd.f32 %v527, %v539
      %v547 = vadd.f32 %v528, %v542
      %v548 = vadd.f32 %v529, %v541
      %549 = vset.pattern.permute.xlu0 16
      %550 = vperm.xlu0 %549, %v146
      %v551 = vpop.permute.xlu0 %550
      %v553 = vmul.f32 %v144, %v551
      %v554 = vmul.f32 %v145, %v551
      %v555 = vmul.f32 %v551, 0.0
      %559 = vrot.lane.b32.xlu0 %v553, 64
      %v560 = vpop.permute.xlu0 %559
      %561 = vrot.lane.b32.xlu0 %v554, 64
      %v562 = vpop.permute.xlu0 %561
      %563 = vrot.lane.b32.xlu0 %v555, 64
      %v564 = vpop.permute.xlu0 %563
      %v565 = vsel %vm494, %v560, %v562
      %v566 = vsel %vm494, %v562, %v564
      %v570 = vadd.f32 %v546, %v560
      %v571 = vadd.f32 %v547, %v565
      %v572 = vadd.f32 %v548, %v566
      %576 = vrot.lane.b32.xlu0 %v570, 126
      %v577 = vpop.permute.xlu0 %576
      %578 = vrot.lane.b32.xlu0 %v571, 126
      %v579 = vpop.permute.xlu0 %578
      %580 = vrot.lane.b32.xlu0 %v572, 126
      %v581 = vpop.permute.xlu0 %580
      %v582 = vsel %vm435, %v577, %v579
      %v583 = vsel %vm435, %v579, %v581
      %v587 = vadd.f32 %v517, %v582
      %v588 = vadd.f32 %v518, %v583
      %v589 = vadd.f32 %v519, %v581
      %590 = vset.pattern.permute.xlu0 11
      %591 = vperm.xlu0 %590, %v146
      %v592 = vpop.permute.xlu0 %591
      %v594 = vmul.f32 %v592, 0.0
      %v595 = vmul.f32 %v144, %v592
      %v596 = vmul.f32 %v145, %v592
      %v597 = vadd.f32 %v594, 0.0
      %v598 = vadd.f32 %v595, 0.0
      %v599 = vadd.f32 %v596, 0.0
      %600 = vset.pattern.permute.xlu0 14
      %601 = vperm.xlu0 %600, %v146
      %v602 = vpop.permute.xlu0 %601
      %v604 = vmul.f32 %v144, %v602
      %v605 = vmul.f32 %v145, %v602
      %v606 = vmul.f32 %v602, 0.0
      %610 = vrot.lane.b32.xlu0 %v604, 96
      %v611 = vpop.permute.xlu0 %610
      %612 = vrot.lane.b32.xlu0 %v605, 96
      %v613 = vpop.permute.xlu0 %612
      %614 = vrot.lane.b32.xlu0 %v606, 96
      %v615 = vpop.permute.xlu0 %614
      %v616 = vsel %vm257, %v611, %v613
      %v617 = vsel %vm257, %v613, %v615
      %v621 = vadd.f32 %v597, %v611
      %v622 = vadd.f32 %v598, %v616
      %v623 = vadd.f32 %v599, %v617
      %624 = vset.pattern.permute.xlu0 17
      %625 = vperm.xlu0 %624, %v146
      %v626 = vpop.permute.xlu0 %625
      %v628 = vmul.f32 %v144, %v626
      %v629 = vmul.f32 %v145, %v626
      %v630 = vmul.f32 %v626, 0.0
      %634 = vrot.lane.b32.xlu0 %v628, 64
      %v635 = vpop.permute.xlu0 %634
      %636 = vrot.lane.b32.xlu0 %v629, 64
      %v637 = vpop.permute.xlu0 %636
      %638 = vrot.lane.b32.xlu0 %v630, 64
      %v639 = vpop.permute.xlu0 %638
      %v640 = vsel %vm494, %v635, %v637
      %v641 = vsel %vm494, %v637, %v639
      %v645 = vadd.f32 %v621, %v635
      %v646 = vadd.f32 %v622, %v640
      %v647 = vadd.f32 %v623, %v641
      %650 = vrot.lane.b32.xlu0 %v185, 98
      %v651 = vpop.permute.xlu0 %650
      %652 = vrot.lane.b32.xlu0 %v186, 98
      %v653 = vpop.permute.xlu0 %652
      %vm654 = vcmask 801792
      %v655 = vsel %vm654, %v651, %v653
      %v659 = vmul.f32 %v645, %v651
      %v660 = vmul.f32 %v646, %v655
      %v661 = vmul.f32 %v647, %v653
      %665 = vrot.lane.b32.xlu0 %v659, 124
      %v666 = vpop.permute.xlu0 %665
      %667 = vrot.lane.b32.xlu0 %v660, 124
      %v668 = vpop.permute.xlu0 %667
      %669 = vrot.lane.b32.xlu0 %v661, 124
      %v670 = vpop.permute.xlu0 %669
      %vm671 = vcmask 1014784
      %v672 = vsel %vm671, %v666, %v668
      %v673 = vsel %vm671, %v668, %v670
      %v677 = vadd.f32 %v587, %v672
      %v678 = vadd.f32 %v588, %v673
      %v679 = vadd.f32 %v589, %v670
      %680 = vset.pattern.permute.xlu0 18
      %681 = vperm.xlu0 %680, %v146
      %v682 = vpop.permute.xlu0 %681
      %v684 = vmul.f32 %v682, 0.0
      %v685 = vmul.f32 %v144, %v682
      %v686 = vmul.f32 %v145, %v682
      %v687 = vadd.f32 %v684, 0.0
      %v688 = vadd.f32 %v685, 0.0
      %v689 = vadd.f32 %v686, 0.0
      %690 = vset.pattern.permute.xlu0 21
      %691 = vperm.xlu0 %690, %v146
      %v692 = vpop.permute.xlu0 %691
      %v694 = vmul.f32 %v692, 0.0
      %v695 = vmul.f32 %v144, %v692
      %v696 = vmul.f32 %v145, %v692
      %700 = vrot.lane.b32.xlu0 %v694, 80
      %v701 = vpop.permute.xlu0 %700
      %702 = vrot.lane.b32.xlu0 %v695, 80
      %v703 = vpop.permute.xlu0 %702
      %704 = vrot.lane.b32.xlu0 %v696, 80
      %v705 = vpop.permute.xlu0 %704
      %vm706 = vcmask 654336
      %v707 = vsel %vm706, %v701, %v703
      %v708 = vsel %vm706, %v703, %v705
      %v712 = vadd.f32 %v687, %v707
      %v713 = vadd.f32 %v688, %v708
      %v714 = vadd.f32 %v689, %v705
      %715 = vset.pattern.permute.xlu0 24
      %716 = vperm.xlu0 %715, %v146
      %v717 = vpop.permute.xlu0 %716
      %v719 = vmul.f32 %v144, %v717
      %v720 = vmul.f32 %v145, %v717
      %v721 = vmul.f32 %v717, 0.0
      %725 = vrot.lane.b32.xlu0 %v719, 32
      %v726 = vpop.permute.xlu0 %725
      %727 = vrot.lane.b32.xlu0 %v720, 32
      %v728 = vpop.permute.xlu0 %727
      %729 = vrot.lane.b32.xlu0 %v721, 32
      %v730 = vpop.permute.xlu0 %729
      %vm731 = vcmask 261120
      %v732 = vsel %vm731, %v726, %v728
      %v733 = vsel %vm731, %v728, %v730
      %v737 = vadd.f32 %v712, %v726
      %v738 = vadd.f32 %v713, %v732
      %v739 = vadd.f32 %v714, %v733
      %742 = vrot.lane.b32.xlu0 %v203, 77
      %v743 = vpop.permute.xlu0 %742
      %744 = vrot.lane.b32.xlu0 %v204, 77
      %v745 = vpop.permute.xlu0 %744
      %vm746 = vcmask 629760
      %v747 = vsel %vm746, %v743, %v745
      %v751 = vmul.f32 %v737, %v743
      %v752 = vmul.f32 %v738, %v747
      %v753 = vmul.f32 %v739, %v745
      %v754 = vadd.f32 %v751, 0.0
      %v755 = vadd.f32 %v752, 0.0
      %v756 = vadd.f32 %v753, 0.0
      %757 = vset.pattern.permute.xlu0 19
      %758 = vperm.xlu0 %757, %v146
      %v759 = vpop.permute.xlu0 %758
      %v761 = vmul.f32 %v759, 0.0
      %v762 = vmul.f32 %v144, %v759
      %v763 = vmul.f32 %v145, %v759
      %v764 = vadd.f32 %v761, 0.0
      %v765 = vadd.f32 %v762, 0.0
      %v766 = vadd.f32 %v763, 0.0
      %767 = vset.pattern.permute.xlu0 22
      %768 = vperm.xlu0 %767, %v146
      %v769 = vpop.permute.xlu0 %768
      %v771 = vmul.f32 %v144, %v769
      %v772 = vmul.f32 %v145, %v769
      %775 = vrot.lane.b32.xlu0 %v771, 80
      %v776 = vpop.permute.xlu0 %775
      %777 = vrot.lane.b32.xlu0 %v772, 80
      %v778 = vpop.permute.xlu0 %777
      %v779 = vsel %vm706, %v776, %v778
      %v783 = vadd.f32 %v764, %v776
      %v784 = vadd.f32 %v765, %v779
      %v785 = vadd.f32 %v766, %v778
      %786 = vset.pattern.permute.xlu0 25
      %787 = vperm.xlu0 %786, %v146
      %v788 = vpop.permute.xlu0 %787
      %v790 = vmul.f32 %v144, %v788
      %v791 = vmul.f32 %v145, %v788
      %v792 = vmul.f32 %v788, 0.0
      %796 = vrot.lane.b32.xlu0 %v790, 32
      %v797 = vpop.permute.xlu0 %796
      %798 = vrot.lane.b32.xlu0 %v791, 32
      %v799 = vpop.permute.xlu0 %798
      %800 = vrot.lane.b32.xlu0 %v792, 32
      %v801 = vpop.permute.xlu0 %800
      %v802 = vsel %vm731, %v797, %v799
      %v803 = vsel %vm731, %v799, %v801
      %v807 = vadd.f32 %v783, %v797
      %v808 = vadd.f32 %v784, %v802
      %v809 = vadd.f32 %v785, %v803
      %813 = vrot.lane.b32.xlu0 %v807, 125
      %v814 = vpop.permute.xlu0 %813
      %815 = vrot.lane.b32.xlu0 %v808, 125
      %v816 = vpop.permute.xlu0 %815
      %817 = vrot.lane.b32.xlu0 %v809, 125
      %v818 = vpop.permute.xlu0 %817
      %vm819 = vcmask 1022976
      %v820 = vsel %vm819, %v814, %v816
      %v821 = vsel %vm819, %v816, %v818
      %v825 = vadd.f32 %v754, %v820
      %v826 = vadd.f32 %v755, %v821
      %v827 = vadd.f32 %v756, %v818
      %828 = vset.pattern.permute.xlu0 20
      %829 = vperm.xlu0 %828, %v146
      %v830 = vpop.permute.xlu0 %829
      %v832 = vmul.f32 %v830, 0.0
      %v833 = vmul.f32 %v144, %v830
      %v834 = vmul.f32 %v145, %v830
      %v835 = vadd.f32 %v832, 0.0
      %v836 = vadd.f32 %v833, 0.0
      %v837 = vadd.f32 %v834, 0.0
      %838 = vset.pattern.permute.xlu0 23
      %839 = vperm.xlu0 %838, %v146
      %v840 = vpop.permute.xlu0 %839
      %v842 = vmul.f32 %v144, %v840
      %v843 = vmul.f32 %v145, %v840
      %v844 = vmul.f32 %v840, 0.0
      %848 = vrot.lane.b32.xlu0 %v842, 80
      %v849 = vpop.permute.xlu0 %848
      %850 = vrot.lane.b32.xlu0 %v843, 80
      %v851 = vpop.permute.xlu0 %850
      %852 = vrot.lane.b32.xlu0 %v844, 80
      %v853 = vpop.permute.xlu0 %852
      %v854 = vsel %vm706, %v849, %v851
      %v855 = vsel %vm706, %v851, %v853
      %v859 = vadd.f32 %v835, %v849
      %v860 = vadd.f32 %v836, %v854
      %v861 = vadd.f32 %v837, %v855
      %862 = vset.pattern.permute.xlu0 26
      %863 = vperm.xlu0 %862, %v146
      %v864 = vpop.permute.xlu0 %863
      %v866 = vmul.f32 %v144, %v864
      %v867 = vmul.f32 %v145, %v864
      %v868 = vmul.f32 %v864, 0.0
      %872 = vrot.lane.b32.xlu0 %v866, 32
      %v873 = vpop.permute.xlu0 %872
      %874 = vrot.lane.b32.xlu0 %v867, 32
      %v875 = vpop.permute.xlu0 %874
      %876 = vrot.lane.b32.xlu0 %v868, 32
      %v877 = vpop.permute.xlu0 %876
      %v878 = vsel %vm731, %v873, %v875
      %v879 = vsel %vm731, %v875, %v877
      %v883 = vadd.f32 %v859, %v873
      %v884 = vadd.f32 %v860, %v878
      %v885 = vadd.f32 %v861, %v879
      %888 = vrot.lane.b32.xlu0 %v197, 83
      %v889 = vpop.permute.xlu0 %888
      %890 = vrot.lane.b32.xlu0 %v198, 83
      %v891 = vpop.permute.xlu0 %890
      %vm892 = vcmask 678912
      %v893 = vsel %vm892, %v889, %v891
      %v897 = vmul.f32 %v883, %v889
      %v898 = vmul.f32 %v884, %v893
      %v899 = vmul.f32 %v885, %v891
      %903 = vrot.lane.b32.xlu0 %v897, 122
      %v904 = vpop.permute.xlu0 %903
      %905 = vrot.lane.b32.xlu0 %v898, 122
      %v906 = vpop.permute.xlu0 %905
      %907 = vrot.lane.b32.xlu0 %v899, 122
      %v908 = vpop.permute.xlu0 %907
      %vm909 = vcmask 998400
      %v910 = vsel %vm909, %v904, %v906
      %v911 = vsel %vm909, %v906, %v908
      %v915 = vadd.f32 %v825, %v910
      %v916 = vadd.f32 %v826, %v911
      %v917 = vadd.f32 %v827, %v908
      %921 = vrot.lane.b32.xlu0 %v677, 17
      %v922 = vpop.permute.xlu0 %921
      %923 = vrot.lane.b32.xlu0 %v678, 17
      %v924 = vpop.permute.xlu0 %923
      %925 = vrot.lane.b32.xlu0 %v679, 17
      %v926 = vpop.permute.xlu0 %925
      %vm927 = vcmask 138240
      %v928 = vsel %vm927, %v922, %v924
      %v929 = vsel %vm927, %v924, %v926
      %933 = vrot.lane.b32.xlu0 %v915, 34
      %v934 = vpop.permute.xlu0 %933
      %935 = vrot.lane.b32.xlu0 %v916, 34
      %v936 = vpop.permute.xlu0 %935
      %937 = vrot.lane.b32.xlu0 %v917, 34
      %v938 = vpop.permute.xlu0 %937
      %vm939 = vcmask 277504
      %v940 = vsel %vm939, %v934, %v936
      %v941 = vsel %vm939, %v936, %v938
      %944 = vrot.lane.b32.xlu0 %v144, 111
      %v945 = vpop.permute.xlu0 %944
      %946 = vrot.lane.b32.xlu0 %v145, 111
      %v947 = vpop.permute.xlu0 %946
      %v948 = vsel %vm272, %v945, %v947
      %950 = vset.pattern.permute.xlu0 32
      %951 = vperm.xlu0 %950, %v147
      %v952 = vpop.permute.xlu0 %951
      %955 = vset.pattern.permute.xlu0 32
      %956 = vperm.xlu0 %955, %v148
      %v957 = vpop.permute.xlu0 %956
      %960 = vset.pattern.permute.xlu0 32
      %961 = vperm.xlu0 %960, %v149
      %v962 = vpop.permute.xlu0 %961
      %965 = vset.pattern.permute.xlu0 32
      %966 = vperm.xlu0 %965, %v150
      %v967 = vpop.permute.xlu0 %966
      %970 = vset.pattern.permute.xlu0 32
      %971 = vperm.xlu0 %970, %v151
      %v972 = vpop.permute.xlu0 %971
      %975 = vset.pattern.permute.xlu0 32
      %976 = vperm.xlu0 %975, %v152
      %v977 = vpop.permute.xlu0 %976
      %980 = vset.pattern.permute.xlu0 32
      %981 = vperm.xlu0 %980, %v153
      %v982 = vpop.permute.xlu0 %981
      %985 = vset.pattern.permute.xlu0 32
      %986 = vperm.xlu0 %985, %v154
      %v987 = vpop.permute.xlu0 %986
      %992 = vrot.lane.b32.xlu0 %v441, 17
      %v993 = vpop.permute.xlu0 %992
      %994 = vrot.lane.b32.xlu0 %v442, 17
      %v995 = vpop.permute.xlu0 %994
      %996 = vrot.lane.b32.xlu0 %v443, 17
      %v997 = vpop.permute.xlu0 %996
      %998 = vrot.lane.b32.xlu0 %v922, 17
      %v999 = vpop.permute.xlu0 %998
      %1000 = vrot.lane.b32.xlu0 %v928, 17
      %v1001 = vpop.permute.xlu0 %1000
      %1002 = vrot.lane.b32.xlu0 %v929, 17
      %v1003 = vpop.permute.xlu0 %1002
      %1004 = vrot.lane.b32.xlu0 %v934, 17
      %v1005 = vpop.permute.xlu0 %1004
      %1006 = vrot.lane.b32.xlu0 %v940, 17
      %v1007 = vpop.permute.xlu0 %1006
      %1008 = vrot.lane.b32.xlu0 %v941, 17
      %v1009 = vpop.permute.xlu0 %1008
      %1010 = vrot.lane.b32.xlu0 %v945, 17
      %v1011 = vpop.permute.xlu0 %1010
      %1012 = vrot.lane.b32.xlu0 %v948, 17
      %v1013 = vpop.permute.xlu0 %1012
      %1014 = vrot.lane.b32.xlu0 %v947, 17
      %v1015 = vpop.permute.xlu0 %1014
      %v1016 = vsel %vm927, %v993, %v995
      %v1017 = vsel %vm927, %v995, %v997
      %v1018 = vsel %vm927, %v999, %v1001
      %v1019 = vsel %vm927, %v1001, %v1003
      %v1020 = vsel %vm927, %v1005, %v1007
      %v1021 = vsel %vm927, %v1007, %v1009
      %v1022 = vsel %vm927, %v1011, %v1013
      %v1023 = vsel %vm927, %v1013, %v1015
      %v1032 = vsel %vm731, %v147, 0
      %v1034 = vsel %vm731, %v148, 0
      %v1036 = vsel %vm731, %v149, 0
      %v1038 = vsel %vm731, %v150, 0
      %v1040 = vsel %vm731, %v151, 0
      %v1042 = vsel %vm731, %v152, 0
      %v1044 = vsel %vm731, %v153, 0
      %v1046 = vsel %vm731, %v154, 0
      %1048 = vmatprep.subr.mxu0 %v1017
      %1049 = vmatpush1.msra.mxu0 %v1016
      %1050 = vmatprep.subr.mxu0 %v1019
      %1051 = vmatpush1.msra.mxu0 %v1018
      %1052 = vmatprep.subr.mxu0 %v1021
      %1053 = vmatpush1.msra.mxu0 %v1020
      %1054 = vmatprep.subr.mxu0 %v1023
      %1055 = vmatpush1.msra.mxu0 %v1022
      %1056 = vmatprep.subr.mxu0 0.0
      %1057 = vmatpush1.msra.mxu0 0.0
      %1058 = vmatprep.subr.mxu0 0.0
      %1059 = vmatpush1.msra.mxu0 0.0
      %1060 = vmatprep.subr.mxu0 0.0
      %1061 = vmatpush1.msra.mxu0 0.0
      %1062 = vmatprep.subr.mxu0 0.0
      %1063 = vmatpush1.msra.mxu0 0.0
      %1064 = vmatprep.subr.mxu0 0.0
      %1065 = vmatpush1.msra.mxu0 0.0
      %1066 = vmatprep.subr.mxu0 0.0
      %1067 = vmatpush1.msra.mxu0 0.0
      %1068 = vmatprep.subr.mxu0 0.0
      %1069 = vmatpush1.msra.mxu0 0.0
      %1070 = vmatprep.subr.mxu0 0.0
      %1071 = vmatpush1.msra.mxu0 0.0
      %1072 = vmatprep.subr.mxu0 0.0
      %1073 = vmatpush1.msra.mxu0 0.0
      %1074 = vmatprep.subr.mxu0 0.0
      %1075 = vmatpush1.msra.mxu0 0.0
      %1076 = vmatprep.subr.mxu0 0.0
      %1077 = vmatpush1.msra.mxu0 0.0
      %1078 = vmatprep.subr.mxu0 0.0
      %1079 = vmatpush1.msra.mxu0 0.0
      %1080 = vmatprep.subr.mxu0 0.0
      %1081 = vmatpush1.msra.mxu0 0.0
      %1082 = vmatprep.subr.mxu0 0.0
      %1083 = vmatpush1.msra.mxu0 0.0
      %1084 = vmatprep.subr.mxu0 0.0
      %1085 = vmatpush1.msra.mxu0 0.0
      %1086 = vmatprep.subr.mxu0 0.0
      %1087 = vmatpush1.msra.mxu0 0.0
      %1088 = vmatprep.subr.mxu0 0.0
      %1089 = vmatpush1.msra.mxu0 0.0
      %1090 = vmatprep.subr.mxu0 0.0
      %1091 = vmatpush1.msra.mxu0 0.0
      %1092 = vmatprep.subr.mxu0 0.0
      %1093 = vmatpush1.msra.mxu0 0.0
      %1094 = vmatprep.subr.mxu0 0.0
      %1095 = vmatpush1.msra.mxu0 0.0
      %1096 = vmatprep.subr.mxu0 0.0
      %1097 = vmatpush1.msra.mxu0 0.0
      %1098 = vmatprep.subr.mxu0 0.0
      %1099 = vmatpush1.msra.mxu0 0.0
      %1100 = vmatprep.subr.mxu0 0.0
      %1101 = vmatpush1.msra.mxu0 0.0
      %1102 = vmatprep.subr.mxu0 0.0
      %1103 = vmatpush1.msra.mxu0 0.0
      %1104 = vmatprep.subr.mxu0 0.0
      %1105 = vmatpush1.msra.mxu0 0.0
      %1106 = vmatprep.subr.mxu0 0.0
      %1107 = vmatpush1.msra.mxu0 0.0
      %1108 = vmatprep.subr.mxu0 0.0
      %1109 = vmatpush1.msra.mxu0 0.0
      %1110 = vmatprep.subr.mxu0 0.0
      %1111 = vmatpush1.msra.mxu0 0.0
      %1112 = vmatprep.mubr.f32.mxu0 0.0
      %1113 = vmatmul.mubr.f32.gmra.mrb[0].mxu0 %v1032
      %v1114 = vpop.f32.mrb[0].mxu0
      %v1115 = vadd.f32 %v952, %v1114
      %v1116 = vpop.f32.mrb[0].mxu0
      %v1117 = vadd.f32 %v952, %v1116
      %1118 = vmatprep.mubr.f32.mxu0 0.0
      %1119 = vmatmul.mubr.f32.gmra.mrb[0].mxu0 %v1034
      %v1120 = vpop.f32.mrb[0].mxu0
      %v1121 = vadd.f32 %v957, %v1120
      %v1122 = vpop.f32.mrb[0].mxu0
      %v1123 = vadd.f32 %v957, %v1122
      %1124 = vmatprep.mubr.f32.mxu0 0.0
      %1125 = vmatmul.mubr.f32.gmra.mrb[0].mxu0 %v1036
      %v1126 = vpop.f32.mrb[0].mxu0
      %v1127 = vadd.f32 %v962, %v1126
      %v1128 = vpop.f32.mrb[0].mxu0
      %v1129 = vadd.f32 %v962, %v1128
      %1130 = vmatprep.mubr.f32.mxu0 0.0
      %1131 = vmatmul.mubr.f32.gmra.mrb[0].mxu0 %v1038
      %v1132 = vpop.f32.mrb[0].mxu0
      %v1133 = vadd.f32 %v967, %v1132
      %v1134 = vpop.f32.mrb[0].mxu0
      %v1135 = vadd.f32 %v967, %v1134
      %1136 = vmatprep.mubr.f32.mxu0 0.0
      %1137 = vmatmul.mubr.f32.gmra.mrb[0].mxu0 %v1040
      %v1138 = vpop.f32.mrb[0].mxu0
      %v1139 = vadd.f32 %v972, %v1138
      %v1140 = vpop.f32.mrb[0].mxu0
      %v1141 = vadd.f32 %v972, %v1140
      %1142 = vmatprep.mubr.f32.mxu0 0.0
      %1143 = vmatmul.mubr.f32.gmra.mrb[0].mxu0 %v1042
      %v1144 = vpop.f32.mrb[0].mxu0
      %v1145 = vadd.f32 %v977, %v1144
      %v1146 = vpop.f32.mrb[0].mxu0
      %v1147 = vadd.f32 %v977, %v1146
      %1148 = vmatprep.mubr.f32.mxu0 0.0
      %1149 = vmatmul.mubr.f32.gmra.mrb[0].mxu0 %v1044
      %v1150 = vpop.f32.mrb[0].mxu0
      %v1151 = vadd.f32 %v982, %v1150
      %v1152 = vpop.f32.mrb[0].mxu0
      %v1153 = vadd.f32 %v982, %v1152
      %1154 = vmatprep.mubr.f32.mxu0 0.0
      %1155 = vmatmul.mubr.f32.gmra.mrb[0].mxu0 %v1046
      %v1156 = vpop.f32.mrb[0].mxu0
      %v1157 = vadd.f32 %v987, %v1156
      %v1158 = vpop.f32.mrb[0].mxu0
      %v1159 = vadd.f32 %v987, %v1158
      %1160 = vdwg.mxu0
      %v1161 = vxor.u32 %v1115, 2147483648
      %v1162 = vxor.u32 %v1117, 2147483648
      %v1163 = vxor.u32 %v1121, 2147483648
      %v1164 = vxor.u32 %v1123, 2147483648
      %v1165 = vxor.u32 %v1127, 2147483648
      %v1166 = vxor.u32 %v1129, 2147483648
      %v1167 = vxor.u32 %v1133, 2147483648
      %v1168 = vxor.u32 %v1135, 2147483648
      %v1169 = vxor.u32 %v1139, 2147483648
      %v1170 = vxor.u32 %v1141, 2147483648
      %v1171 = vxor.u32 %v1145, 2147483648
      %v1172 = vxor.u32 %v1147, 2147483648
      %v1173 = vmul.f32 %v1161, 1.442695
      %v1174 = vpow.pop %v1173
      %v1175 = vmul.f32 %v1162, 1.442695
      %v1176 = vpow.pop %v1175
      %v1177 = vmul.f32 %v1163, 1.442695
      %v1178 = vpow.pop %v1177
      %v1179 = vmul.f32 %v1164, 1.442695
      %v1180 = vpow.pop %v1179
      %v1181 = vmul.f32 %v1165, 1.442695
      %v1182 = vpow.pop %v1181
      %v1183 = vmul.f32 %v1166, 1.442695
      %v1184 = vpow.pop %v1183
      %v1185 = vmul.f32 %v1167, 1.442695
      %v1186 = vpow.pop %v1185
      %v1187 = vmul.f32 %v1168, 1.442695
      %v1188 = vpow.pop %v1187
      %v1189 = vmul.f32 %v1169, 1.442695
      %v1190 = vpow.pop %v1189
      %v1191 = vmul.f32 %v1170, 1.442695
      %v1192 = vpow.pop %v1191
      %v1193 = vmul.f32 %v1171, 1.442695
      %v1194 = vpow.pop %v1193
      %v1195 = vmul.f32 %v1172, 1.442695
      %v1196 = vpow.pop %v1195
      %v1197 = vadd.f32 %v1174, 1.0
      %v1198 = vadd.f32 %v1176, 1.0
      %v1199 = vadd.f32 %v1178, 1.0
      %v1200 = vadd.f32 %v1180, 1.0
      %v1201 = vadd.f32 %v1182, 1.0
      %v1202 = vadd.f32 %v1184, 1.0
      %v1203 = vadd.f32 %v1186, 1.0
      %v1204 = vadd.f32 %v1188, 1.0
      %v1205 = vadd.f32 %v1190, 1.0
      %v1206 = vadd.f32 %v1192, 1.0
      %v1207 = vadd.f32 %v1194, 1.0
      %v1208 = vadd.f32 %v1196, 1.0
      %v1209 = vrcp.pop %v1197
      %v1210 = vmul.f32 1.0, %v1209
      %v1211 = vrcp.pop %v1198
      %v1212 = vmul.f32 1.0, %v1211
      %v1213 = vrcp.pop %v1199
      %v1214 = vmul.f32 1.0, %v1213
      %v1215 = vrcp.pop %v1200
      %v1216 = vmul.f32 1.0, %v1215
      %v1217 = vrcp.pop %v1201
      %v1218 = vmul.f32 1.0, %v1217
      %v1219 = vrcp.pop %v1202
      %v1220 = vmul.f32 1.0, %v1219
      %v1221 = vrcp.pop %v1203
      %v1222 = vmul.f32 1.0, %v1221
      %v1223 = vrcp.pop %v1204
      %v1224 = vmul.f32 1.0, %v1223
      %v1225 = vrcp.pop %v1205
      %v1226 = vmul.f32 1.0, %v1225
      %v1227 = vrcp.pop %v1206
      %v1228 = vmul.f32 1.0, %v1227
      %v1229 = vrcp.pop %v1207
      %v1230 = vmul.f32 1.0, %v1229
      %v1231 = vrcp.pop %v1208
      %v1232 = vmul.f32 1.0, %v1231
      %v1233 = vmul.f32 %v1115, %v1210
      %v1234 = vmul.f32 %v1117, %v1212
      %v1235 = vmul.f32 %v1121, %v1214
      %v1236 = vmul.f32 %v1123, %v1216
      %v1237 = vmul.f32 %v1127, %v1218
      %v1238 = vmul.f32 %v1129, %v1220
      %v1239 = vmul.f32 %v1133, %v1222
      %v1240 = vmul.f32 %v1135, %v1224
      %v1241 = vmul.f32 %v1139, %v1226
      %v1242 = vmul.f32 %v1141, %v1228
      %v1243 = vmul.f32 %v1145, %v1230
      %v1244 = vmul.f32 %v1147, %v1232
      %1246 = vset.pattern.permute.xlu0 48
      %1247 = vperm.xlu0 %1246, %v155
      %v1248 = vpop.permute.xlu0 %1247
      %1251 = vset.pattern.permute.xlu0 48
      %1252 = vperm.xlu0 %1251, %v156
      %v1253 = vpop.permute.xlu0 %1252
      %1256 = vset.pattern.permute.xlu0 48
      %1257 = vperm.xlu0 %1256, %v157
      %v1258 = vpop.permute.xlu0 %1257
      %1261 = vset.pattern.permute.xlu0 48
      %1262 = vperm.xlu0 %1261, %v158
      %v1263 = vpop.permute.xlu0 %1262
      %vm1265 = vcmask 392192
      %v1266 = vsel %vm1265, %v155, 0
      %v1268 = vsel %vm1265, %v156, 0
      %v1270 = vsel %vm1265, %v157, 0
      %v1272 = vsel %vm1265, %v158, 0
      %1274 = vmatprep.subr.mxu0 %v1234
      %1275 = vmatpush1.msra.mxu0 %v1233
      %1276 = vmatprep.subr.mxu0 %v1236
      %1277 = vmatpush1.msra.mxu0 %v1235
      %1278 = vmatprep.subr.mxu0 %v1238
      %1279 = vmatpush1.msra.mxu0 %v1237
      %1280 = vmatprep.subr.mxu0 %v1240
      %1281 = vmatpush1.msra.mxu0 %v1239
      %1282 = vmatprep.subr.mxu0 %v1242
      %1283 = vmatpush1.msra.mxu0 %v1241
      %1284 = vmatprep.subr.mxu0 %v1244
      %1285 = vmatpush1.msra.mxu0 %v1243
      %1286 = vmatprep.subr.mxu0 0.0
      %1287 = vmatpush1.msra.mxu0 0.0
      %1288 = vmatprep.subr.mxu0 0.0
      %1289 = vmatpush1.msra.mxu0 0.0
      %1290 = vmatprep.subr.mxu0 0.0
      %1291 = vmatpush1.msra.mxu0 0.0
      %1292 = vmatprep.subr.mxu0 0.0
      %1293 = vmatpush1.msra.mxu0 0.0
      %1294 = vmatprep.subr.mxu0 0.0
      %1295 = vmatpush1.msra.mxu0 0.0
      %1296 = vmatprep.subr.mxu0 0.0
      %1297 = vmatpush1.msra.mxu0 0.0
      %1298 = vmatprep.subr.mxu0 0.0
      %1299 = vmatpush1.msra.mxu0 0.0
      %1300 = vmatprep.subr.mxu0 0.0
      %1301 = vmatpush1.msra.mxu0 0.0
      %1302 = vmatprep.subr.mxu0 0.0
      %1303 = vmatpush1.msra.mxu0 0.0
      %1304 = vmatprep.subr.mxu0 0.0
      %1305 = vmatpush1.msra.mxu0 0.0
      %1306 = vmatprep.subr.mxu0 0.0
      %1307 = vmatpush1.msra.mxu0 0.0
      %1308 = vmatprep.subr.mxu0 0.0
      %1309 = vmatpush1.msra.mxu0 0.0
      %1310 = vmatprep.subr.mxu0 0.0
      %1311 = vmatpush1.msra.mxu0 0.0
      %1312 = vmatprep.subr.mxu0 0.0
      %1313 = vmatpush1.msra.mxu0 0.0
      %1314 = vmatprep.subr.mxu0 0.0
      %1315 = vmatpush1.msra.mxu0 0.0
      %1316 = vmatprep.subr.mxu0 0.0
      %1317 = vmatpush1.msra.mxu0 0.0
      %1318 = vmatprep.subr.mxu0 0.0
      %1319 = vmatpush1.msra.mxu0 0.0
      %1320 = vmatprep.subr.mxu0 0.0
      %1321 = vmatpush1.msra.mxu0 0.0
      %1322 = vmatprep.subr.mxu0 0.0
      %1323 = vmatpush1.msra.mxu0 0.0
      %1324 = vmatprep.subr.mxu0 0.0
      %1325 = vmatpush1.msra.mxu0 0.0
      %1326 = vmatprep.subr.mxu0 0.0
      %1327 = vmatpush1.msra.mxu0 0.0
      %1328 = vmatprep.subr.mxu0 0.0
      %1329 = vmatpush1.msra.mxu0 0.0
      %1330 = vmatprep.subr.mxu0 0.0
      %1331 = vmatpush1.msra.mxu0 0.0
      %1332 = vmatprep.subr.mxu0 0.0
      %1333 = vmatpush1.msra.mxu0 0.0
      %1334 = vmatprep.subr.mxu0 0.0
      %1335 = vmatpush1.msra.mxu0 0.0
      %1336 = vmatprep.subr.mxu0 0.0
      %1337 = vmatpush1.msra.mxu0 0.0
      %1338 = vmatprep.mubr.f32.mxu0 0.0
      %1339 = vmatmul.mubr.f32.gmra.mrb[0].mxu0 %v1266
      %v1340 = vpop.f32.mrb[0].mxu0
      %v1341 = vadd.f32 %v1248, %v1340
      %v1342 = vpop.f32.mrb[0].mxu0
      %v1343 = vadd.f32 %v1248, %v1342
      %1344 = vmatprep.mubr.f32.mxu0 0.0
      %1345 = vmatmul.mubr.f32.gmra.mrb[0].mxu0 %v1268
      %v1346 = vpop.f32.mrb[0].mxu0
      %v1347 = vadd.f32 %v1253, %v1346
      %v1348 = vpop.f32.mrb[0].mxu0
      %v1349 = vadd.f32 %v1253, %v1348
      %1350 = vmatprep.mubr.f32.mxu0 0.0
      %1351 = vmatmul.mubr.f32.gmra.mrb[0].mxu0 %v1270
      %v1352 = vpop.f32.mrb[0].mxu0
      %v1353 = vadd.f32 %v1258, %v1352
      %v1354 = vpop.f32.mrb[0].mxu0
      %v1355 = vadd.f32 %v1258, %v1354
      %1356 = vmatprep.mubr.f32.mxu0 0.0
      %1357 = vmatmul.mubr.f32.gmra.mrb[0].mxu0 %v1272
      %v1358 = vpop.f32.mrb[0].mxu0
      %v1359 = vadd.f32 %v1263, %v1358
      %v1360 = vpop.f32.mrb[0].mxu0
      %v1361 = vadd.f32 %v1263, %v1360
      %1362 = vdwg.mxu0
      %v1363 = vmul.f32 %v1341, 0.5
      %v1364 = vmul.f32 %v1343, 0.5
      %v1365 = vmul.f32 %v1347, 0.5
      %v1366 = vmul.f32 %v1349, 0.5
      %v1367 = vmul.f32 %v1353, 0.5
      %v1368 = vmul.f32 %v1355, 0.5
      %v1369 = vmul.f32 %v1359, 0.5
      %v1370 = vmul.f32 %v1361, 0.5
      %v1371 = vmul.f32 %v1341, 0.70710677
      %v1372 = vmul.f32 %v1343, 0.70710677
      %v1373 = vmul.f32 %v1347, 0.70710677
      %v1374 = vmul.f32 %v1349, 0.70710677
      %v1375 = vmul.f32 %v1353, 0.70710677
      %v1376 = vmul.f32 %v1355, 0.70710677
      %v1377 = vmul.f32 %v1359, 0.70710677
      %v1378 = vmul.f32 %v1361, 0.70710677
      %vm1379 = vcmp.ge.f32.partialorder %v1371, 0.0
      %vm1380 = vcmp.ge.f32.partialorder %v1372, 0.0
      %vm1381 = vcmp.ge.f32.partialorder %v1373, 0.0
      %vm1382 = vcmp.ge.f32.partialorder %v1374, 0.0
      %vm1383 = vcmp.ge.f32.partialorder %v1375, 0.0
      %vm1384 = vcmp.ge.f32.partialorder %v1376, 0.0
      %vm1385 = vcmp.ge.f32.partialorder %v1377, 0.0
      %vm1386 = vcmp.ge.f32.partialorder %v1378, 0.0
      %v1387 = vsel %vm1379, 1.0, -1.0
      %v1388 = vsel %vm1380, 1.0, -1.0
      %v1389 = vsel %vm1381, 1.0, -1.0
      %v1390 = vsel %vm1382, 1.0, -1.0
      %v1391 = vsel %vm1383, 1.0, -1.0
      %v1392 = vsel %vm1384, 1.0, -1.0
      %v1393 = vsel %vm1385, 1.0, -1.0
      %v1394 = vsel %vm1386, 1.0, -1.0
      %v1395 = vand.u32 2147483647, %v1371
      %v1396 = vand.u32 2147483647, %v1372
      %v1397 = vand.u32 2147483647, %v1373
      %v1398 = vand.u32 2147483647, %v1374
      %v1399 = vand.u32 2147483647, %v1375
      %v1400 = vand.u32 2147483647, %v1376
      %v1401 = vand.u32 2147483647, %v1377
      %v1402 = vand.u32 2147483647, %v1378
      %v1403 = vmul.f32 %v1395, 0.3275911
      %v1404 = vmul.f32 %v1396, 0.3275911
      %v1405 = vmul.f32 %v1397, 0.3275911
      %v1406 = vmul.f32 %v1398, 0.3275911
      %v1407 = vmul.f32 %v1399, 0.3275911
      %v1408 = vmul.f32 %v1400, 0.3275911
      %v1409 = vmul.f32 %v1401, 0.3275911
      %v1410 = vmul.f32 %v1402, 0.3275911
      %v1411 = vadd.f32 %v1403, 1.0
      %v1412 = vadd.f32 %v1404, 1.0
      %v1413 = vadd.f32 %v1405, 1.0
      %v1414 = vadd.f32 %v1406, 1.0
      %v1415 = vadd.f32 %v1407, 1.0
      %v1416 = vadd.f32 %v1408, 1.0
      %v1417 = vadd.f32 %v1409, 1.0
      %v1418 = vadd.f32 %v1410, 1.0
      %v1419 = vrcp.pop %v1411
      %v1420 = vmul.f32 1.0, %v1419
      %v1421 = vrcp.pop %v1412
      %v1422 = vmul.f32 1.0, %v1421
      %v1423 = vrcp.pop %v1413
      %v1424 = vmul.f32 1.0, %v1423
      %v1425 = vrcp.pop %v1414
      %v1426 = vmul.f32 1.0, %v1425
      %v1427 = vrcp.pop %v1415
      %v1428 = vmul.f32 1.0, %v1427
      %v1429 = vrcp.pop %v1416
      %v1430 = vmul.f32 1.0, %v1429
      %v1431 = vrcp.pop %v1417
      %v1432 = vmul.f32 1.0, %v1431
      %v1433 = vrcp.pop %v1418
      %v1434 = vmul.f32 1.0, %v1433
      %v1435 = vmul.f32 %v1420, 1.0614054
      %v1436 = vmul.f32 %v1422, 1.0614054
      %v1437 = vmul.f32 %v1424, 1.0614054
      %v1438 = vmul.f32 %v1426, 1.0614054
      %v1439 = vmul.f32 %v1428, 1.0614054
      %v1440 = vmul.f32 %v1430, 1.0614054
      %v1441 = vmul.f32 %v1432, 1.0614054
      %v1442 = vmul.f32 %v1434, 1.0614054
      %v1443 = vadd.f32 %v1435, -1.4531521
      %v1444 = vadd.f32 %v1436, -1.4531521
      %v1445 = vadd.f32 %v1437, -1.4531521
      %v1446 = vadd.f32 %v1438, -1.4531521
      %v1447 = vadd.f32 %v1439, -1.4531521
      %v1448 = vadd.f32 %v1440, -1.4531521
      %v1449 = vadd.f32 %v1441, -1.4531521
      %v1450 = vadd.f32 %v1442, -1.4531521
      %v1451 = vmul.f32 %v1443, %v1420
      %v1452 = vmul.f32 %v1444, %v1422
      %v1453 = vmul.f32 %v1445, %v1424
      %v1454 = vmul.f32 %v1446, %v1426
      %v1455 = vmul.f32 %v1447, %v1428
      %v1456 = vmul.f32 %v1448, %v1430
      %v1457 = vmul.f32 %v1449, %v1432
      %v1458 = vmul.f32 %v1450, %v1434
      %v1459 = vadd.f32 %v1451, 1.4214138
      %v1460 = vadd.f32 %v1452, 1.4214138
      %v1461 = vadd.f32 %v1453, 1.4214138
      %v1462 = vadd.f32 %v1454, 1.4214138
      %v1463 = vadd.f32 %v1455, 1.4214138
      %v1464 = vadd.f32 %v1456, 1.4214138
      %v1465 = vadd.f32 %v1457, 1.4214138
      %v1466 = vadd.f32 %v1458, 1.4214138
      %v1467 = vmul.f32 %v1459, %v1420
      %v1468 = vmul.f32 %v1460, %v1422
      %v1469 = vmul.f32 %v1461, %v1424
      %v1470 = vmul.f32 %v1462, %v1426
      %v1471 = vmul.f32 %v1463, %v1428
      %v1472 = vmul.f32 %v1464, %v1430
      %v1473 = vmul.f32 %v1465, %v1432
      %v1474 = vmul.f32 %v1466, %v1434
      %v1475 = vadd.f32 %v1467, -0.28449672
      %v1476 = vadd.f32 %v1468, -0.28449672
      %v1477 = vadd.f32 %v1469, -0.28449672
      %v1478 = vadd.f32 %v1470, -0.28449672
      %v1479 = vadd.f32 %v1471, -0.28449672
      %v1480 = vadd.f32 %v1472, -0.28449672
      %v1481 = vadd.f32 %v1473, -0.28449672
      %v1482 = vadd.f32 %v1474, -0.28449672
      %v1483 = vmul.f32 %v1475, %v1420
      %v1484 = vmul.f32 %v1476, %v1422
      %v1485 = vmul.f32 %v1477, %v1424
      %v1486 = vmul.f32 %v1478, %v1426
      %v1487 = vmul.f32 %v1479, %v1428
      %v1488 = vmul.f32 %v1480, %v1430
      %v1489 = vmul.f32 %v1481, %v1432
      %v1490 = vmul.f32 %v1482, %v1434
      %v1491 = vadd.f32 %v1483, 0.2548296
      %v1492 = vadd.f32 %v1484, 0.2548296
      %v1493 = vadd.f32 %v1485, 0.2548296
      %v1494 = vadd.f32 %v1486, 0.2548296
      %v1495 = vadd.f32 %v1487, 0.2548296
      %v1496 = vadd.f32 %v1488, 0.2548296
      %v1497 = vadd.f32 %v1489, 0.2548296
      %v1498 = vadd.f32 %v1490, 0.2548296
      %v1499 = vmul.f32 %v1491, %v1420
      %v1500 = vmul.f32 %v1492, %v1422
      %v1501 = vmul.f32 %v1493, %v1424
      %v1502 = vmul.f32 %v1494, %v1426
      %v1503 = vmul.f32 %v1495, %v1428
      %v1504 = vmul.f32 %v1496, %v1430
      %v1505 = vmul.f32 %v1497, %v1432
      %v1506 = vmul.f32 %v1498, %v1434
      %v1507 = vsub.f32 0.0, %v1395
      %v1508 = vsub.f32 0.0, %v1396
      %v1509 = vsub.f32 0.0, %v1397
      %v1510 = vsub.f32 0.0, %v1398
      %v1511 = vsub.f32 0.0, %v1399
      %v1512 = vsub.f32 0.0, %v1400
      %v1513 = vsub.f32 0.0, %v1401
      %v1514 = vsub.f32 0.0, %v1402
      %v1515 = vmul.f32 %v1507, %v1395
      %v1516 = vmul.f32 %v1508, %v1396
      %v1517 = vmul.f32 %v1509, %v1397
      %v1518 = vmul.f32 %v1510, %v1398
      %v1519 = vmul.f32 %v1511, %v1399
      %v1520 = vmul.f32 %v1512, %v1400
      %v1521 = vmul.f32 %v1513, %v1401
      %v1522 = vmul.f32 %v1514, %v1402
      %v1523 = vmul.f32 %v1515, 1.442695
      %v1524 = vpow.pop %v1523
      %v1525 = vmul.f32 %v1516, 1.442695
      %v1526 = vpow.pop %v1525
      %v1527 = vmul.f32 %v1517, 1.442695
      %v1528 = vpow.pop %v1527
      %v1529 = vmul.f32 %v1518, 1.442695
      %v1530 = vpow.pop %v1529
      %v1531 = vmul.f32 %v1519, 1.442695
      %v1532 = vpow.pop %v1531
      %v1533 = vmul.f32 %v1520, 1.442695
      %v1534 = vpow.pop %v1533
      %v1535 = vmul.f32 %v1521, 1.442695
      %v1536 = vpow.pop %v1535
      %v1537 = vmul.f32 %v1522, 1.442695
      %v1538 = vpow.pop %v1537
      %v1539 = vmul.f32 %v1499, %v1524
      %v1540 = vmul.f32 %v1500, %v1526
      %v1541 = vmul.f32 %v1501, %v1528
      %v1542 = vmul.f32 %v1502, %v1530
      %v1543 = vmul.f32 %v1503, %v1532
      %v1544 = vmul.f32 %v1504, %v1534
      %v1545 = vmul.f32 %v1505, %v1536
      %v1546 = vmul.f32 %v1506, %v1538
      %v1547 = vsub.f32 1.0, %v1539
      %v1548 = vsub.f32 1.0, %v1540
      %v1549 = vsub.f32 1.0, %v1541
      %v1550 = vsub.f32 1.0, %v1542
      %v1551 = vsub.f32 1.0, %v1543
      %v1552 = vsub.f32 1.0, %v1544
      %v1553 = vsub.f32 1.0, %v1545
      %v1554 = vsub.f32 1.0, %v1546
      %v1555 = vmul.f32 %v1387, %v1547
      %v1556 = vmul.f32 %v1388, %v1548
      %v1557 = vmul.f32 %v1389, %v1549
      %v1558 = vmul.f32 %v1390, %v1550
      %v1559 = vmul.f32 %v1391, %v1551
      %v1560 = vmul.f32 %v1392, %v1552
      %v1561 = vmul.f32 %v1393, %v1553
      %v1562 = vmul.f32 %v1394, %v1554
      %v1563 = vadd.f32 %v1555, 1.0
      %v1564 = vadd.f32 %v1556, 1.0
      %v1565 = vadd.f32 %v1557, 1.0
      %v1566 = vadd.f32 %v1558, 1.0
      %v1567 = vadd.f32 %v1559, 1.0
      %v1568 = vadd.f32 %v1560, 1.0
      %v1569 = vadd.f32 %v1561, 1.0
      %v1570 = vadd.f32 %v1562, 1.0
      %v1571 = vmul.f32 %v1363, %v1563
      %v1572 = vmul.f32 %v1364, %v1564
      %v1573 = vmul.f32 %v1365, %v1565
      %v1574 = vmul.f32 %v1366, %v1566
      %v1575 = vmul.f32 %v1367, %v1567
      %v1576 = vmul.f32 %v1368, %v1568
      %v1577 = vmul.f32 %v1369, %v1569
      %v1578 = vmul.f32 %v1370, %v1570
      %1580 = vset.pattern.permute.xlu0 32
      %1581 = vperm.xlu0 %1580, %v159
      %v1582 = vpop.permute.xlu0 %1581
      %1585 = vset.pattern.permute.xlu0 32
      %1586 = vperm.xlu0 %1585, %v160
      %v1587 = vpop.permute.xlu0 %1586
      %v1589 = vsel %vm731, %v159, 0
      %v1591 = vsel %vm731, %v160, 0
      %1593 = vmatprep.subr.mxu0 %v1572
      %1594 = vmatpush1.msra.mxu0 %v1571
      %1595 = vmatprep.subr.mxu0 %v1574
      %1596 = vmatpush1.msra.mxu0 %v1573
      %1597 = vmatprep.subr.mxu0 %v1576
      %1598 = vmatpush1.msra.mxu0 %v1575
      %1599 = vmatprep.subr.mxu0 %v1578
      %1600 = vmatpush1.msra.mxu0 %v1577
      %1601 = vmatprep.subr.mxu0 0.0
      %1602 = vmatpush1.msra.mxu0 0.0
      %1603 = vmatprep.subr.mxu0 0.0
      %1604 = vmatpush1.msra.mxu0 0.0
      %1605 = vmatprep.subr.mxu0 0.0
      %1606 = vmatpush1.msra.mxu0 0.0
      %1607 = vmatprep.subr.mxu0 0.0
      %1608 = vmatpush1.msra.mxu0 0.0
      %1609 = vmatprep.subr.mxu0 0.0
      %1610 = vmatpush1.msra.mxu0 0.0
      %1611 = vmatprep.subr.mxu0 0.0
      %1612 = vmatpush1.msra.mxu0 0.0
      %1613 = vmatprep.subr.mxu0 0.0
      %1614 = vmatpush1.msra.mxu0 0.0
      %1615 = vmatprep.subr.mxu0 0.0
      %1616 = vmatpush1.msra.mxu0 0.0
      %1617 = vmatprep.subr.mxu0 0.0
      %1618 = vmatpush1.msra.mxu0 0.0
      %1619 = vmatprep.subr.mxu0 0.0
      %1620 = vmatpush1.msra.mxu0 0.0
      %1621 = vmatprep.subr.mxu0 0.0
      %1622 = vmatpush1.msra.mxu0 0.0
      %1623 = vmatprep.subr.mxu0 0.0
      %1624 = vmatpush1.msra.mxu0 0.0
      %1625 = vmatprep.subr.mxu0 0.0
      %1626 = vmatpush1.msra.mxu0 0.0
      %1627 = vmatprep.subr.mxu0 0.0
      %1628 = vmatpush1.msra.mxu0 0.0
      %1629 = vmatprep.subr.mxu0 0.0
      %1630 = vmatpush1.msra.mxu0 0.0
      %1631 = vmatprep.subr.mxu0 0.0
      %1632 = vmatpush1.msra.mxu0 0.0
      %1633 = vmatprep.subr.mxu0 0.0
      %1634 = vmatpush1.msra.mxu0 0.0
      %1635 = vmatprep.subr.mxu0 0.0
      %1636 = vmatpush1.msra.mxu0 0.0
      %1637 = vmatprep.subr.mxu0 0.0
      %1638 = vmatpush1.msra.mxu0 0.0
      %1639 = vmatprep.subr.mxu0 0.0
      %1640 = vmatpush1.msra.mxu0 0.0
      %1641 = vmatprep.subr.mxu0 0.0
      %1642 = vmatpush1.msra.mxu0 0.0
      %1643 = vmatprep.subr.mxu0 0.0
      %1644 = vmatpush1.msra.mxu0 0.0
      %1645 = vmatprep.subr.mxu0 0.0
      %1646 = vmatpush1.msra.mxu0 0.0
      %1647 = vmatprep.subr.mxu0 0.0
      %1648 = vmatpush1.msra.mxu0 0.0
      %1649 = vmatprep.subr.mxu0 0.0
      %1650 = vmatpush1.msra.mxu0 0.0
      %1651 = vmatprep.subr.mxu0 0.0
      %1652 = vmatpush1.msra.mxu0 0.0
      %1653 = vmatprep.subr.mxu0 0.0
      %1654 = vmatpush1.msra.mxu0 0.0
      %1655 = vmatprep.subr.mxu0 0.0
      %1656 = vmatpush1.msra.mxu0 0.0
      %1657 = vmatprep.mubr.f32.mxu0 0.0
      %1658 = vmatmul.mubr.f32.gmra.mrb[0].mxu0 %v1589
      %v1659 = vpop.f32.mrb[0].mxu0
      %v1660 = vadd.f32 %v1582, %v1659
      %v1661 = vpop.f32.mrb[0].mxu0
      %v1662 = vadd.f32 %v1582, %v1661
      %1663 = vmatprep.mubr.f32.mxu0 0.0
      %1664 = vmatmul.mubr.f32.gmra.mrb[0].mxu0 %v1591
      %v1665 = vpop.f32.mrb[0].mxu0
      %v1666 = vadd.f32 %v1587, %v1665
      %v1667 = vpop.f32.mrb[0].mxu0
      %v1668 = vadd.f32 %v1587, %v1667
      %1669 = vdwg.mxu0
      %v1670 = vadd.f32 %v1660, %v1662
      %1671 = vadd.xlane.f32.xlu0 %v1670
      %v1672 = vpop.xlane.xlu0 %1671
      %v1673 = vadd.f32 %v1666, %v1668
      %1674 = vadd.xlane.f32.xlu0 %v1673
      %v1675 = vpop.xlane.xlu0 %1674
      %v1676 = vmul.f32 %v1672, 0.00390625
      %v1677 = vmul.f32 %v1675, 0.00390625
      %vm1680 = vcmask 1040384
      %v1681 = vrot.slane %v1676, 7
      %v1682 = vrot.slane %v1677, 7
      %v1683 = vsel %vm1680, %v1681, %v1682
      %v1687 = vsel %vm1680, 0.0, %v1681
      %v1688 = vsel %vm1680, %v1682, 0.0
      %v1689 = vlaneseq
      %v1690 = vshrl.u32 %v1689, 7
      %v1691 = vsub.s32 0, %v1690
      %v1692 = vrot.slane %v163, %v1691
      %v1693 = vmul.f32 %v1692, %v1687
      %v1694 = vmul.f32 %v1692, %v1683
      %v1695 = vadd.f32 %v1693, 0.0
      %v1696 = vadd.f32 %v1694, 0.0
      %vm1699 = vcmask 1046528
      %v1700 = vrot.slane %v1687, 1
      %v1701 = vrot.slane %v1683, 1
      %v1702 = vsel %vm1699, %v1700, %v1701
      %v1703 = vrot.slane %v1688, 1
      %v1704 = vsel %vm1699, %v1701, %v1703
      %1705 = vrot.lane.b32.xlu0 %v1702, 1
      %v1706 = vpop.permute.xlu0 %1705
      %1707 = vrot.lane.b32.xlu0 %v1704, 1
      %v1708 = vpop.permute.xlu0 %1707
      %v1711 = vmul.f32 %v1692, %v1706
      %v1712 = vmul.f32 %v1692, %v1708
      %1715 = vrot.lane.b32.xlu0 %v1711, 127
      %v1716 = vpop.permute.xlu0 %1715
      %1717 = vrot.lane.b32.xlu0 %v1712, 127
      %v1718 = vpop.permute.xlu0 %1717
      %v1721 = vadd.f32 %v1695, %v1716
      %v1722 = vadd.f32 %v1696, %v1718
      %vm1723 = vcmask 1045504
      %v1724 = vrot.slane %v1687, 2
      %v1725 = vrot.slane %v1683, 2
      %v1726 = vsel %vm1723, %v1724, %v1725
      %v1727 = vrot.slane %v1688, 2
      %v1728 = vsel %vm1723, %v1725, %v1727
      %1729 = vrot.lane.b32.xlu0 %v1726, 2
      %v1730 = vpop.permute.xlu0 %1729
      %1731 = vrot.lane.b32.xlu0 %v1728, 2
      %v1732 = vpop.permute.xlu0 %1731
      %v1735 = vmul.f32 %v1692, %v1730
      %v1736 = vmul.f32 %v1692, %v1732
      %1739 = vrot.lane.b32.xlu0 %v1735, 126
      %v1740 = vpop.permute.xlu0 %1739
      %1741 = vrot.lane.b32.xlu0 %v1736, 126
      %v1742 = vpop.permute.xlu0 %1741
      %v1745 = vadd.f32 %v1721, %v1740
      %v1746 = vadd.f32 %v1722, %v1742
      %v1747 = vxor.u32 %v1745, 2147483648
      %v1748 = vxor.u32 %v1746, 2147483648
      %v1749 = vmul.f32 %v1747, 1.442695
      %v1750 = vpow.pop %v1749
      %v1751 = vmul.f32 %v1748, 1.442695
      %v1752 = vpow.pop %v1751
      %v1753 = vadd.f32 %v1750, 1.0
      %v1754 = vadd.f32 %v1752, 1.0
      %v1755 = vrcp.pop %v1753
      %v1756 = vmul.f32 1.0, %v1755
      %v1757 = vrcp.pop %v1754
      %v1758 = vmul.f32 1.0, %v1757
      %1760 = vset.pattern.permute.xlu0 0
      %1761 = vperm.xlu0 %1760, %v161
      %v1762 = vpop.permute.xlu0 %1761
      %1765 = vset.pattern.permute.xlu0 0
      %1766 = vperm.xlu0 %1765, %v162
      %v1767 = vpop.permute.xlu0 %1766
      %v1769 = vmul.f32 %v1762, 0.0
      %v1770 = vmul.f32 %v1660, %v1762
      %v1771 = vmul.f32 %v1662, %v1762
      %v1772 = vmul.f32 %v1767, 0.0
      %v1773 = vmul.f32 %v1666, %v1767
      %v1774 = vmul.f32 %v1668, %v1767
      %v1775 = vadd.f32 %v1769, 0.0
      %v1776 = vadd.f32 %v1770, 0.0
      %v1777 = vadd.f32 %v1771, 0.0
      %v1778 = vadd.f32 %v1772, 0.0
      %v1779 = vadd.f32 %v1773, 0.0
      %v1780 = vadd.f32 %v1774, 0.0
      %1781 = vset.pattern.permute.xlu0 7
      %1782 = vperm.xlu0 %1781, %v161
      %v1783 = vpop.permute.xlu0 %1782
      %1785 = vset.pattern.permute.xlu0 7
      %1786 = vperm.xlu0 %1785, %v162
      %v1787 = vpop.permute.xlu0 %1786
      %v1789 = vmul.f32 %v1783, 0.0
      %v1790 = vmul.f32 %v1660, %v1783
      %v1791 = vmul.f32 %v1662, %v1783
      %v1792 = vmul.f32 %v1787, 0.0
      %v1793 = vmul.f32 %v1666, %v1787
      %v1794 = vmul.f32 %v1668, %v1787
      %1801 = vrot.lane.b32.xlu0 %v1789, 112
      %v1802 = vpop.permute.xlu0 %1801
      %1803 = vrot.lane.b32.xlu0 %v1790, 112
      %v1804 = vpop.permute.xlu0 %1803
      %1805 = vrot.lane.b32.xlu0 %v1791, 112
      %v1806 = vpop.permute.xlu0 %1805
      %1807 = vrot.lane.b32.xlu0 %v1792, 112
      %v1808 = vpop.permute.xlu0 %1807
      %1809 = vrot.lane.b32.xlu0 %v1793, 112
      %v1810 = vpop.permute.xlu0 %1809
      %1811 = vrot.lane.b32.xlu0 %v1794, 112
      %v1812 = vpop.permute.xlu0 %1811
      %v1813 = vsel %vm232, %v1802, %v1804
      %v1814 = vsel %vm232, %v1804, %v1806
      %v1815 = vsel %vm232, %v1808, %v1810
      %v1816 = vsel %vm232, %v1810, %v1812
      %v1823 = vadd.f32 %v1775, %v1813
      %v1824 = vadd.f32 %v1776, %v1814
      %v1825 = vadd.f32 %v1777, %v1806
      %v1826 = vadd.f32 %v1778, %v1815
      %v1827 = vadd.f32 %v1779, %v1816
      %v1828 = vadd.f32 %v1780, %v1812
      %1829 = vset.pattern.permute.xlu0 14
      %1830 = vperm.xlu0 %1829, %v161
      %v1831 = vpop.permute.xlu0 %1830
      %1833 = vset.pattern.permute.xlu0 14
      %1834 = vperm.xlu0 %1833, %v162
      %v1835 = vpop.permute.xlu0 %1834
      %v1837 = vmul.f32 %v1831, 0.0
      %v1838 = vmul.f32 %v1660, %v1831
      %v1839 = vmul.f32 %v1662, %v1831
      %v1840 = vmul.f32 %v1835, 0.0
      %v1841 = vmul.f32 %v1666, %v1835
      %v1842 = vmul.f32 %v1668, %v1835
      %1849 = vrot.lane.b32.xlu0 %v1837, 96
      %v1850 = vpop.permute.xlu0 %1849
      %1851 = vrot.lane.b32.xlu0 %v1838, 96
      %v1852 = vpop.permute.xlu0 %1851
      %1853 = vrot.lane.b32.xlu0 %v1839, 96
      %v1854 = vpop.permute.xlu0 %1853
      %1855 = vrot.lane.b32.xlu0 %v1840, 96
      %v1856 = vpop.permute.xlu0 %1855
      %1857 = vrot.lane.b32.xlu0 %v1841, 96
      %v1858 = vpop.permute.xlu0 %1857
      %1859 = vrot.lane.b32.xlu0 %v1842, 96
      %v1860 = vpop.permute.xlu0 %1859
      %v1861 = vsel %vm257, %v1850, %v1852
      %v1862 = vsel %vm257, %v1852, %v1854
      %v1863 = vsel %vm257, %v1856, %v1858
      %v1864 = vsel %vm257, %v1858, %v1860
      %v1871 = vadd.f32 %v1823, %v1861
      %v1872 = vadd.f32 %v1824, %v1862
      %v1873 = vadd.f32 %v1825, %v1854
      %v1874 = vadd.f32 %v1826, %v1863
      %v1875 = vadd.f32 %v1827, %v1864
      %v1876 = vadd.f32 %v1828, %v1860
      %1877 = vset.pattern.permute.xlu0 21
      %1878 = vperm.xlu0 %1877, %v161
      %v1879 = vpop.permute.xlu0 %1878
      %1881 = vset.pattern.permute.xlu0 21
      %1882 = vperm.xlu0 %1881, %v162
      %v1883 = vpop.permute.xlu0 %1882
      %v1885 = vmul.f32 %v1879, 0.0
      %v1886 = vmul.f32 %v1660, %v1879
      %v1887 = vmul.f32 %v1662, %v1879
      %v1888 = vmul.f32 %v1883, 0.0
      %v1889 = vmul.f32 %v1666, %v1883
      %v1890 = vmul.f32 %v1668, %v1883
      %1897 = vrot.lane.b32.xlu0 %v1885, 80
      %v1898 = vpop.permute.xlu0 %1897
      %1899 = vrot.lane.b32.xlu0 %v1886, 80
      %v1900 = vpop.permute.xlu0 %1899
      %1901 = vrot.lane.b32.xlu0 %v1887, 80
      %v1902 = vpop.permute.xlu0 %1901
      %1903 = vrot.lane.b32.xlu0 %v1888, 80
      %v1904 = vpop.permute.xlu0 %1903
      %1905 = vrot.lane.b32.xlu0 %v1889, 80
      %v1906 = vpop.permute.xlu0 %1905
      %1907 = vrot.lane.b32.xlu0 %v1890, 80
      %v1908 = vpop.permute.xlu0 %1907
      %v1909 = vsel %vm706, %v1898, %v1900
      %v1910 = vsel %vm706, %v1900, %v1902
      %v1911 = vsel %vm706, %v1904, %v1906
      %v1912 = vsel %vm706, %v1906, %v1908
      %v1919 = vadd.f32 %v1871, %v1909
      %v1920 = vadd.f32 %v1872, %v1910
      %v1921 = vadd.f32 %v1873, %v1902
      %v1922 = vadd.f32 %v1874, %v1911
      %v1923 = vadd.f32 %v1875, %v1912
      %v1924 = vadd.f32 %v1876, %v1908
      %1925 = vset.pattern.permute.xlu0 28
      %1926 = vperm.xlu0 %1925, %v161
      %v1927 = vpop.permute.xlu0 %1926
      %1929 = vset.pattern.permute.xlu0 28
      %1930 = vperm.xlu0 %1929, %v162
      %v1931 = vpop.permute.xlu0 %1930
      %v1933 = vmul.f32 %v1660, %v1927
      %v1934 = vmul.f32 %v1662, %v1927
      %v1935 = vmul.f32 %v1927, 0.0
      %v1936 = vmul.f32 %v1666, %v1931
      %v1937 = vmul.f32 %v1668, %v1931
      %v1938 = vmul.f32 %v1931, 0.0
      %1945 = vrot.lane.b32.xlu0 %v1933, 64
      %v1946 = vpop.permute.xlu0 %1945
      %1947 = vrot.lane.b32.xlu0 %v1934, 64
      %v1948 = vpop.permute.xlu0 %1947
      %1949 = vrot.lane.b32.xlu0 %v1935, 64
      %v1950 = vpop.permute.xlu0 %1949
      %1951 = vrot.lane.b32.xlu0 %v1936, 64
      %v1952 = vpop.permute.xlu0 %1951
      %1953 = vrot.lane.b32.xlu0 %v1937, 64
      %v1954 = vpop.permute.xlu0 %1953
      %1955 = vrot.lane.b32.xlu0 %v1938, 64
      %v1956 = vpop.permute.xlu0 %1955
      %v1957 = vsel %vm494, %v1946, %v1948
      %v1958 = vsel %vm494, %v1948, %v1950
      %v1959 = vsel %vm494, %v1952, %v1954
      %v1960 = vsel %vm494, %v1954, %v1956
      %v1967 = vadd.f32 %v1919, %v1946
      %v1968 = vadd.f32 %v1920, %v1957
      %v1969 = vadd.f32 %v1921, %v1958
      %v1970 = vadd.f32 %v1922, %v1952
      %v1971 = vadd.f32 %v1923, %v1959
      %v1972 = vadd.f32 %v1924, %v1960
      %1973 = vset.pattern.permute.xlu0 35
      %1974 = vperm.xlu0 %1973, %v161
      %v1975 = vpop.permute.xlu0 %1974
      %1977 = vset.pattern.permute.xlu0 35
      %1978 = vperm.xlu0 %1977, %v162
      %v1979 = vpop.permute.xlu0 %1978
      %v1981 = vmul.f32 %v1660, %v1975
      %v1982 = vmul.f32 %v1662, %v1975
      %v1983 = vmul.f32 %v1975, 0.0
      %v1984 = vmul.f32 %v1666, %v1979
      %v1985 = vmul.f32 %v1668, %v1979
      %v1986 = vmul.f32 %v1979, 0.0
      %1993 = vrot.lane.b32.xlu0 %v1981, 48
      %v1994 = vpop.permute.xlu0 %1993
      %1995 = vrot.lane.b32.xlu0 %v1982, 48
      %v1996 = vpop.permute.xlu0 %1995
      %1997 = vrot.lane.b32.xlu0 %v1983, 48
      %v1998 = vpop.permute.xlu0 %1997
      %1999 = vrot.lane.b32.xlu0 %v1984, 48
      %v2000 = vpop.permute.xlu0 %1999
      %2001 = vrot.lane.b32.xlu0 %v1985, 48
      %v2002 = vpop.permute.xlu0 %2001
      %2003 = vrot.lane.b32.xlu0 %v1986, 48
      %v2004 = vpop.permute.xlu0 %2003
      %v2005 = vsel %vm1265, %v1994, %v1996
      %v2006 = vsel %vm1265, %v1996, %v1998
      %v2007 = vsel %vm1265, %v2000, %v2002
      %v2008 = vsel %vm1265, %v2002, %v2004
      %v2015 = vadd.f32 %v1967, %v1994
      %v2016 = vadd.f32 %v1968, %v2005
      %v2017 = vadd.f32 %v1969, %v2006
      %v2018 = vadd.f32 %v1970, %v2000
      %v2019 = vadd.f32 %v1971, %v2007
      %v2020 = vadd.f32 %v1972, %v2008
      %2021 = vset.pattern.permute.xlu0 42
      %2022 = vperm.xlu0 %2021, %v161
      %v2023 = vpop.permute.xlu0 %2022
      %2025 = vset.pattern.permute.xlu0 42
      %2026 = vperm.xlu0 %2025, %v162
      %v2027 = vpop.permute.xlu0 %2026
      %v2029 = vmul.f32 %v1660, %v2023
      %v2030 = vmul.f32 %v1662, %v2023
      %v2031 = vmul.f32 %v2023, 0.0
      %v2032 = vmul.f32 %v1666, %v2027
      %v2033 = vmul.f32 %v1668, %v2027
      %v2034 = vmul.f32 %v2027, 0.0
      %2041 = vrot.lane.b32.xlu0 %v2029, 32
      %v2042 = vpop.permute.xlu0 %2041
      %2043 = vrot.lane.b32.xlu0 %v2030, 32
      %v2044 = vpop.permute.xlu0 %2043
      %2045 = vrot.lane.b32.xlu0 %v2031, 32
      %v2046 = vpop.permute.xlu0 %2045
      %2047 = vrot.lane.b32.xlu0 %v2032, 32
      %v2048 = vpop.permute.xlu0 %2047
      %2049 = vrot.lane.b32.xlu0 %v2033, 32
      %v2050 = vpop.permute.xlu0 %2049
      %2051 = vrot.lane.b32.xlu0 %v2034, 32
      %v2052 = vpop.permute.xlu0 %2051
      %v2053 = vsel %vm731, %v2042, %v2044
      %v2054 = vsel %vm731, %v2044, %v2046
      %v2055 = vsel %vm731, %v2048, %v2050
      %v2056 = vsel %vm731, %v2050, %v2052
      %v2063 = vadd.f32 %v2015, %v2042
      %v2064 = vadd.f32 %v2016, %v2053
      %v2065 = vadd.f32 %v2017, %v2054
      %v2066 = vadd.f32 %v2018, %v2048
      %v2067 = vadd.f32 %v2019, %v2055
      %v2068 = vadd.f32 %v2020, %v2056
      %v2069 = vmul.f32 %v2063, %v743
      %v2070 = vmul.f32 %v2064, %v747
      %v2071 = vmul.f32 %v2065, %v745
      %v2072 = vmul.f32 %v2066, %v743
      %v2073 = vmul.f32 %v2067, %v747
      %v2074 = vmul.f32 %v2068, %v745
      %v2075 = vadd.f32 %v2069, 0.0
      %v2076 = vadd.f32 %v2070, 0.0
      %v2077 = vadd.f32 %v2071, 0.0
      %v2078 = vadd.f32 %v2072, 0.0
      %v2079 = vadd.f32 %v2073, 0.0
      %v2080 = vadd.f32 %v2074, 0.0
      %2081 = vset.pattern.permute.xlu0 1
      %2082 = vperm.xlu0 %2081, %v161
      %v2083 = vpop.permute.xlu0 %2082
      %2085 = vset.pattern.permute.xlu0 1
      %2086 = vperm.xlu0 %2085, %v162
      %v2087 = vpop.permute.xlu0 %2086
      %v2089 = vmul.f32 %v2083, 0.0
      %v2090 = vmul.f32 %v1660, %v2083
      %v2091 = vmul.f32 %v1662, %v2083
      %v2092 = vmul.f32 %v2087, 0.0
      %v2093 = vmul.f32 %v1666, %v2087
      %v2094 = vmul.f32 %v1668, %v2087
      %v2095 = vadd.f32 %v2089, 0.0
      %v2096 = vadd.f32 %v2090, 0.0
      %v2097 = vadd.f32 %v2091, 0.0
      %v2098 = vadd.f32 %v2092, 0.0
      %v2099 = vadd.f32 %v2093, 0.0
      %v2100 = vadd.f32 %v2094, 0.0
      %2101 = vset.pattern.permute.xlu0 8
      %2102 = vperm.xlu0 %2101, %v161
      %v2103 = vpop.permute.xlu0 %2102
      %2105 = vset.pattern.permute.xlu0 8
      %2106 = vperm.xlu0 %2105, %v162
      %v2107 = vpop.permute.xlu0 %2106
      %v2109 = vmul.f32 %v2103, 0.0
      %v2110 = vmul.f32 %v1660, %v2103
      %v2111 = vmul.f32 %v1662, %v2103
      %v2112 = vmul.f32 %v2107, 0.0
      %v2113 = vmul.f32 %v1666, %v2107
      %v2114 = vmul.f32 %v1668, %v2107
      %2121 = vrot.lane.b32.xlu0 %v2109, 112
      %v2122 = vpop.permute.xlu0 %2121
      %2123 = vrot.lane.b32.xlu0 %v2110, 112
      %v2124 = vpop.permute.xlu0 %2123
      %2125 = vrot.lane.b32.xlu0 %v2111, 112
      %v2126 = vpop.permute.xlu0 %2125
      %2127 = vrot.lane.b32.xlu0 %v2112, 112
      %v2128 = vpop.permute.xlu0 %2127
      %2129 = vrot.lane.b32.xlu0 %v2113, 112
      %v2130 = vpop.permute.xlu0 %2129
      %2131 = vrot.lane.b32.xlu0 %v2114, 112
      %v2132 = vpop.permute.xlu0 %2131
      %v2133 = vsel %vm232, %v2122, %v2124
      %v2134 = vsel %vm232, %v2124, %v2126
      %v2135 = vsel %vm232, %v2128, %v2130
      %v2136 = vsel %vm232, %v2130, %v2132
      %v2143 = vadd.f32 %v2095, %v2133
      %v2144 = vadd.f32 %v2096, %v2134
      %v2145 = vadd.f32 %v2097, %v2126
      %v2146 = vadd.f32 %v2098, %v2135
      %v2147 = vadd.f32 %v2099, %v2136
      %v2148 = vadd.f32 %v2100, %v2132
      %2149 = vset.pattern.permute.xlu0 15
      %2150 = vperm.xlu0 %2149, %v161
      %v2151 = vpop.permute.xlu0 %2150
      %2153 = vset.pattern.permute.xlu0 15
      %2154 = vperm.xlu0 %2153, %v162
      %v2155 = vpop.permute.xlu0 %2154
      %v2157 = vmul.f32 %v2151, 0.0
      %v2158 = vmul.f32 %v1660, %v2151
      %v2159 = vmul.f32 %v1662, %v2151
      %v2160 = vmul.f32 %v2155, 0.0
      %v2161 = vmul.f32 %v1666, %v2155
      %v2162 = vmul.f32 %v1668, %v2155
      %2169 = vrot.lane.b32.xlu0 %v2157, 96
      %v2170 = vpop.permute.xlu0 %2169
      %2171 = vrot.lane.b32.xlu0 %v2158, 96
      %v2172 = vpop.permute.xlu0 %2171
      %2173 = vrot.lane.b32.xlu0 %v2159, 96
      %v2174 = vpop.permute.xlu0 %2173
      %2175 = vrot.lane.b32.xlu0 %v2160, 96
      %v2176 = vpop.permute.xlu0 %2175
      %2177 = vrot.lane.b32.xlu0 %v2161, 96
      %v2178 = vpop.permute.xlu0 %2177
      %2179 = vrot.lane.b32.xlu0 %v2162, 96
      %v2180 = vpop.permute.xlu0 %2179
      %v2181 = vsel %vm257, %v2170, %v2172
      %v2182 = vsel %vm257, %v2172, %v2174
      %v2183 = vsel %vm257, %v2176, %v2178
      %v2184 = vsel %vm257, %v2178, %v2180
      %v2191 = vadd.f32 %v2143, %v2181
      %v2192 = vadd.f32 %v2144, %v2182
      %v2193 = vadd.f32 %v2145, %v2174
      %v2194 = vadd.f32 %v2146, %v2183
      %v2195 = vadd.f32 %v2147, %v2184
      %v2196 = vadd.f32 %v2148, %v2180
      %2197 = vset.pattern.permute.xlu0 22
      %2198 = vperm.xlu0 %2197, %v161
      %v2199 = vpop.permute.xlu0 %2198
      %2201 = vset.pattern.permute.xlu0 22
      %2202 = vperm.xlu0 %2201, %v162
      %v2203 = vpop.permute.xlu0 %2202
      %v2205 = vmul.f32 %v2199, 0.0
      %v2206 = vmul.f32 %v1660, %v2199
      %v2207 = vmul.f32 %v1662, %v2199
      %v2208 = vmul.f32 %v2203, 0.0
      %v2209 = vmul.f32 %v1666, %v2203
      %v2210 = vmul.f32 %v1668, %v2203
      %2217 = vrot.lane.b32.xlu0 %v2205, 80
      %v2218 = vpop.permute.xlu0 %2217
      %2219 = vrot.lane.b32.xlu0 %v2206, 80
      %v2220 = vpop.permute.xlu0 %2219
      %2221 = vrot.lane.b32.xlu0 %v2207, 80
      %v2222 = vpop.permute.xlu0 %2221
      %2223 = vrot.lane.b32.xlu0 %v2208, 80
      %v2224 = vpop.permute.xlu0 %2223
      %2225 = vrot.lane.b32.xlu0 %v2209, 80
      %v2226 = vpop.permute.xlu0 %2225
      %2227 = vrot.lane.b32.xlu0 %v2210, 80
      %v2228 = vpop.permute.xlu0 %2227
      %v2229 = vsel %vm706, %v2218, %v2220
      %v2230 = vsel %vm706, %v2220, %v2222
      %v2231 = vsel %vm706, %v2224, %v2226
      %v2232 = vsel %vm706, %v2226, %v2228
      %v2239 = vadd.f32 %v2191, %v2229
      %v2240 = vadd.f32 %v2192, %v2230
      %v2241 = vadd.f32 %v2193, %v2222
      %v2242 = vadd.f32 %v2194, %v2231
      %v2243 = vadd.f32 %v2195, %v2232
      %v2244 = vadd.f32 %v2196, %v2228
      %2245 = vset.pattern.permute.xlu0 29
      %2246 = vperm.xlu0 %2245, %v161
      %v2247 = vpop.permute.xlu0 %2246
      %2249 = vset.pattern.permute.xlu0 29
      %2250 = vperm.xlu0 %2249, %v162
      %v2251 = vpop.permute.xlu0 %2250
      %v2253 = vmul.f32 %v1660, %v2247
      %v2254 = vmul.f32 %v1662, %v2247
      %v2255 = vmul.f32 %v2247, 0.0
      %v2256 = vmul.f32 %v1666, %v2251
      %v2257 = vmul.f32 %v1668, %v2251
      %v2258 = vmul.f32 %v2251, 0.0
      %2265 = vrot.lane.b32.xlu0 %v2253, 64
      %v2266 = vpop.permute.xlu0 %2265
      %2267 = vrot.lane.b32.xlu0 %v2254, 64
      %v2268 = vpop.permute.xlu0 %2267
      %2269 = vrot.lane.b32.xlu0 %v2255, 64
      %v2270 = vpop.permute.xlu0 %2269
      %2271 = vrot.lane.b32.xlu0 %v2256, 64
      %v2272 = vpop.permute.xlu0 %2271
      %2273 = vrot.lane.b32.xlu0 %v2257, 64
      %v2274 = vpop.permute.xlu0 %2273
      %2275 = vrot.lane.b32.xlu0 %v2258, 64
      %v2276 = vpop.permute.xlu0 %2275
      %v2277 = vsel %vm494, %v2266, %v2268
      %v2278 = vsel %vm494, %v2268, %v2270
      %v2279 = vsel %vm494, %v2272, %v2274
      %v2280 = vsel %vm494, %v2274, %v2276
      %v2287 = vadd.f32 %v2239, %v2266
      %v2288 = vadd.f32 %v2240, %v2277
      %v2289 = vadd.f32 %v2241, %v2278
      %v2290 = vadd.f32 %v2242, %v2272
      %v2291 = vadd.f32 %v2243, %v2279
      %v2292 = vadd.f32 %v2244, %v2280
      %2293 = vset.pattern.permute.xlu0 36
      %2294 = vperm.xlu0 %2293, %v161
      %v2295 = vpop.permute.xlu0 %2294
      %2297 = vset.pattern.permute.xlu0 36
      %2298 = vperm.xlu0 %2297, %v162
      %v2299 = vpop.permute.xlu0 %2298
      %v2301 = vmul.f32 %v1660, %v2295
      %v2302 = vmul.f32 %v1662, %v2295
      %v2303 = vmul.f32 %v2295, 0.0
      %v2304 = vmul.f32 %v1666, %v2299
      %v2305 = vmul.f32 %v1668, %v2299
      %v2306 = vmul.f32 %v2299, 0.0
      %2313 = vrot.lane.b32.xlu0 %v2301, 48
      %v2314 = vpop.permute.xlu0 %2313
      %2315 = vrot.lane.b32.xlu0 %v2302, 48
      %v2316 = vpop.permute.xlu0 %2315
      %2317 = vrot.lane.b32.xlu0 %v2303, 48
      %v2318 = vpop.permute.xlu0 %2317
      %2319 = vrot.lane.b32.xlu0 %v2304, 48
      %v2320 = vpop.permute.xlu0 %2319
      %2321 = vrot.lane.b32.xlu0 %v2305, 48
      %v2322 = vpop.permute.xlu0 %2321
      %2323 = vrot.lane.b32.xlu0 %v2306, 48
      %v2324 = vpop.permute.xlu0 %2323
      %v2325 = vsel %vm1265, %v2314, %v2316
      %v2326 = vsel %vm1265, %v2316, %v2318
      %v2327 = vsel %vm1265, %v2320, %v2322
      %v2328 = vsel %vm1265, %v2322, %v2324
      %v2335 = vadd.f32 %v2287, %v2314
      %v2336 = vadd.f32 %v2288, %v2325
      %v2337 = vadd.f32 %v2289, %v2326
      %v2338 = vadd.f32 %v2290, %v2320
      %v2339 = vadd.f32 %v2291, %v2327
      %v2340 = vadd.f32 %v2292, %v2328
      %2341 = vset.pattern.permute.xlu0 43
      %2342 = vperm.xlu0 %2341, %v161
      %v2343 = vpop.permute.xlu0 %2342
      %2345 = vset.pattern.permute.xlu0 43
      %2346 = vperm.xlu0 %2345, %v162
      %v2347 = vpop.permute.xlu0 %2346
      %v2349 = vmul.f32 %v1660, %v2343
      %v2350 = vmul.f32 %v1662, %v2343
      %v2351 = vmul.f32 %v2343, 0.0
      %v2352 = vmul.f32 %v1666, %v2347
      %v2353 = vmul.f32 %v1668, %v2347
      %v2354 = vmul.f32 %v2347, 0.0
      %2361 = vrot.lane.b32.xlu0 %v2349, 32
      %v2362 = vpop.permute.xlu0 %2361
      %2363 = vrot.lane.b32.xlu0 %v2350, 32
      %v2364 = vpop.permute.xlu0 %2363
      %2365 = vrot.lane.b32.xlu0 %v2351, 32
      %v2366 = vpop.permute.xlu0 %2365
      %2367 = vrot.lane.b32.xlu0 %v2352, 32
      %v2368 = vpop.permute.xlu0 %2367
      %2369 = vrot.lane.b32.xlu0 %v2353, 32
      %v2370 = vpop.permute.xlu0 %2369
      %2371 = vrot.lane.b32.xlu0 %v2354, 32
      %v2372 = vpop.permute.xlu0 %2371
      %v2373 = vsel %vm731, %v2362, %v2364
      %v2374 = vsel %vm731, %v2364, %v2366
      %v2375 = vsel %vm731, %v2368, %v2370
      %v2376 = vsel %vm731, %v2370, %v2372
      %v2383 = vadd.f32 %v2335, %v2362
      %v2384 = vadd.f32 %v2336, %v2373
      %v2385 = vadd.f32 %v2337, %v2374
      %v2386 = vadd.f32 %v2338, %v2368
      %v2387 = vadd.f32 %v2339, %v2375
      %v2388 = vadd.f32 %v2340, %v2376
      %2389 = vrot.lane.b32.xlu0 %v191, 78
      %v2390 = vpop.permute.xlu0 %2389
      %2391 = vrot.lane.b32.xlu0 %v192, 78
      %v2392 = vpop.permute.xlu0 %2391
      %vm2393 = vcmask 637952
      %v2394 = vsel %vm2393, %v2390, %v2392
      %v2398 = vmul.f32 %v2383, %v2390
      %v2399 = vmul.f32 %v2384, %v2394
      %v2400 = vmul.f32 %v2385, %v2392
      %v2401 = vmul.f32 %v2386, %v2390
      %v2402 = vmul.f32 %v2387, %v2394
      %v2403 = vmul.f32 %v2388, %v2392
      %2410 = vrot.lane.b32.xlu0 %v2398, 127
      %v2411 = vpop.permute.xlu0 %2410
      %2412 = vrot.lane.b32.xlu0 %v2399, 127
      %v2413 = vpop.permute.xlu0 %2412
      %2414 = vrot.lane.b32.xlu0 %v2400, 127
      %v2415 = vpop.permute.xlu0 %2414
      %2416 = vrot.lane.b32.xlu0 %v2401, 127
      %v2417 = vpop.permute.xlu0 %2416
      %2418 = vrot.lane.b32.xlu0 %v2402, 127
      %v2419 = vpop.permute.xlu0 %2418
      %2420 = vrot.lane.b32.xlu0 %v2403, 127
      %v2421 = vpop.permute.xlu0 %2420
      %v2422 = vsel %vm345, %v2411, %v2413
      %v2423 = vsel %vm345, %v2413, %v2415
      %v2424 = vsel %vm345, %v2417, %v2419
      %v2425 = vsel %vm345, %v2419, %v2421
      %v2432 = vadd.f32 %v2075, %v2422
      %v2433 = vadd.f32 %v2076, %v2423
      %v2434 = vadd.f32 %v2077, %v2415
      %v2435 = vadd.f32 %v2078, %v2424
      %v2436 = vadd.f32 %v2079, %v2425
      %v2437 = vadd.f32 %v2080, %v2421
      %2438 = vset.pattern.permute.xlu0 2
      %2439 = vperm.xlu0 %2438, %v161
      %v2440 = vpop.permute.xlu0 %2439
      %2442 = vset.pattern.permute.xlu0 2
      %2443 = vperm.xlu0 %2442, %v162
      %v2444 = vpop.permute.xlu0 %2443
      %v2446 = vmul.f32 %v2440, 0.0
      %v2447 = vmul.f32 %v1660, %v2440
      %v2448 = vmul.f32 %v1662, %v2440
      %v2449 = vmul.f32 %v2444, 0.0
      %v2450 = vmul.f32 %v1666, %v2444
      %v2451 = vmul.f32 %v1668, %v2444
      %v2452 = vadd.f32 %v2446, 0.0
      %v2453 = vadd.f32 %v2447, 0.0
      %v2454 = vadd.f32 %v2448, 0.0
      %v2455 = vadd.f32 %v2449, 0.0
      %v2456 = vadd.f32 %v2450, 0.0
      %v2457 = vadd.f32 %v2451, 0.0
      %2458 = vset.pattern.permute.xlu0 9
      %2459 = vperm.xlu0 %2458, %v161
      %v2460 = vpop.permute.xlu0 %2459
      %2462 = vset.pattern.permute.xlu0 9
      %2463 = vperm.xlu0 %2462, %v162
      %v2464 = vpop.permute.xlu0 %2463
      %v2466 = vmul.f32 %v2460, 0.0
      %v2467 = vmul.f32 %v1660, %v2460
      %v2468 = vmul.f32 %v1662, %v2460
      %v2469 = vmul.f32 %v2464, 0.0
      %v2470 = vmul.f32 %v1666, %v2464
      %v2471 = vmul.f32 %v1668, %v2464
      %2478 = vrot.lane.b32.xlu0 %v2466, 112
      %v2479 = vpop.permute.xlu0 %2478
      %2480 = vrot.lane.b32.xlu0 %v2467, 112
      %v2481 = vpop.permute.xlu0 %2480
      %2482 = vrot.lane.b32.xlu0 %v2468, 112
      %v2483 = vpop.permute.xlu0 %2482
      %2484 = vrot.lane.b32.xlu0 %v2469, 112
      %v2485 = vpop.permute.xlu0 %2484
      %2486 = vrot.lane.b32.xlu0 %v2470, 112
      %v2487 = vpop.permute.xlu0 %2486
      %2488 = vrot.lane.b32.xlu0 %v2471, 112
      %v2489 = vpop.permute.xlu0 %2488
      %v2490 = vsel %vm232, %v2479, %v2481
      %v2491 = vsel %vm232, %v2481, %v2483
      %v2492 = vsel %vm232, %v2485, %v2487
      %v2493 = vsel %vm232, %v2487, %v2489
      %v2500 = vadd.f32 %v2452, %v2490
      %v2501 = vadd.f32 %v2453, %v2491
      %v2502 = vadd.f32 %v2454, %v2483
      %v2503 = vadd.f32 %v2455, %v2492
      %v2504 = vadd.f32 %v2456, %v2493
      %v2505 = vadd.f32 %v2457, %v2489
      %2506 = vset.pattern.permute.xlu0 16
      %2507 = vperm.xlu0 %2506, %v161
      %v2508 = vpop.permute.xlu0 %2507
      %2510 = vset.pattern.permute.xlu0 16
      %2511 = vperm.xlu0 %2510, %v162
      %v2512 = vpop.permute.xlu0 %2511
      %v2514 = vmul.f32 %v2508, 0.0
      %v2515 = vmul.f32 %v1660, %v2508
      %v2516 = vmul.f32 %v1662, %v2508
      %v2517 = vmul.f32 %v2512, 0.0
      %v2518 = vmul.f32 %v1666, %v2512
      %v2519 = vmul.f32 %v1668, %v2512
      %2526 = vrot.lane.b32.xlu0 %v2514, 96
      %v2527 = vpop.permute.xlu0 %2526
      %2528 = vrot.lane.b32.xlu0 %v2515, 96
      %v2529 = vpop.permute.xlu0 %2528
      %2530 = vrot.lane.b32.xlu0 %v2516, 96
      %v2531 = vpop.permute.xlu0 %2530
      %2532 = vrot.lane.b32.xlu0 %v2517, 96
      %v2533 = vpop.permute.xlu0 %2532
      %2534 = vrot.lane.b32.xlu0 %v2518, 96
      %v2535 = vpop.permute.xlu0 %2534
      %2536 = vrot.lane.b32.xlu0 %v2519, 96
      %v2537 = vpop.permute.xlu0 %2536
      %v2538 = vsel %vm257, %v2527, %v2529
      %v2539 = vsel %vm257, %v2529, %v2531
      %v2540 = vsel %vm257, %v2533, %v2535
      %v2541 = vsel %vm257, %v2535, %v2537
      %v2548 = vadd.f32 %v2500, %v2538
      %v2549 = vadd.f32 %v2501, %v2539
      %v2550 = vadd.f32 %v2502, %v2531
      %v2551 = vadd.f32 %v2503, %v2540
      %v2552 = vadd.f32 %v2504, %v2541
      %v2553 = vadd.f32 %v2505, %v2537
      %2554 = vset.pattern.permute.xlu0 23
      %2555 = vperm.xlu0 %2554, %v161
      %v2556 = vpop.permute.xlu0 %2555
      %2558 = vset.pattern.permute.xlu0 23
      %2559 = vperm.xlu0 %2558, %v162
      %v2560 = vpop.permute.xlu0 %2559
      %v2562 = vmul.f32 %v2556, 0.0
      %v2563 = vmul.f32 %v1660, %v2556
      %v2564 = vmul.f32 %v1662, %v2556
      %v2565 = vmul.f32 %v2560, 0.0
      %v2566 = vmul.f32 %v1666, %v2560
      %v2567 = vmul.f32 %v1668, %v2560
      %2574 = vrot.lane.b32.xlu0 %v2562, 80
      %v2575 = vpop.permute.xlu0 %2574
      %2576 = vrot.lane.b32.xlu0 %v2563, 80
      %v2577 = vpop.permute.xlu0 %2576
      %2578 = vrot.lane.b32.xlu0 %v2564, 80
      %v2579 = vpop.permute.xlu0 %2578
      %2580 = vrot.lane.b32.xlu0 %v2565, 80
      %v2581 = vpop.permute.xlu0 %2580
      %2582 = vrot.lane.b32.xlu0 %v2566, 80
      %v2583 = vpop.permute.xlu0 %2582
      %2584 = vrot.lane.b32.xlu0 %v2567, 80
      %v2585 = vpop.permute.xlu0 %2584
      %v2586 = vsel %vm706, %v2575, %v2577
      %v2587 = vsel %vm706, %v2577, %v2579
      %v2588 = vsel %vm706, %v2581, %v2583
      %v2589 = vsel %vm706, %v2583, %v2585
      %v2596 = vadd.f32 %v2548, %v2586
      %v2597 = vadd.f32 %v2549, %v2587
      %v2598 = vadd.f32 %v2550, %v2579
      %v2599 = vadd.f32 %v2551, %v2588
      %v2600 = vadd.f32 %v2552, %v2589
      %v2601 = vadd.f32 %v2553, %v2585
      %2602 = vset.pattern.permute.xlu0 30
      %2603 = vperm.xlu0 %2602, %v161
      %v2604 = vpop.permute.xlu0 %2603
      %2606 = vset.pattern.permute.xlu0 30
      %2607 = vperm.xlu0 %2606, %v162
      %v2608 = vpop.permute.xlu0 %2607
      %v2610 = vmul.f32 %v1660, %v2604
      %v2611 = vmul.f32 %v1662, %v2604
      %v2612 = vmul.f32 %v2604, 0.0
      %v2613 = vmul.f32 %v1666, %v2608
      %v2614 = vmul.f32 %v1668, %v2608
      %v2615 = vmul.f32 %v2608, 0.0
      %2622 = vrot.lane.b32.xlu0 %v2610, 64
      %v2623 = vpop.permute.xlu0 %2622
      %2624 = vrot.lane.b32.xlu0 %v2611, 64
      %v2625 = vpop.permute.xlu0 %2624
      %2626 = vrot.lane.b32.xlu0 %v2612, 64
      %v2627 = vpop.permute.xlu0 %2626
      %2628 = vrot.lane.b32.xlu0 %v2613, 64
      %v2629 = vpop.permute.xlu0 %2628
      %2630 = vrot.lane.b32.xlu0 %v2614, 64
      %v2631 = vpop.permute.xlu0 %2630
      %2632 = vrot.lane.b32.xlu0 %v2615, 64
      %v2633 = vpop.permute.xlu0 %2632
      %v2634 = vsel %vm494, %v2623, %v2625
      %v2635 = vsel %vm494, %v2625, %v2627
      %v2636 = vsel %vm494, %v2629, %v2631
      %v2637 = vsel %vm494, %v2631, %v2633
      %v2644 = vadd.f32 %v2596, %v2623
      %v2645 = vadd.f32 %v2597, %v2634
      %v2646 = vadd.f32 %v2598, %v2635
      %v2647 = vadd.f32 %v2599, %v2629
      %v2648 = vadd.f32 %v2600, %v2636
      %v2649 = vadd.f32 %v2601, %v2637
      %2650 = vset.pattern.permute.xlu0 37
      %2651 = vperm.xlu0 %2650, %v161
      %v2652 = vpop.permute.xlu0 %2651
      %2654 = vset.pattern.permute.xlu0 37
      %2655 = vperm.xlu0 %2654, %v162
      %v2656 = vpop.permute.xlu0 %2655
      %v2658 = vmul.f32 %v1660, %v2652
      %v2659 = vmul.f32 %v1662, %v2652
      %v2660 = vmul.f32 %v2652, 0.0
      %v2661 = vmul.f32 %v1666, %v2656
      %v2662 = vmul.f32 %v1668, %v2656
      %v2663 = vmul.f32 %v2656, 0.0
      %2670 = vrot.lane.b32.xlu0 %v2658, 48
      %v2671 = vpop.permute.xlu0 %2670
      %2672 = vrot.lane.b32.xlu0 %v2659, 48
      %v2673 = vpop.permute.xlu0 %2672
      %2674 = vrot.lane.b32.xlu0 %v2660, 48
      %v2675 = vpop.permute.xlu0 %2674
      %2676 = vrot.lane.b32.xlu0 %v2661, 48
      %v2677 = vpop.permute.xlu0 %2676
      %2678 = vrot.lane.b32.xlu0 %v2662, 48
      %v2679 = vpop.permute.xlu0 %2678
      %2680 = vrot.lane.b32.xlu0 %v2663, 48
      %v2681 = vpop.permute.xlu0 %2680
      %v2682 = vsel %vm1265, %v2671, %v2673
      %v2683 = vsel %vm1265, %v2673, %v2675
      %v2684 = vsel %vm1265, %v2677, %v2679
      %v2685 = vsel %vm1265, %v2679, %v2681
      %v2692 = vadd.f32 %v2644, %v2671
      %v2693 = vadd.f32 %v2645, %v2682
      %v2694 = vadd.f32 %v2646, %v2683
      %v2695 = vadd.f32 %v2647, %v2677
      %v2696 = vadd.f32 %v2648, %v2684
      %v2697 = vadd.f32 %v2649, %v2685
      %2698 = vset.pattern.permute.xlu0 44
      %2699 = vperm.xlu0 %2698, %v161
      %v2700 = vpop.permute.xlu0 %2699
      %2702 = vset.pattern.permute.xlu0 44
      %2703 = vperm.xlu0 %2702, %v162
      %v2704 = vpop.permute.xlu0 %2703
      %v2706 = vmul.f32 %v1660, %v2700
      %v2707 = vmul.f32 %v1662, %v2700
      %v2708 = vmul.f32 %v2700, 0.0
      %v2709 = vmul.f32 %v1666, %v2704
      %v2710 = vmul.f32 %v1668, %v2704
      %v2711 = vmul.f32 %v2704, 0.0
      %2718 = vrot.lane.b32.xlu0 %v2706, 32
      %v2719 = vpop.permute.xlu0 %2718
      %2720 = vrot.lane.b32.xlu0 %v2707, 32
      %v2721 = vpop.permute.xlu0 %2720
      %2722 = vrot.lane.b32.xlu0 %v2708, 32
      %v2723 = vpop.permute.xlu0 %2722
      %2724 = vrot.lane.b32.xlu0 %v2709, 32
      %v2725 = vpop.permute.xlu0 %2724
      %2726 = vrot.lane.b32.xlu0 %v2710, 32
      %v2727 = vpop.permute.xlu0 %2726
      %2728 = vrot.lane.b32.xlu0 %v2711, 32
      %v2729 = vpop.permute.xlu0 %2728
      %v2730 = vsel %vm731, %v2719, %v2721
      %v2731 = vsel %vm731, %v2721, %v2723
      %v2732 = vsel %vm731, %v2725, %v2727
      %v2733 = vsel %vm731, %v2727, %v2729
      %v2740 = vadd.f32 %v2692, %v2719
      %v2741 = vadd.f32 %v2693, %v2730
      %v2742 = vadd.f32 %v2694, %v2731
      %v2743 = vadd.f32 %v2695, %v2725
      %v2744 = vadd.f32 %v2696, %v2732
      %v2745 = vadd.f32 %v2697, %v2733
      %2746 = vrot.lane.b32.xlu0 %v179, 79
      %v2747 = vpop.permute.xlu0 %2746
      %2748 = vrot.lane.b32.xlu0 %v180, 79
      %v2749 = vpop.permute.xlu0 %2748
      %vm2750 = vcmask 646144
      %v2751 = vsel %vm2750, %v2747, %v2749
      %v2755 = vmul.f32 %v2740, %v2747
      %v2756 = vmul.f32 %v2741, %v2751
      %v2757 = vmul.f32 %v2742, %v2749
      %v2758 = vmul.f32 %v2743, %v2747
      %v2759 = vmul.f32 %v2744, %v2751
      %v2760 = vmul.f32 %v2745, %v2749
      %2767 = vrot.lane.b32.xlu0 %v2755, 126
      %v2768 = vpop.permute.xlu0 %2767
      %2769 = vrot.lane.b32.xlu0 %v2756, 126
      %v2770 = vpop.permute.xlu0 %2769
      %2771 = vrot.lane.b32.xlu0 %v2757, 126
      %v2772 = vpop.permute.xlu0 %2771
      %2773 = vrot.lane.b32.xlu0 %v2758, 126
      %v2774 = vpop.permute.xlu0 %2773
      %2775 = vrot.lane.b32.xlu0 %v2759, 126
      %v2776 = vpop.permute.xlu0 %2775
      %2777 = vrot.lane.b32.xlu0 %v2760, 126
      %v2778 = vpop.permute.xlu0 %2777
      %v2779 = vsel %vm435, %v2768, %v2770
      %v2780 = vsel %vm435, %v2770, %v2772
      %v2781 = vsel %vm435, %v2774, %v2776
      %v2782 = vsel %vm435, %v2776, %v2778
      %v2789 = vadd.f32 %v2432, %v2779
      %v2790 = vadd.f32 %v2433, %v2780
      %v2791 = vadd.f32 %v2434, %v2772
      %v2792 = vadd.f32 %v2435, %v2781
      %v2793 = vadd.f32 %v2436, %v2782
      %v2794 = vadd.f32 %v2437, %v2778
      %2795 = vset.pattern.permute.xlu0 3
      %2796 = vperm.xlu0 %2795, %v161
      %v2797 = vpop.permute.xlu0 %2796
      %2799 = vset.pattern.permute.xlu0 3
      %2800 = vperm.xlu0 %2799, %v162
      %v2801 = vpop.permute.xlu0 %2800
      %v2803 = vmul.f32 %v2797, 0.0
      %v2804 = vmul.f32 %v1660, %v2797
      %v2805 = vmul.f32 %v1662, %v2797
      %v2806 = vmul.f32 %v2801, 0.0
      %v2807 = vmul.f32 %v1666, %v2801
      %v2808 = vmul.f32 %v1668, %v2801
      %v2809 = vadd.f32 %v2803, 0.0
      %v2810 = vadd.f32 %v2804, 0.0
      %v2811 = vadd.f32 %v2805, 0.0
      %v2812 = vadd.f32 %v2806, 0.0
      %v2813 = vadd.f32 %v2807, 0.0
      %v2814 = vadd.f32 %v2808, 0.0
      %2815 = vset.pattern.permute.xlu0 10
      %2816 = vperm.xlu0 %2815, %v161
      %v2817 = vpop.permute.xlu0 %2816
      %2819 = vset.pattern.permute.xlu0 10
      %2820 = vperm.xlu0 %2819, %v162
      %v2821 = vpop.permute.xlu0 %2820
      %v2823 = vmul.f32 %v2817, 0.0
      %v2824 = vmul.f32 %v1660, %v2817
      %v2825 = vmul.f32 %v1662, %v2817
      %v2826 = vmul.f32 %v2821, 0.0
      %v2827 = vmul.f32 %v1666, %v2821
      %v2828 = vmul.f32 %v1668, %v2821
      %2835 = vrot.lane.b32.xlu0 %v2823, 112
      %v2836 = vpop.permute.xlu0 %2835
      %2837 = vrot.lane.b32.xlu0 %v2824, 112
      %v2838 = vpop.permute.xlu0 %2837
      %2839 = vrot.lane.b32.xlu0 %v2825, 112
      %v2840 = vpop.permute.xlu0 %2839
      %2841 = vrot.lane.b32.xlu0 %v2826, 112
      %v2842 = vpop.permute.xlu0 %2841
      %2843 = vrot.lane.b32.xlu0 %v2827, 112
      %v2844 = vpop.permute.xlu0 %2843
      %2845 = vrot.lane.b32.xlu0 %v2828, 112
      %v2846 = vpop.permute.xlu0 %2845
      %v2847 = vsel %vm232, %v2836, %v2838
      %v2848 = vsel %vm232, %v2838, %v2840
      %v2849 = vsel %vm232, %v2842, %v2844
      %v2850 = vsel %vm232, %v2844, %v2846
      %v2857 = vadd.f32 %v2809, %v2847
      %v2858 = vadd.f32 %v2810, %v2848
      %v2859 = vadd.f32 %v2811, %v2840
      %v2860 = vadd.f32 %v2812, %v2849
      %v2861 = vadd.f32 %v2813, %v2850
      %v2862 = vadd.f32 %v2814, %v2846
      %2863 = vset.pattern.permute.xlu0 17
      %2864 = vperm.xlu0 %2863, %v161
      %v2865 = vpop.permute.xlu0 %2864
      %2867 = vset.pattern.permute.xlu0 17
      %2868 = vperm.xlu0 %2867, %v162
      %v2869 = vpop.permute.xlu0 %2868
      %v2871 = vmul.f32 %v2865, 0.0
      %v2872 = vmul.f32 %v1660, %v2865
      %v2873 = vmul.f32 %v1662, %v2865
      %v2874 = vmul.f32 %v2869, 0.0
      %v2875 = vmul.f32 %v1666, %v2869
      %v2876 = vmul.f32 %v1668, %v2869
      %2883 = vrot.lane.b32.xlu0 %v2871, 96
      %v2884 = vpop.permute.xlu0 %2883
      %2885 = vrot.lane.b32.xlu0 %v2872, 96
      %v2886 = vpop.permute.xlu0 %2885
      %2887 = vrot.lane.b32.xlu0 %v2873, 96
      %v2888 = vpop.permute.xlu0 %2887
      %2889 = vrot.lane.b32.xlu0 %v2874, 96
      %v2890 = vpop.permute.xlu0 %2889
      %2891 = vrot.lane.b32.xlu0 %v2875, 96
      %v2892 = vpop.permute.xlu0 %2891
      %2893 = vrot.lane.b32.xlu0 %v2876, 96
      %v2894 = vpop.permute.xlu0 %2893
      %v2895 = vsel %vm257, %v2884, %v2886
      %v2896 = vsel %vm257, %v2886, %v2888
      %v2897 = vsel %vm257, %v2890, %v2892
      %v2898 = vsel %vm257, %v2892, %v2894
      %v2905 = vadd.f32 %v2857, %v2895
      %v2906 = vadd.f32 %v2858, %v2896
      %v2907 = vadd.f32 %v2859, %v2888
      %v2908 = vadd.f32 %v2860, %v2897
      %v2909 = vadd.f32 %v2861, %v2898
      %v2910 = vadd.f32 %v2862, %v2894
      %2911 = vset.pattern.permute.xlu0 24
      %2912 = vperm.xlu0 %2911, %v161
      %v2913 = vpop.permute.xlu0 %2912
      %2915 = vset.pattern.permute.xlu0 24
      %2916 = vperm.xlu0 %2915, %v162
      %v2917 = vpop.permute.xlu0 %2916
      %v2919 = vmul.f32 %v1660, %v2913
      %v2920 = vmul.f32 %v1662, %v2913
      %v2921 = vmul.f32 %v1666, %v2917
      %v2922 = vmul.f32 %v1668, %v2917
      %2927 = vrot.lane.b32.xlu0 %v2919, 80
      %v2928 = vpop.permute.xlu0 %2927
      %2929 = vrot.lane.b32.xlu0 %v2920, 80
      %v2930 = vpop.permute.xlu0 %2929
      %2931 = vrot.lane.b32.xlu0 %v2921, 80
      %v2932 = vpop.permute.xlu0 %2931
      %2933 = vrot.lane.b32.xlu0 %v2922, 80
      %v2934 = vpop.permute.xlu0 %2933
      %v2935 = vsel %vm706, %v2928, %v2930
      %v2936 = vsel %vm706, %v2932, %v2934
      %v2943 = vadd.f32 %v2905, %v2928
      %v2944 = vadd.f32 %v2906, %v2935
      %v2945 = vadd.f32 %v2907, %v2930
      %v2946 = vadd.f32 %v2908, %v2932
      %v2947 = vadd.f32 %v2909, %v2936
      %v2948 = vadd.f32 %v2910, %v2934
      %2949 = vset.pattern.permute.xlu0 31
      %2950 = vperm.xlu0 %2949, %v161
      %v2951 = vpop.permute.xlu0 %2950
      %2953 = vset.pattern.permute.xlu0 31
      %2954 = vperm.xlu0 %2953, %v162
      %v2955 = vpop.permute.xlu0 %2954
      %v2957 = vmul.f32 %v1660, %v2951
      %v2958 = vmul.f32 %v1662, %v2951
      %v2959 = vmul.f32 %v2951, 0.0
      %v2960 = vmul.f32 %v1666, %v2955
      %v2961 = vmul.f32 %v1668, %v2955
      %v2962 = vmul.f32 %v2955, 0.0
      %2969 = vrot.lane.b32.xlu0 %v2957, 64
      %v2970 = vpop.permute.xlu0 %2969
      %2971 = vrot.lane.b32.xlu0 %v2958, 64
      %v2972 = vpop.permute.xlu0 %2971
      %2973 = vrot.lane.b32.xlu0 %v2959, 64
      %v2974 = vpop.permute.xlu0 %2973
      %2975 = vrot.lane.b32.xlu0 %v2960, 64
      %v2976 = vpop.permute.xlu0 %2975
      %2977 = vrot.lane.b32.xlu0 %v2961, 64
      %v2978 = vpop.permute.xlu0 %2977
      %2979 = vrot.lane.b32.xlu0 %v2962, 64
      %v2980 = vpop.permute.xlu0 %2979
      %v2981 = vsel %vm494, %v2970, %v2972
      %v2982 = vsel %vm494, %v2972, %v2974
      %v2983 = vsel %vm494, %v2976, %v2978
      %v2984 = vsel %vm494, %v2978, %v2980
      %v2991 = vadd.f32 %v2943, %v2970
      %v2992 = vadd.f32 %v2944, %v2981
      %v2993 = vadd.f32 %v2945, %v2982
      %v2994 = vadd.f32 %v2946, %v2976
      %v2995 = vadd.f32 %v2947, %v2983
      %v2996 = vadd.f32 %v2948, %v2984
      %2997 = vset.pattern.permute.xlu0 38
      %2998 = vperm.xlu0 %2997, %v161
      %v2999 = vpop.permute.xlu0 %2998
      %3001 = vset.pattern.permute.xlu0 38
      %3002 = vperm.xlu0 %3001, %v162
      %v3003 = vpop.permute.xlu0 %3002
      %v3005 = vmul.f32 %v1660, %v2999
      %v3006 = vmul.f32 %v1662, %v2999
      %v3007 = vmul.f32 %v2999, 0.0
      %v3008 = vmul.f32 %v1666, %v3003
      %v3009 = vmul.f32 %v1668, %v3003
      %v3010 = vmul.f32 %v3003, 0.0
      %3017 = vrot.lane.b32.xlu0 %v3005, 48
      %v3018 = vpop.permute.xlu0 %3017
      %3019 = vrot.lane.b32.xlu0 %v3006, 48
      %v3020 = vpop.permute.xlu0 %3019
      %3021 = vrot.lane.b32.xlu0 %v3007, 48
      %v3022 = vpop.permute.xlu0 %3021
      %3023 = vrot.lane.b32.xlu0 %v3008, 48
      %v3024 = vpop.permute.xlu0 %3023
      %3025 = vrot.lane.b32.xlu0 %v3009, 48
      %v3026 = vpop.permute.xlu0 %3025
      %3027 = vrot.lane.b32.xlu0 %v3010, 48
      %v3028 = vpop.permute.xlu0 %3027
      %v3029 = vsel %vm1265, %v3018, %v3020
      %v3030 = vsel %vm1265, %v3020, %v3022
      %v3031 = vsel %vm1265, %v3024, %v3026
      %v3032 = vsel %vm1265, %v3026, %v3028
      %v3039 = vadd.f32 %v2991, %v3018
      %v3040 = vadd.f32 %v2992, %v3029
      %v3041 = vadd.f32 %v2993, %v3030
      %v3042 = vadd.f32 %v2994, %v3024
      %v3043 = vadd.f32 %v2995, %v3031
      %v3044 = vadd.f32 %v2996, %v3032
      %3045 = vset.pattern.permute.xlu0 45
      %3046 = vperm.xlu0 %3045, %v161
      %v3047 = vpop.permute.xlu0 %3046
      %3049 = vset.pattern.permute.xlu0 45
      %3050 = vperm.xlu0 %3049, %v162
      %v3051 = vpop.permute.xlu0 %3050
      %v3053 = vmul.f32 %v1660, %v3047
      %v3054 = vmul.f32 %v1662, %v3047
      %v3055 = vmul.f32 %v3047, 0.0
      %v3056 = vmul.f32 %v1666, %v3051
      %v3057 = vmul.f32 %v1668, %v3051
      %v3058 = vmul.f32 %v3051, 0.0
      %3065 = vrot.lane.b32.xlu0 %v3053, 32
      %v3066 = vpop.permute.xlu0 %3065
      %3067 = vrot.lane.b32.xlu0 %v3054, 32
      %v3068 = vpop.permute.xlu0 %3067
      %3069 = vrot.lane.b32.xlu0 %v3055, 32
      %v3070 = vpop.permute.xlu0 %3069
      %3071 = vrot.lane.b32.xlu0 %v3056, 32
      %v3072 = vpop.permute.xlu0 %3071
      %3073 = vrot.lane.b32.xlu0 %v3057, 32
      %v3074 = vpop.permute.xlu0 %3073
      %3075 = vrot.lane.b32.xlu0 %v3058, 32
      %v3076 = vpop.permute.xlu0 %3075
      %v3077 = vsel %vm731, %v3066, %v3068
      %v3078 = vsel %vm731, %v3068, %v3070
      %v3079 = vsel %vm731, %v3072, %v3074
      %v3080 = vsel %vm731, %v3074, %v3076
      %v3087 = vadd.f32 %v3039, %v3066
      %v3088 = vadd.f32 %v3040, %v3077
      %v3089 = vadd.f32 %v3041, %v3078
      %v3090 = vadd.f32 %v3042, %v3072
      %v3091 = vadd.f32 %v3043, %v3079
      %v3092 = vadd.f32 %v3044, %v3080
      %3099 = vrot.lane.b32.xlu0 %v3087, 125
      %v3100 = vpop.permute.xlu0 %3099
      %3101 = vrot.lane.b32.xlu0 %v3088, 125
      %v3102 = vpop.permute.xlu0 %3101
      %3103 = vrot.lane.b32.xlu0 %v3089, 125
      %v3104 = vpop.permute.xlu0 %3103
      %3105 = vrot.lane.b32.xlu0 %v3090, 125
      %v3106 = vpop.permute.xlu0 %3105
      %3107 = vrot.lane.b32.xlu0 %v3091, 125
      %v3108 = vpop.permute.xlu0 %3107
      %3109 = vrot.lane.b32.xlu0 %v3092, 125
      %v3110 = vpop.permute.xlu0 %3109
      %v3111 = vsel %vm819, %v3100, %v3102
      %v3112 = vsel %vm819, %v3102, %v3104
      %v3113 = vsel %vm819, %v3106, %v3108
      %v3114 = vsel %vm819, %v3108, %v3110
      %v3121 = vadd.f32 %v2789, %v3111
      %v3122 = vadd.f32 %v2790, %v3112
      %v3123 = vadd.f32 %v2791, %v3104
      %v3124 = vadd.f32 %v2792, %v3113
      %v3125 = vadd.f32 %v2793, %v3114
      %v3126 = vadd.f32 %v2794, %v3110
      %3127 = vset.pattern.permute.xlu0 4
      %3128 = vperm.xlu0 %3127, %v161
      %v3129 = vpop.permute.xlu0 %3128
      %3131 = vset.pattern.permute.xlu0 4
      %3132 = vperm.xlu0 %3131, %v162
      %v3133 = vpop.permute.xlu0 %3132
      %v3135 = vmul.f32 %v3129, 0.0
      %v3136 = vmul.f32 %v1660, %v3129
      %v3137 = vmul.f32 %v1662, %v3129
      %v3138 = vmul.f32 %v3133, 0.0
      %v3139 = vmul.f32 %v1666, %v3133
      %v3140 = vmul.f32 %v1668, %v3133
      %v3141 = vadd.f32 %v3135, 0.0
      %v3142 = vadd.f32 %v3136, 0.0
      %v3143 = vadd.f32 %v3137, 0.0
      %v3144 = vadd.f32 %v3138, 0.0
      %v3145 = vadd.f32 %v3139, 0.0
      %v3146 = vadd.f32 %v3140, 0.0
      %3147 = vset.pattern.permute.xlu0 11
      %3148 = vperm.xlu0 %3147, %v161
      %v3149 = vpop.permute.xlu0 %3148
      %3151 = vset.pattern.permute.xlu0 11
      %3152 = vperm.xlu0 %3151, %v162
      %v3153 = vpop.permute.xlu0 %3152
      %v3155 = vmul.f32 %v3149, 0.0
      %v3156 = vmul.f32 %v1660, %v3149
      %v3157 = vmul.f32 %v1662, %v3149
      %v3158 = vmul.f32 %v3153, 0.0
      %v3159 = vmul.f32 %v1666, %v3153
      %v3160 = vmul.f32 %v1668, %v3153
      %3167 = vrot.lane.b32.xlu0 %v3155, 112
      %v3168 = vpop.permute.xlu0 %3167
      %3169 = vrot.lane.b32.xlu0 %v3156, 112
      %v3170 = vpop.permute.xlu0 %3169
      %3171 = vrot.lane.b32.xlu0 %v3157, 112
      %v3172 = vpop.permute.xlu0 %3171
      %3173 = vrot.lane.b32.xlu0 %v3158, 112
      %v3174 = vpop.permute.xlu0 %3173
      %3175 = vrot.lane.b32.xlu0 %v3159, 112
      %v3176 = vpop.permute.xlu0 %3175
      %3177 = vrot.lane.b32.xlu0 %v3160, 112
      %v3178 = vpop.permute.xlu0 %3177
      %v3179 = vsel %vm232, %v3168, %v3170
      %v3180 = vsel %vm232, %v3170, %v3172
      %v3181 = vsel %vm232, %v3174, %v3176
      %v3182 = vsel %vm232, %v3176, %v3178
      %v3189 = vadd.f32 %v3141, %v3179
      %v3190 = vadd.f32 %v3142, %v3180
      %v3191 = vadd.f32 %v3143, %v3172
      %v3192 = vadd.f32 %v3144, %v3181
      %v3193 = vadd.f32 %v3145, %v3182
      %v3194 = vadd.f32 %v3146, %v3178
      %3195 = vset.pattern.permute.xlu0 18
      %3196 = vperm.xlu0 %3195, %v161
      %v3197 = vpop.permute.xlu0 %3196
      %3199 = vset.pattern.permute.xlu0 18
      %3200 = vperm.xlu0 %3199, %v162
      %v3201 = vpop.permute.xlu0 %3200
      %v3203 = vmul.f32 %v3197, 0.0
      %v3204 = vmul.f32 %v1660, %v3197
      %v3205 = vmul.f32 %v1662, %v3197
      %v3206 = vmul.f32 %v3201, 0.0
      %v3207 = vmul.f32 %v1666, %v3201
      %v3208 = vmul.f32 %v1668, %v3201
      %3215 = vrot.lane.b32.xlu0 %v3203, 96
      %v3216 = vpop.permute.xlu0 %3215
      %3217 = vrot.lane.b32.xlu0 %v3204, 96
      %v3218 = vpop.permute.xlu0 %3217
      %3219 = vrot.lane.b32.xlu0 %v3205, 96
      %v3220 = vpop.permute.xlu0 %3219
      %3221 = vrot.lane.b32.xlu0 %v3206, 96
      %v3222 = vpop.permute.xlu0 %3221
      %3223 = vrot.lane.b32.xlu0 %v3207, 96
      %v3224 = vpop.permute.xlu0 %3223
      %3225 = vrot.lane.b32.xlu0 %v3208, 96
      %v3226 = vpop.permute.xlu0 %3225
      %v3227 = vsel %vm257, %v3216, %v3218
      %v3228 = vsel %vm257, %v3218, %v3220
      %v3229 = vsel %vm257, %v3222, %v3224
      %v3230 = vsel %vm257, %v3224, %v3226
      %v3237 = vadd.f32 %v3189, %v3227
      %v3238 = vadd.f32 %v3190, %v3228
      %v3239 = vadd.f32 %v3191, %v3220
      %v3240 = vadd.f32 %v3192, %v3229
      %v3241 = vadd.f32 %v3193, %v3230
      %v3242 = vadd.f32 %v3194, %v3226
      %3243 = vset.pattern.permute.xlu0 25
      %3244 = vperm.xlu0 %3243, %v161
      %v3245 = vpop.permute.xlu0 %3244
      %3247 = vset.pattern.permute.xlu0 25
      %3248 = vperm.xlu0 %3247, %v162
      %v3249 = vpop.permute.xlu0 %3248
      %v3251 = vmul.f32 %v1660, %v3245
      %v3252 = vmul.f32 %v1662, %v3245
      %v3253 = vmul.f32 %v3245, 0.0
      %v3254 = vmul.f32 %v1666, %v3249
      %v3255 = vmul.f32 %v1668, %v3249
      %v3256 = vmul.f32 %v3249, 0.0
      %3263 = vrot.lane.b32.xlu0 %v3251, 80
      %v3264 = vpop.permute.xlu0 %3263
      %3265 = vrot.lane.b32.xlu0 %v3252, 80
      %v3266 = vpop.permute.xlu0 %3265
      %3267 = vrot.lane.b32.xlu0 %v3253, 80
      %v3268 = vpop.permute.xlu0 %3267
      %3269 = vrot.lane.b32.xlu0 %v3254, 80
      %v3270 = vpop.permute.xlu0 %3269
      %3271 = vrot.lane.b32.xlu0 %v3255, 80
      %v3272 = vpop.permute.xlu0 %3271
      %3273 = vrot.lane.b32.xlu0 %v3256, 80
      %v3274 = vpop.permute.xlu0 %3273
      %v3275 = vsel %vm706, %v3264, %v3266
      %v3276 = vsel %vm706, %v3266, %v3268
      %v3277 = vsel %vm706, %v3270, %v3272
      %v3278 = vsel %vm706, %v3272, %v3274
      %v3285 = vadd.f32 %v3237, %v3264
      %v3286 = vadd.f32 %v3238, %v3275
      %v3287 = vadd.f32 %v3239, %v3276
      %v3288 = vadd.f32 %v3240, %v3270
      %v3289 = vadd.f32 %v3241, %v3277
      %v3290 = vadd.f32 %v3242, %v3278
      %3291 = vset.pattern.permute.xlu0 32
      %3292 = vperm.xlu0 %3291, %v161
      %v3293 = vpop.permute.xlu0 %3292
      %3295 = vset.pattern.permute.xlu0 32
      %3296 = vperm.xlu0 %3295, %v162
      %v3297 = vpop.permute.xlu0 %3296
      %v3299 = vmul.f32 %v1660, %v3293
      %v3300 = vmul.f32 %v1662, %v3293
      %v3301 = vmul.f32 %v3293, 0.0
      %v3302 = vmul.f32 %v1666, %v3297
      %v3303 = vmul.f32 %v1668, %v3297
      %v3304 = vmul.f32 %v3297, 0.0
      %3311 = vrot.lane.b32.xlu0 %v3299, 64
      %v3312 = vpop.permute.xlu0 %3311
      %3313 = vrot.lane.b32.xlu0 %v3300, 64
      %v3314 = vpop.permute.xlu0 %3313
      %3315 = vrot.lane.b32.xlu0 %v3301, 64
      %v3316 = vpop.permute.xlu0 %3315
      %3317 = vrot.lane.b32.xlu0 %v3302, 64
      %v3318 = vpop.permute.xlu0 %3317
      %3319 = vrot.lane.b32.xlu0 %v3303, 64
      %v3320 = vpop.permute.xlu0 %3319
      %3321 = vrot.lane.b32.xlu0 %v3304, 64
      %v3322 = vpop.permute.xlu0 %3321
      %v3323 = vsel %vm494, %v3312, %v3314
      %v3324 = vsel %vm494, %v3314, %v3316
      %v3325 = vsel %vm494, %v3318, %v3320
      %v3326 = vsel %vm494, %v3320, %v3322
      %v3333 = vadd.f32 %v3285, %v3312
      %v3334 = vadd.f32 %v3286, %v3323
      %v3335 = vadd.f32 %v3287, %v3324
      %v3336 = vadd.f32 %v3288, %v3318
      %v3337 = vadd.f32 %v3289, %v3325
      %v3338 = vadd.f32 %v3290, %v3326
      %3339 = vset.pattern.permute.xlu0 39
      %3340 = vperm.xlu0 %3339, %v161
      %v3341 = vpop.permute.xlu0 %3340
      %3343 = vset.pattern.permute.xlu0 39
      %3344 = vperm.xlu0 %3343, %v162
      %v3345 = vpop.permute.xlu0 %3344
      %v3347 = vmul.f32 %v1660, %v3341
      %v3348 = vmul.f32 %v1662, %v3341
      %v3349 = vmul.f32 %v3341, 0.0
      %v3350 = vmul.f32 %v1666, %v3345
      %v3351 = vmul.f32 %v1668, %v3345
      %v3352 = vmul.f32 %v3345, 0.0
      %3359 = vrot.lane.b32.xlu0 %v3347, 48
      %v3360 = vpop.permute.xlu0 %3359
      %3361 = vrot.lane.b32.xlu0 %v3348, 48
      %v3362 = vpop.permute.xlu0 %3361
      %3363 = vrot.lane.b32.xlu0 %v3349, 48
      %v3364 = vpop.permute.xlu0 %3363
      %3365 = vrot.lane.b32.xlu0 %v3350, 48
      %v3366 = vpop.permute.xlu0 %3365
      %3367 = vrot.lane.b32.xlu0 %v3351, 48
      %v3368 = vpop.permute.xlu0 %3367
      %3369 = vrot.lane.b32.xlu0 %v3352, 48
      %v3370 = vpop.permute.xlu0 %3369
      %v3371 = vsel %vm1265, %v3360, %v3362
      %v3372 = vsel %vm1265, %v3362, %v3364
      %v3373 = vsel %vm1265, %v3366, %v3368
      %v3374 = vsel %vm1265, %v3368, %v3370
      %v3381 = vadd.f32 %v3333, %v3360
      %v3382 = vadd.f32 %v3334, %v3371
      %v3383 = vadd.f32 %v3335, %v3372
      %v3384 = vadd.f32 %v3336, %v3366
      %v3385 = vadd.f32 %v3337, %v3373
      %v3386 = vadd.f32 %v3338, %v3374
      %3387 = vset.pattern.permute.xlu0 46
      %3388 = vperm.xlu0 %3387, %v161
      %v3389 = vpop.permute.xlu0 %3388
      %3391 = vset.pattern.permute.xlu0 46
      %3392 = vperm.xlu0 %3391, %v162
      %v3393 = vpop.permute.xlu0 %3392
      %v3395 = vmul.f32 %v1660, %v3389
      %v3396 = vmul.f32 %v1662, %v3389
      %v3397 = vmul.f32 %v3389, 0.0
      %v3398 = vmul.f32 %v1666, %v3393
      %v3399 = vmul.f32 %v1668, %v3393
      %v3400 = vmul.f32 %v3393, 0.0
      %3407 = vrot.lane.b32.xlu0 %v3395, 32
      %v3408 = vpop.permute.xlu0 %3407
      %3409 = vrot.lane.b32.xlu0 %v3396, 32
      %v3410 = vpop.permute.xlu0 %3409
      %3411 = vrot.lane.b32.xlu0 %v3397, 32
      %v3412 = vpop.permute.xlu0 %3411
      %3413 = vrot.lane.b32.xlu0 %v3398, 32
      %v3414 = vpop.permute.xlu0 %3413
      %3415 = vrot.lane.b32.xlu0 %v3399, 32
      %v3416 = vpop.permute.xlu0 %3415
      %3417 = vrot.lane.b32.xlu0 %v3400, 32
      %v3418 = vpop.permute.xlu0 %3417
      %v3419 = vsel %vm731, %v3408, %v3410
      %v3420 = vsel %vm731, %v3410, %v3412
      %v3421 = vsel %vm731, %v3414, %v3416
      %v3422 = vsel %vm731, %v3416, %v3418
      %v3429 = vadd.f32 %v3381, %v3408
      %v3430 = vadd.f32 %v3382, %v3419
      %v3431 = vadd.f32 %v3383, %v3420
      %v3432 = vadd.f32 %v3384, %v3414
      %v3433 = vadd.f32 %v3385, %v3421
      %v3434 = vadd.f32 %v3386, %v3422
      %3435 = vrot.lane.b32.xlu0 %v173, 81
      %v3436 = vpop.permute.xlu0 %3435
      %3437 = vrot.lane.b32.xlu0 %v174, 81
      %v3438 = vpop.permute.xlu0 %3437
      %vm3439 = vcmask 662528
      %v3440 = vsel %vm3439, %v3436, %v3438
      %v3444 = vmul.f32 %v3429, %v3436
      %v3445 = vmul.f32 %v3430, %v3440
      %v3446 = vmul.f32 %v3431, %v3438
      %v3447 = vmul.f32 %v3432, %v3436
      %v3448 = vmul.f32 %v3433, %v3440
      %v3449 = vmul.f32 %v3434, %v3438
      %3456 = vrot.lane.b32.xlu0 %v3444, 124
      %v3457 = vpop.permute.xlu0 %3456
      %3458 = vrot.lane.b32.xlu0 %v3445, 124
      %v3459 = vpop.permute.xlu0 %3458
      %3460 = vrot.lane.b32.xlu0 %v3446, 124
      %v3461 = vpop.permute.xlu0 %3460
      %3462 = vrot.lane.b32.xlu0 %v3447, 124
      %v3463 = vpop.permute.xlu0 %3462
      %3464 = vrot.lane.b32.xlu0 %v3448, 124
      %v3465 = vpop.permute.xlu0 %3464
      %3466 = vrot.lane.b32.xlu0 %v3449, 124
      %v3467 = vpop.permute.xlu0 %3466
      %v3468 = vsel %vm671, %v3457, %v3459
      %v3469 = vsel %vm671, %v3459, %v3461
      %v3470 = vsel %vm671, %v3463, %v3465
      %v3471 = vsel %vm671, %v3465, %v3467
      %v3478 = vadd.f32 %v3121, %v3468
      %v3479 = vadd.f32 %v3122, %v3469
      %v3480 = vadd.f32 %v3123, %v3461
      %v3481 = vadd.f32 %v3124, %v3470
      %v3482 = vadd.f32 %v3125, %v3471
      %v3483 = vadd.f32 %v3126, %v3467
      %3484 = vset.pattern.permute.xlu0 5
      %3485 = vperm.xlu0 %3484, %v161
      %v3486 = vpop.permute.xlu0 %3485
      %3488 = vset.pattern.permute.xlu0 5
      %3489 = vperm.xlu0 %3488, %v162
      %v3490 = vpop.permute.xlu0 %3489
      %v3492 = vmul.f32 %v3486, 0.0
      %v3493 = vmul.f32 %v1660, %v3486
      %v3494 = vmul.f32 %v1662, %v3486
      %v3495 = vmul.f32 %v3490, 0.0
      %v3496 = vmul.f32 %v1666, %v3490
      %v3497 = vmul.f32 %v1668, %v3490
      %v3498 = vadd.f32 %v3492, 0.0
      %v3499 = vadd.f32 %v3493, 0.0
      %v3500 = vadd.f32 %v3494, 0.0
      %v3501 = vadd.f32 %v3495, 0.0
      %v3502 = vadd.f32 %v3496, 0.0
      %v3503 = vadd.f32 %v3497, 0.0
      %3504 = vset.pattern.permute.xlu0 12
      %3505 = vperm.xlu0 %3504, %v161
      %v3506 = vpop.permute.xlu0 %3505
      %3508 = vset.pattern.permute.xlu0 12
      %3509 = vperm.xlu0 %3508, %v162
      %v3510 = vpop.permute.xlu0 %3509
      %v3512 = vmul.f32 %v3506, 0.0
      %v3513 = vmul.f32 %v1660, %v3506
      %v3514 = vmul.f32 %v1662, %v3506
      %v3515 = vmul.f32 %v3510, 0.0
      %v3516 = vmul.f32 %v1666, %v3510
      %v3517 = vmul.f32 %v1668, %v3510
      %3524 = vrot.lane.b32.xlu0 %v3512, 112
      %v3525 = vpop.permute.xlu0 %3524
      %3526 = vrot.lane.b32.xlu0 %v3513, 112
      %v3527 = vpop.permute.xlu0 %3526
      %3528 = vrot.lane.b32.xlu0 %v3514, 112
      %v3529 = vpop.permute.xlu0 %3528
      %3530 = vrot.lane.b32.xlu0 %v3515, 112
      %v3531 = vpop.permute.xlu0 %3530
      %3532 = vrot.lane.b32.xlu0 %v3516, 112
      %v3533 = vpop.permute.xlu0 %3532
      %3534 = vrot.lane.b32.xlu0 %v3517, 112
      %v3535 = vpop.permute.xlu0 %3534
      %v3536 = vsel %vm232, %v3525, %v3527
      %v3537 = vsel %vm232, %v3527, %v3529
      %v3538 = vsel %vm232, %v3531, %v3533
      %v3539 = vsel %vm232, %v3533, %v3535
      %v3546 = vadd.f32 %v3498, %v3536
      %v3547 = vadd.f32 %v3499, %v3537
      %v3548 = vadd.f32 %v3500, %v3529
      %v3549 = vadd.f32 %v3501, %v3538
      %v3550 = vadd.f32 %v3502, %v3539
      %v3551 = vadd.f32 %v3503, %v3535
      %3552 = vset.pattern.permute.xlu0 19
      %3553 = vperm.xlu0 %3552, %v161
      %v3554 = vpop.permute.xlu0 %3553
      %3556 = vset.pattern.permute.xlu0 19
      %3557 = vperm.xlu0 %3556, %v162
      %v3558 = vpop.permute.xlu0 %3557
      %v3560 = vmul.f32 %v3554, 0.0
      %v3561 = vmul.f32 %v1660, %v3554
      %v3562 = vmul.f32 %v1662, %v3554
      %v3563 = vmul.f32 %v3558, 0.0
      %v3564 = vmul.f32 %v1666, %v3558
      %v3565 = vmul.f32 %v1668, %v3558
      %3572 = vrot.lane.b32.xlu0 %v3560, 96
      %v3573 = vpop.permute.xlu0 %3572
      %3574 = vrot.lane.b32.xlu0 %v3561, 96
      %v3575 = vpop.permute.xlu0 %3574
      %3576 = vrot.lane.b32.xlu0 %v3562, 96
      %v3577 = vpop.permute.xlu0 %3576
      %3578 = vrot.lane.b32.xlu0 %v3563, 96
      %v3579 = vpop.permute.xlu0 %3578
      %3580 = vrot.lane.b32.xlu0 %v3564, 96
      %v3581 = vpop.permute.xlu0 %3580
      %3582 = vrot.lane.b32.xlu0 %v3565, 96
      %v3583 = vpop.permute.xlu0 %3582
      %v3584 = vsel %vm257, %v3573, %v3575
      %v3585 = vsel %vm257, %v3575, %v3577
      %v3586 = vsel %vm257, %v3579, %v3581
      %v3587 = vsel %vm257, %v3581, %v3583
      %v3594 = vadd.f32 %v3546, %v3584
      %v3595 = vadd.f32 %v3547, %v3585
      %v3596 = vadd.f32 %v3548, %v3577
      %v3597 = vadd.f32 %v3549, %v3586
      %v3598 = vadd.f32 %v3550, %v3587
      %v3599 = vadd.f32 %v3551, %v3583
      %3600 = vset.pattern.permute.xlu0 26
      %3601 = vperm.xlu0 %3600, %v161
      %v3602 = vpop.permute.xlu0 %3601
      %3604 = vset.pattern.permute.xlu0 26
      %3605 = vperm.xlu0 %3604, %v162
      %v3606 = vpop.permute.xlu0 %3605
      %v3608 = vmul.f32 %v1660, %v3602
      %v3609 = vmul.f32 %v1662, %v3602
      %v3610 = vmul.f32 %v3602, 0.0
      %v3611 = vmul.f32 %v1666, %v3606
      %v3612 = vmul.f32 %v1668, %v3606
      %v3613 = vmul.f32 %v3606, 0.0
      %3620 = vrot.lane.b32.xlu0 %v3608, 80
      %v3621 = vpop.permute.xlu0 %3620
      %3622 = vrot.lane.b32.xlu0 %v3609, 80
      %v3623 = vpop.permute.xlu0 %3622
      %3624 = vrot.lane.b32.xlu0 %v3610, 80
      %v3625 = vpop.permute.xlu0 %3624
      %3626 = vrot.lane.b32.xlu0 %v3611, 80
      %v3627 = vpop.permute.xlu0 %3626
      %3628 = vrot.lane.b32.xlu0 %v3612, 80
      %v3629 = vpop.permute.xlu0 %3628
      %3630 = vrot.lane.b32.xlu0 %v3613, 80
      %v3631 = vpop.permute.xlu0 %3630
      %v3632 = vsel %vm706, %v3621, %v3623
      %v3633 = vsel %vm706, %v3623, %v3625
      %v3634 = vsel %vm706, %v3627, %v3629
      %v3635 = vsel %vm706, %v3629, %v3631
      %v3642 = vadd.f32 %v3594, %v3621
      %v3643 = vadd.f32 %v3595, %v3632
      %v3644 = vadd.f32 %v3596, %v3633
      %v3645 = vadd.f32 %v3597, %v3627
      %v3646 = vadd.f32 %v3598, %v3634
      %v3647 = vadd.f32 %v3599, %v3635
      %3648 = vset.pattern.permute.xlu0 33
      %3649 = vperm.xlu0 %3648, %v161
      %v3650 = vpop.permute.xlu0 %3649
      %3652 = vset.pattern.permute.xlu0 33
      %3653 = vperm.xlu0 %3652, %v162
      %v3654 = vpop.permute.xlu0 %3653
      %v3656 = vmul.f32 %v1660, %v3650
      %v3657 = vmul.f32 %v1662, %v3650
      %v3658 = vmul.f32 %v3650, 0.0
      %v3659 = vmul.f32 %v1666, %v3654
      %v3660 = vmul.f32 %v1668, %v3654
      %v3661 = vmul.f32 %v3654, 0.0
      %3668 = vrot.lane.b32.xlu0 %v3656, 64
      %v3669 = vpop.permute.xlu0 %3668
      %3670 = vrot.lane.b32.xlu0 %v3657, 64
      %v3671 = vpop.permute.xlu0 %3670
      %3672 = vrot.lane.b32.xlu0 %v3658, 64
      %v3673 = vpop.permute.xlu0 %3672
      %3674 = vrot.lane.b32.xlu0 %v3659, 64
      %v3675 = vpop.permute.xlu0 %3674
      %3676 = vrot.lane.b32.xlu0 %v3660, 64
      %v3677 = vpop.permute.xlu0 %3676
      %3678 = vrot.lane.b32.xlu0 %v3661, 64
      %v3679 = vpop.permute.xlu0 %3678
      %v3680 = vsel %vm494, %v3669, %v3671
      %v3681 = vsel %vm494, %v3671, %v3673
      %v3682 = vsel %vm494, %v3675, %v3677
      %v3683 = vsel %vm494, %v3677, %v3679
      %v3690 = vadd.f32 %v3642, %v3669
      %v3691 = vadd.f32 %v3643, %v3680
      %v3692 = vadd.f32 %v3644, %v3681
      %v3693 = vadd.f32 %v3645, %v3675
      %v3694 = vadd.f32 %v3646, %v3682
      %v3695 = vadd.f32 %v3647, %v3683
      %3696 = vset.pattern.permute.xlu0 40
      %3697 = vperm.xlu0 %3696, %v161
      %v3698 = vpop.permute.xlu0 %3697
      %3700 = vset.pattern.permute.xlu0 40
      %3701 = vperm.xlu0 %3700, %v162
      %v3702 = vpop.permute.xlu0 %3701
      %v3704 = vmul.f32 %v1660, %v3698
      %v3705 = vmul.f32 %v1662, %v3698
      %v3706 = vmul.f32 %v3698, 0.0
      %v3707 = vmul.f32 %v1666, %v3702
      %v3708 = vmul.f32 %v1668, %v3702
      %v3709 = vmul.f32 %v3702, 0.0
      %3716 = vrot.lane.b32.xlu0 %v3704, 48
      %v3717 = vpop.permute.xlu0 %3716
      %3718 = vrot.lane.b32.xlu0 %v3705, 48
      %v3719 = vpop.permute.xlu0 %3718
      %3720 = vrot.lane.b32.xlu0 %v3706, 48
      %v3721 = vpop.permute.xlu0 %3720
      %3722 = vrot.lane.b32.xlu0 %v3707, 48
      %v3723 = vpop.permute.xlu0 %3722
      %3724 = vrot.lane.b32.xlu0 %v3708, 48
      %v3725 = vpop.permute.xlu0 %3724
      %3726 = vrot.lane.b32.xlu0 %v3709, 48
      %v3727 = vpop.permute.xlu0 %3726
      %v3728 = vsel %vm1265, %v3717, %v3719
      %v3729 = vsel %vm1265, %v3719, %v3721
      %v3730 = vsel %vm1265, %v3723, %v3725
      %v3731 = vsel %vm1265, %v3725, %v3727
      %v3738 = vadd.f32 %v3690, %v3717
      %v3739 = vadd.f32 %v3691, %v3728
      %v3740 = vadd.f32 %v3692, %v3729
      %v3741 = vadd.f32 %v3693, %v3723
      %v3742 = vadd.f32 %v3694, %v3730
      %v3743 = vadd.f32 %v3695, %v3731
      %3744 = vset.pattern.permute.xlu0 47
      %3745 = vperm.xlu0 %3744, %v161
      %v3746 = vpop.permute.xlu0 %3745
      %3748 = vset.pattern.permute.xlu0 47
      %3749 = vperm.xlu0 %3748, %v162
      %v3750 = vpop.permute.xlu0 %3749
      %v3752 = vmul.f32 %v1660, %v3746
      %v3753 = vmul.f32 %v1662, %v3746
      %v3754 = vmul.f32 %v3746, 0.0
      %v3755 = vmul.f32 %v1666, %v3750
      %v3756 = vmul.f32 %v1668, %v3750
      %v3757 = vmul.f32 %v3750, 0.0
      %3764 = vrot.lane.b32.xlu0 %v3752, 32
      %v3765 = vpop.permute.xlu0 %3764
      %3766 = vrot.lane.b32.xlu0 %v3753, 32
      %v3767 = vpop.permute.xlu0 %3766
      %3768 = vrot.lane.b32.xlu0 %v3754, 32
      %v3769 = vpop.permute.xlu0 %3768
      %3770 = vrot.lane.b32.xlu0 %v3755, 32
      %v3771 = vpop.permute.xlu0 %3770
      %3772 = vrot.lane.b32.xlu0 %v3756, 32
      %v3773 = vpop.permute.xlu0 %3772
      %3774 = vrot.lane.b32.xlu0 %v3757, 32
      %v3775 = vpop.permute.xlu0 %3774
      %v3776 = vsel %vm731, %v3765, %v3767
      %v3777 = vsel %vm731, %v3767, %v3769
      %v3778 = vsel %vm731, %v3771, %v3773
      %v3779 = vsel %vm731, %v3773, %v3775
      %v3786 = vadd.f32 %v3738, %v3765
      %v3787 = vadd.f32 %v3739, %v3776
      %v3788 = vadd.f32 %v3740, %v3777
      %v3789 = vadd.f32 %v3741, %v3771
      %v3790 = vadd.f32 %v3742, %v3778
      %v3791 = vadd.f32 %v3743, %v3779
      %3792 = vrot.lane.b32.xlu0 %v185, 82
      %v3793 = vpop.permute.xlu0 %3792
      %3794 = vrot.lane.b32.xlu0 %v186, 82
      %v3795 = vpop.permute.xlu0 %3794
      %vm3796 = vcmask 670720
      %v3797 = vsel %vm3796, %v3793, %v3795
      %v3801 = vmul.f32 %v3786, %v3793
      %v3802 = vmul.f32 %v3787, %v3797
      %v3803 = vmul.f32 %v3788, %v3795
      %v3804 = vmul.f32 %v3789, %v3793
      %v3805 = vmul.f32 %v3790, %v3797
      %v3806 = vmul.f32 %v3791, %v3795
      %3813 = vrot.lane.b32.xlu0 %v3801, 123
      %v3814 = vpop.permute.xlu0 %3813
      %3815 = vrot.lane.b32.xlu0 %v3802, 123
      %v3816 = vpop.permute.xlu0 %3815
      %3817 = vrot.lane.b32.xlu0 %v3803, 123
      %v3818 = vpop.permute.xlu0 %3817
      %3819 = vrot.lane.b32.xlu0 %v3804, 123
      %v3820 = vpop.permute.xlu0 %3819
      %3821 = vrot.lane.b32.xlu0 %v3805, 123
      %v3822 = vpop.permute.xlu0 %3821
      %3823 = vrot.lane.b32.xlu0 %v3806, 123
      %v3824 = vpop.permute.xlu0 %3823
      %vm3825 = vcmask 1006592
      %v3826 = vsel %vm3825, %v3814, %v3816
      %v3827 = vsel %vm3825, %v3816, %v3818
      %v3828 = vsel %vm3825, %v3820, %v3822
      %v3829 = vsel %vm3825, %v3822, %v3824
      %v3836 = vadd.f32 %v3478, %v3826
      %v3837 = vadd.f32 %v3479, %v3827
      %v3838 = vadd.f32 %v3480, %v3818
      %v3839 = vadd.f32 %v3481, %v3828
      %v3840 = vadd.f32 %v3482, %v3829
      %v3841 = vadd.f32 %v3483, %v3824
      %3842 = vset.pattern.permute.xlu0 6
      %3843 = vperm.xlu0 %3842, %v161
      %v3844 = vpop.permute.xlu0 %3843
      %3846 = vset.pattern.permute.xlu0 6
      %3847 = vperm.xlu0 %3846, %v162
      %v3848 = vpop.permute.xlu0 %3847
      %v3850 = vmul.f32 %v3844, 0.0
      %v3851 = vmul.f32 %v1660, %v3844
      %v3852 = vmul.f32 %v1662, %v3844
      %v3853 = vmul.f32 %v3848, 0.0
      %v3854 = vmul.f32 %v1666, %v3848
      %v3855 = vmul.f32 %v1668, %v3848
      %v3856 = vadd.f32 %v3850, 0.0
      %v3857 = vadd.f32 %v3851, 0.0
      %v3858 = vadd.f32 %v3852, 0.0
      %v3859 = vadd.f32 %v3853, 0.0
      %v3860 = vadd.f32 %v3854, 0.0
      %v3861 = vadd.f32 %v3855, 0.0
      %3862 = vset.pattern.permute.xlu0 13
      %3863 = vperm.xlu0 %3862, %v161
      %v3864 = vpop.permute.xlu0 %3863
      %3866 = vset.pattern.permute.xlu0 13
      %3867 = vperm.xlu0 %3866, %v162
      %v3868 = vpop.permute.xlu0 %3867
      %v3870 = vmul.f32 %v3864, 0.0
      %v3871 = vmul.f32 %v1660, %v3864
      %v3872 = vmul.f32 %v1662, %v3864
      %v3873 = vmul.f32 %v3868, 0.0
      %v3874 = vmul.f32 %v1666, %v3868
      %v3875 = vmul.f32 %v1668, %v3868
      %3882 = vrot.lane.b32.xlu0 %v3870, 112
      %v3883 = vpop.permute.xlu0 %3882
      %3884 = vrot.lane.b32.xlu0 %v3871, 112
      %v3885 = vpop.permute.xlu0 %3884
      %3886 = vrot.lane.b32.xlu0 %v3872, 112
      %v3887 = vpop.permute.xlu0 %3886
      %3888 = vrot.lane.b32.xlu0 %v3873, 112
      %v3889 = vpop.permute.xlu0 %3888
      %3890 = vrot.lane.b32.xlu0 %v3874, 112
      %v3891 = vpop.permute.xlu0 %3890
      %3892 = vrot.lane.b32.xlu0 %v3875, 112
      %v3893 = vpop.permute.xlu0 %3892
      %v3894 = vsel %vm232, %v3883, %v3885
      %v3895 = vsel %vm232, %v3885, %v3887
      %v3896 = vsel %vm232, %v3889, %v3891
      %v3897 = vsel %vm232, %v3891, %v3893
      %v3904 = vadd.f32 %v3856, %v3894
      %v3905 = vadd.f32 %v3857, %v3895
      %v3906 = vadd.f32 %v3858, %v3887
      %v3907 = vadd.f32 %v3859, %v3896
      %v3908 = vadd.f32 %v3860, %v3897
      %v3909 = vadd.f32 %v3861, %v3893
      %3910 = vset.pattern.permute.xlu0 20
      %3911 = vperm.xlu0 %3910, %v161
      %v3912 = vpop.permute.xlu0 %3911
      %3914 = vset.pattern.permute.xlu0 20
      %3915 = vperm.xlu0 %3914, %v162
      %v3916 = vpop.permute.xlu0 %3915
      %v3918 = vmul.f32 %v3912, 0.0
      %v3919 = vmul.f32 %v1660, %v3912
      %v3920 = vmul.f32 %v1662, %v3912
      %v3921 = vmul.f32 %v3916, 0.0
      %v3922 = vmul.f32 %v1666, %v3916
      %v3923 = vmul.f32 %v1668, %v3916
      %3930 = vrot.lane.b32.xlu0 %v3918, 96
      %v3931 = vpop.permute.xlu0 %3930
      %3932 = vrot.lane.b32.xlu0 %v3919, 96
      %v3933 = vpop.permute.xlu0 %3932
      %3934 = vrot.lane.b32.xlu0 %v3920, 96
      %v3935 = vpop.permute.xlu0 %3934
      %3936 = vrot.lane.b32.xlu0 %v3921, 96
      %v3937 = vpop.permute.xlu0 %3936
      %3938 = vrot.lane.b32.xlu0 %v3922, 96
      %v3939 = vpop.permute.xlu0 %3938
      %3940 = vrot.lane.b32.xlu0 %v3923, 96
      %v3941 = vpop.permute.xlu0 %3940
      %v3942 = vsel %vm257, %v3931, %v3933
      %v3943 = vsel %vm257, %v3933, %v3935
      %v3944 = vsel %vm257, %v3937, %v3939
      %v3945 = vsel %vm257, %v3939, %v3941
      %v3952 = vadd.f32 %v3904, %v3942
      %v3953 = vadd.f32 %v3905, %v3943
      %v3954 = vadd.f32 %v3906, %v3935
      %v3955 = vadd.f32 %v3907, %v3944
      %v3956 = vadd.f32 %v3908, %v3945
      %v3957 = vadd.f32 %v3909, %v3941
      %3958 = vset.pattern.permute.xlu0 27
      %3959 = vperm.xlu0 %3958, %v161
      %v3960 = vpop.permute.xlu0 %3959
      %3962 = vset.pattern.permute.xlu0 27
      %3963 = vperm.xlu0 %3962, %v162
      %v3964 = vpop.permute.xlu0 %3963
      %v3966 = vmul.f32 %v1660, %v3960
      %v3967 = vmul.f32 %v1662, %v3960
      %v3968 = vmul.f32 %v3960, 0.0
      %v3969 = vmul.f32 %v1666, %v3964
      %v3970 = vmul.f32 %v1668, %v3964
      %v3971 = vmul.f32 %v3964, 0.0
      %3978 = vrot.lane.b32.xlu0 %v3966, 80
      %v3979 = vpop.permute.xlu0 %3978
      %3980 = vrot.lane.b32.xlu0 %v3967, 80
      %v3981 = vpop.permute.xlu0 %3980
      %3982 = vrot.lane.b32.xlu0 %v3968, 80
      %v3983 = vpop.permute.xlu0 %3982
      %3984 = vrot.lane.b32.xlu0 %v3969, 80
      %v3985 = vpop.permute.xlu0 %3984
      %3986 = vrot.lane.b32.xlu0 %v3970, 80
      %v3987 = vpop.permute.xlu0 %3986
      %3988 = vrot.lane.b32.xlu0 %v3971, 80
      %v3989 = vpop.permute.xlu0 %3988
      %v3990 = vsel %vm706, %v3979, %v3981
      %v3991 = vsel %vm706, %v3981, %v3983
      %v3992 = vsel %vm706, %v3985, %v3987
      %v3993 = vsel %vm706, %v3987, %v3989
      %v4000 = vadd.f32 %v3952, %v3979
      %v4001 = vadd.f32 %v3953, %v3990
      %v4002 = vadd.f32 %v3954, %v3991
      %v4003 = vadd.f32 %v3955, %v3985
      %v4004 = vadd.f32 %v3956, %v3992
      %v4005 = vadd.f32 %v3957, %v3993
      %4006 = vset.pattern.permute.xlu0 34
      %4007 = vperm.xlu0 %4006, %v161
      %v4008 = vpop.permute.xlu0 %4007
      %4010 = vset.pattern.permute.xlu0 34
      %4011 = vperm.xlu0 %4010, %v162
      %v4012 = vpop.permute.xlu0 %4011
      %v4014 = vmul.f32 %v1660, %v4008
      %v4015 = vmul.f32 %v1662, %v4008
      %v4016 = vmul.f32 %v4008, 0.0
      %v4017 = vmul.f32 %v1666, %v4012
      %v4018 = vmul.f32 %v1668, %v4012
      %v4019 = vmul.f32 %v4012, 0.0
      %4026 = vrot.lane.b32.xlu0 %v4014, 64
      %v4027 = vpop.permute.xlu0 %4026
      %4028 = vrot.lane.b32.xlu0 %v4015, 64
      %v4029 = vpop.permute.xlu0 %4028
      %4030 = vrot.lane.b32.xlu0 %v4016, 64
      %v4031 = vpop.permute.xlu0 %4030
      %4032 = vrot.lane.b32.xlu0 %v4017, 64
      %v4033 = vpop.permute.xlu0 %4032
      %4034 = vrot.lane.b32.xlu0 %v4018, 64
      %v4035 = vpop.permute.xlu0 %4034
      %4036 = vrot.lane.b32.xlu0 %v4019, 64
      %v4037 = vpop.permute.xlu0 %4036
      %v4038 = vsel %vm494, %v4027, %v4029
      %v4039 = vsel %vm494, %v4029, %v4031
      %v4040 = vsel %vm494, %v4033, %v4035
      %v4041 = vsel %vm494, %v4035, %v4037
      %v4048 = vadd.f32 %v4000, %v4027
      %v4049 = vadd.f32 %v4001, %v4038
      %v4050 = vadd.f32 %v4002, %v4039
      %v4051 = vadd.f32 %v4003, %v4033
      %v4052 = vadd.f32 %v4004, %v4040
      %v4053 = vadd.f32 %v4005, %v4041
      %4054 = vset.pattern.permute.xlu0 41
      %4055 = vperm.xlu0 %4054, %v161
      %v4056 = vpop.permute.xlu0 %4055
      %4058 = vset.pattern.permute.xlu0 41
      %4059 = vperm.xlu0 %4058, %v162
      %v4060 = vpop.permute.xlu0 %4059
      %v4062 = vmul.f32 %v1660, %v4056
      %v4063 = vmul.f32 %v1662, %v4056
      %v4064 = vmul.f32 %v4056, 0.0
      %v4065 = vmul.f32 %v1666, %v4060
      %v4066 = vmul.f32 %v1668, %v4060
      %v4067 = vmul.f32 %v4060, 0.0
      %4074 = vrot.lane.b32.xlu0 %v4062, 48
      %v4075 = vpop.permute.xlu0 %4074
      %4076 = vrot.lane.b32.xlu0 %v4063, 48
      %v4077 = vpop.permute.xlu0 %4076
      %4078 = vrot.lane.b32.xlu0 %v4064, 48
      %v4079 = vpop.permute.xlu0 %4078
      %4080 = vrot.lane.b32.xlu0 %v4065, 48
      %v4081 = vpop.permute.xlu0 %4080
      %4082 = vrot.lane.b32.xlu0 %v4066, 48
      %v4083 = vpop.permute.xlu0 %4082
      %4084 = vrot.lane.b32.xlu0 %v4067, 48
      %v4085 = vpop.permute.xlu0 %4084
      %v4086 = vsel %vm1265, %v4075, %v4077
      %v4087 = vsel %vm1265, %v4077, %v4079
      %v4088 = vsel %vm1265, %v4081, %v4083
      %v4089 = vsel %vm1265, %v4083, %v4085
      %v4096 = vadd.f32 %v4048, %v4075
      %v4097 = vadd.f32 %v4049, %v4086
      %v4098 = vadd.f32 %v4050, %v4087
      %v4099 = vadd.f32 %v4051, %v4081
      %v4100 = vadd.f32 %v4052, %v4088
      %v4101 = vadd.f32 %v4053, %v4089
      %4102 = vset.pattern.permute.xlu0 48
      %4103 = vperm.xlu0 %4102, %v161
      %v4104 = vpop.permute.xlu0 %4103
      %4106 = vset.pattern.permute.xlu0 48
      %4107 = vperm.xlu0 %4106, %v162
      %v4108 = vpop.permute.xlu0 %4107
      %v4110 = vmul.f32 %v1660, %v4104
      %v4111 = vmul.f32 %v1662, %v4104
      %v4112 = vmul.f32 %v4104, 0.0
      %v4113 = vmul.f32 %v1666, %v4108
      %v4114 = vmul.f32 %v1668, %v4108
      %v4115 = vmul.f32 %v4108, 0.0
      %4122 = vrot.lane.b32.xlu0 %v4110, 32
      %v4123 = vpop.permute.xlu0 %4122
      %4124 = vrot.lane.b32.xlu0 %v4111, 32
      %v4125 = vpop.permute.xlu0 %4124
      %4126 = vrot.lane.b32.xlu0 %v4112, 32
      %v4127 = vpop.permute.xlu0 %4126
      %4128 = vrot.lane.b32.xlu0 %v4113, 32
      %v4129 = vpop.permute.xlu0 %4128
      %4130 = vrot.lane.b32.xlu0 %v4114, 32
      %v4131 = vpop.permute.xlu0 %4130
      %4132 = vrot.lane.b32.xlu0 %v4115, 32
      %v4133 = vpop.permute.xlu0 %4132
      %v4134 = vsel %vm731, %v4123, %v4125
      %v4135 = vsel %vm731, %v4125, %v4127
      %v4136 = vsel %vm731, %v4129, %v4131
      %v4137 = vsel %vm731, %v4131, %v4133
      %v4144 = vadd.f32 %v4096, %v4123
      %v4145 = vadd.f32 %v4097, %v4134
      %v4146 = vadd.f32 %v4098, %v4135
      %v4147 = vadd.f32 %v4099, %v4129
      %v4148 = vadd.f32 %v4100, %v4136
      %v4149 = vadd.f32 %v4101, %v4137
      %v4150 = vmul.f32 %v4144, %v889
      %v4151 = vmul.f32 %v4145, %v893
      %v4152 = vmul.f32 %v4146, %v891
      %v4153 = vmul.f32 %v4147, %v889
      %v4154 = vmul.f32 %v4148, %v893
      %v4155 = vmul.f32 %v4149, %v891
      %4162 = vrot.lane.b32.xlu0 %v4150, 122
      %v4163 = vpop.permute.xlu0 %4162
      %4164 = vrot.lane.b32.xlu0 %v4151, 122
      %v4165 = vpop.permute.xlu0 %4164
      %4166 = vrot.lane.b32.xlu0 %v4152, 122
      %v4167 = vpop.permute.xlu0 %4166
      %4168 = vrot.lane.b32.xlu0 %v4153, 122
      %v4169 = vpop.permute.xlu0 %4168
      %4170 = vrot.lane.b32.xlu0 %v4154, 122
      %v4171 = vpop.permute.xlu0 %4170
      %4172 = vrot.lane.b32.xlu0 %v4155, 122
      %v4173 = vpop.permute.xlu0 %4172
      %v4174 = vsel %vm909, %v4163, %v4165
      %v4175 = vsel %vm909, %v4165, %v4167
      %v4176 = vsel %vm909, %v4169, %v4171
      %v4177 = vsel %vm909, %v4171, %v4173
      %v4184 = vadd.f32 %v3836, %v4174
      %v4185 = vadd.f32 %v3837, %v4175
      %v4186 = vadd.f32 %v3838, %v4167
      %v4187 = vadd.f32 %v3839, %v4176
      %v4188 = vadd.f32 %v3840, %v4177
      %v4189 = vadd.f32 %v3841, %v4173
      %vm4190 = vcmask 1048168
      %v4191 = vsel %vm4190, %v4184, 0.0
      %v4192 = vsel %vm4190, %v4187, 0.0
      %v4193 = vadd.f32 %v4191, %v4192
      %v4194 = vrot.slane %v4193, 4
      %v4195 = vadd.f32 %v4193, %v4194
      %v4196 = vrot.slane %v4195, 2
      %v4197 = vadd.f32 %v4195, %v4196
      %v4198 = vrot.slane %v4197, 1
      %v4199 = vadd.f32 %v4197, %v4198
      %v4200 = vadd.f32 %v4185, %v4188
      %v4201 = vrot.slane %v4200, 4
      %v4202 = vadd.f32 %v4200, %v4201
      %v4203 = vrot.slane %v4202, 2
      %v4204 = vadd.f32 %v4202, %v4203
      %v4205 = vrot.slane %v4204, 1
      %v4206 = vadd.f32 %v4204, %v4205
      %v4207 = vsel %vm746, %v4186, 0.0
      %v4208 = vsel %vm746, %v4189, 0.0
      %v4209 = vadd.f32 %v4207, %v4208
      %v4210 = vrot.slane %v4209, 4
      %v4211 = vadd.f32 %v4209, %v4210
      %v4212 = vrot.slane %v4211, 2
      %v4213 = vadd.f32 %v4211, %v4212
      %v4214 = vrot.slane %v4213, 1
      %v4215 = vadd.f32 %v4213, %v4214
      %v4216 = vxor.u32 %v4199, 2147483648
      %v4217 = vxor.u32 %v4206, 2147483648
      %v4218 = vxor.u32 %v4215, 2147483648
      %v4219 = vmul.f32 %v4216, 1.442695
      %v4220 = vpow.pop %v4219
      %v4221 = vmul.f32 %v4217, 1.442695
      %v4222 = vpow.pop %v4221
      %v4223 = vmul.f32 %v4218, 1.442695
      %v4224 = vpow.pop %v4223
      %v4225 = vadd.f32 %v4220, 1.0
      %v4226 = vadd.f32 %v4222, 1.0
      %v4227 = vadd.f32 %v4224, 1.0
      %v4228 = vrcp.pop %v4225
      %v4229 = vmul.f32 1.0, %v4228
      %v4230 = vrcp.pop %v4226
      %v4231 = vmul.f32 1.0, %v4230
      %v4232 = vrcp.pop %v4227
      %v4233 = vmul.f32 1.0, %v4232
      %v4234 = vmul.f32 %v1660, %v1660
      %v4235 = vmul.f32 %v1662, %v1662
      %v4236 = vmul.f32 %v1666, %v1666
      %v4237 = vmul.f32 %v1668, %v1668
      %4239 = vset.pattern.permute.xlu0 0
      %4240 = vperm.xlu0 %4239, %v1756
      %v4241 = vpop.permute.xlu0 %4240
      %4244 = vset.pattern.permute.xlu0 0
      %4245 = vperm.xlu0 %4244, %v1758
      %v4246 = vpop.permute.xlu0 %4245
      %v4248 = vmul.f32 %v4234, %v4241
      %v4249 = vmul.f32 %v4235, %v4241
      %v4250 = vmul.f32 %v4236, %v4246
      %v4251 = vmul.f32 %v4237, %v4246
      %4255 = vrot.lane.b32.xlu0 %v4229, 51
      %v4256 = vpop.permute.xlu0 %4255
      %4257 = vrot.lane.b32.xlu0 %v4231, 51
      %v4258 = vpop.permute.xlu0 %4257
      %4259 = vrot.lane.b32.xlu0 %v4233, 51
      %v4260 = vpop.permute.xlu0 %4259
      %vm4261 = vcmask 416768
      %v4262 = vsel %vm4261, %v4256, %v4258
      %v4263 = vsel %vm4261, %v4258, %v4260
      %v4266 = vmul.f32 %v4248, %v4262
      %v4267 = vmul.f32 %v4249, %v4263
      %v4268 = vmul.f32 %v4250, %v4262
      %v4269 = vmul.f32 %v4251, %v4263
      %v4270 = vadd.f32 %v1151, %v4266
      %v4271 = vadd.f32 %v1153, %v4267
      %v4272 = vadd.f32 %v1157, %v4268
      %v4273 = vadd.f32 %v1159, %v4269
      %4274 = vst [vmem:[%s143] sm:$0xff] %v4270
      %4275 = vst [vmem:[%s143 + $0x8] sm:$0xff] %v4271
      %4276 = vst [vmem:[%s143 + $0x10] sm:$0xff] %v4272
      %4277 = vst [vmem:[%s143 + $0x18] sm:$0xff] %v4273
      %p4278 = scmp.lt.s32.totalorder %s13, 1
      %s4279 = scalar_select %p4278, %s13, 1
      %s4280 = smul.addr %s4279, 4
      %s4281 = smul.addr %s4280, 8
      %s4282 = scalar_lea.vmem %s2, %s4281
      // Predicated region
      $region29: #{dwr_forward.1} parent=27 // pred_check
        %p4283 = pneg %p78
      $region30: #{dwr_forward.1} parent=27 // pred_check_branch
        %4285 = sbr.rel (%p4283) target = $region32
      $region31: #{dwr_forward.1} parent=27 // pred_region
        _
      $region32: #{dwr_forward.1} parent=27 // pred_fallthru
        _
    $region28: #{dwr_forward.1} parent=5 // pred_fallthru
      _
    %p4286 = scmp.le.s32.totalorder 2, %s8
    // Predicated region
    $region33: #{dwr_forward.1} parent=5 // pred_check
      %p4287 = pneg %p4286
    $region34: #{dwr_forward.1} parent=5 // pred_check_branch
      %4289 = sbr.rel (%p4287) target = $region36
    $region35: #{dwr_forward.1} parent=5 // pred_region
      %s4290 = ssub.s32 %s8, 2
      // Predicated region
      $region37: #{dwr_forward.1} parent=35 // pred_check
        %p4291 = pneg %p84
      $region38: #{dwr_forward.1} parent=35 // pred_check_branch
        %4293 = sbr.rel (%p4291) target = $region40
      $region39: #{dwr_forward.1} parent=35 // pred_region
        %p4294 = scmp.lt.s32.totalorder %s14, 1
        %s4295 = scalar_select %p4294, %s14, 1
        %s4296 = smul.addr %s4295, 4
        %s4297 = smul.addr %s4296, 8
        %s4298 = scalar_lea.vmem %s2, %s4297
      $region40: #{dwr_forward.1} parent=35 // pred_fallthru
        _
    $region36: #{dwr_forward.1} parent=5 // pred_fallthru
      _
  $region6: #{dwr_forward.1} parent=0 // loop_footer
    %s12 = sadd.s32 1, %s8
  $region7: #{dwr_forward.1} parent=0 // loop_footer_branch
    %7 = sbr.rel target = $region3
  $region8: #{dwr_forward.1} parent=0 // loop_exit
    _

</llo_original>
